<compile_context>
chip_gen: v6e
topology: v6e:2x2x1
jax: 0.10.0
libtpu: 0.0.40
codegen_flags: <defaults>
</compile_context>

<pallas_src>
import numpy as np
import jax
import jax.numpy as jnp
from jax.experimental import pallas as pl
from jax.experimental.pallas import tpu as pltpu


def _round_up(x, m):
    return (x + m - 1) // m * m


# ----------------------------------------------------------------------------
# Parameter construction (mirrors ConvBlock.__init__ / init_weight)
# ----------------------------------------------------------------------------
def make_convblock_params(key, in_channels, out_channels, eps=1e-5):
    k1, k2 = jax.random.split(key)

    def xavier(k, shape):
        fan_in = shape[1] * shape[2] * shape[3]
        fan_out = shape[0] * shape[2] * shape[3]
        limit = float(np.sqrt(6.0 / (fan_in + fan_out)))
        return jax.random.uniform(k, shape, jnp.float32, -limit, limit)

    def bn_init(c):
        return dict(gamma=jnp.ones((c,), jnp.float32),
                    beta=jnp.zeros((c,), jnp.float32),
                    mean=jnp.zeros((c,), jnp.float32),
                    var=jnp.ones((c,), jnp.float32))

    return dict(w1=xavier(k1, (out_channels, in_channels, 3, 3)),
                w2=xavier(k2, (out_channels, out_channels, 3, 3)),
                bn1=bn_init(out_channels), bn2=bn_init(out_channels),
                eps=float(eps))


# ----------------------------------------------------------------------------
# Fused Pallas forward
# ----------------------------------------------------------------------------
def convblock_pallas(x, params, pool_size=(2, 2), pool_type="avg",
                     strip_rows=None):
    """x: (B, Cin, H, W) float32 -> (B, Cout, H//2, W//2) float32."""
    if pool_type != "avg" or tuple(pool_size) != (2, 2):
        # TODO(synk): only the module's default avg 2x2 pooling path is implemented.
        raise NotImplementedError("only pool_type='avg', pool_size=(2,2)")

    B, Cin, H, W = x.shape
    Cout = params["w1"].shape[0]
    assert H % 2 == 0 and W % 2 == 0
    eps = params["eps"]

    # ---- spatial strip size (even divisor of H, <= 32 rows) ------------------
    if strip_rows is None:
        cands = [s for s in range(2, min(H, 32) + 1, 2) if H % s == 0]
        strip_rows = cands[-1] if cands else H
    S = int(strip_rows)
    assert S % 2 == 0 and H % S == 0
    NS = H // S                         # number of row strips
    PS, PW, PH = S // 2, W // 2, H // 2

    COUTP = _round_up(Cout, 128)        # lane-dense output channels
    K1 = 9 * Cin                        # conv1 taps folded into K (unpadded in HBM)

    # ---- fold BN (inference mode) into per-channel scale + bias --------------
    def fold_bn(bn):
        sc = bn["gamma"] / jnp.sqrt(bn["var"] + eps)
        bi = bn["beta"] - bn["mean"] * sc
        sp = jnp.zeros((1, COUTP), jnp.float32).at[0, :Cout].set(sc)
        bp = jnp.zeros((1, COUTP), jnp.float32).at[0, :Cout].set(bi)
        return sp, bp

    s1, b1 = fold_bn(params["bn1"])
    s2, b2 = fold_bn(params["bn2"])

    # ---- conv1 weights as a single (9*Cin, COUTP) matmul matrix, bf16 --------
    w1m = jnp.transpose(params["w1"], (2, 3, 1, 0)).reshape(K1, Cout)
    w1m = (jnp.zeros((K1, COUTP), jnp.float32).at[:, :Cout].set(w1m)
           .astype(jnp.bfloat16))

    # ---- conv2 weights as per-tap (9, COUTP, COUTP) matrices, bf16 ------------
    w2t = jnp.transpose(params["w2"], (2, 3, 1, 0)).reshape(9, Cout, Cout)
    w2t = (jnp.zeros((9, COUTP, COUTP), jnp.float32)
           .at[:, :Cout, :Cout].set(w2t).astype(jnp.bfloat16))

    # ---- im2col of the input (taps folded into channels), bf16 ----------------
    xh = jnp.transpose(x, (0, 2, 3, 1)).astype(jnp.float32)        # (B,H,W,Cin)
    xp = jnp.pad(xh, ((0, 0), (1, 1), (1, 1), (0, 0)))             # spatial pad
    cols = jnp.concatenate(
        [xp[:, ky:ky + H, kx:kx + W, :] for ky in range(3) for kx in range(3)],
        axis=-1).astype(jnp.bfloat16)                               # (B,H,W,K1)

    # ---- halo-expanded row strips: strip s holds im2col rows [s*S-1, s*S+S] ---
    colsp = jnp.pad(cols, ((0, 0), (1, 1), (0, 0), (0, 0)))         # (B,H+2,W,K1)
    x_strips = jnp.stack([colsp[:, s * S:s * S + S + 2] for s in range(NS)],
                         axis=1)                                    # (B,NS,S+2,W,K1)

    # ---- VMEM budget (per grid step, incl. default double-buffering) ----------
    per_step = (2 * (S + 2) * W * K1 * 2          # im2col strip (bf16, 2 bufs)
                + 2 * K1 * COUTP * 2              # w1
                + 2 * 9 * COUTP * COUTP * 2       # w2
                + 2 * 4 * COUTP * 4               # BN scale/bias
                + 2 * PS * PW * COUTP * 4         # output block
                + 3 * (S + 2) * W * COUTP * 2     # y1 shifted-copy scratch
                + S * W * COUTP * 4)              # conv2 accumulator scratch
    vmem_limit = int(min(96 << 20, max(32 << 20, 2 * per_step + (4 << 20))))

    def kernel(xc_ref, w1_ref, w2_ref, s1_ref, b1_ref, s2_ref, b2_ref,
               out_ref, y1s_ref, acc_ref):
        si = pl.program_id(1)
        ns = pl.num_programs(1)

        # ---- conv1 + BN1 + ReLU: one MXU matmul over the im2col'd strip ------
        xs = xc_ref[0, 0].reshape((S + 2) * W, K1)                  # bf16
        a1 = jnp.dot(xs, w1_ref[...], preferred_element_type=jnp.float32)
        y1 = jnp.maximum(a1 * s1_ref[...] + b1_ref[...], 0.0)       # f32 epilogue
        y1b = y1.reshape(S + 2, W, COUTP).astype(jnp.bfloat16)

        # ---- stage 3 dx-shifted copies (zero side cols == conv2 L/R padding) -
        zcol = jnp.zeros((S + 2, 1, COUTP), jnp.bfloat16)
        y1s_ref[0] = jnp.concatenate([zcol, y1b[:, :W - 1, :]], axis=1)
        y1s_ref[1] = y1b
        y1s_ref[2] = jnp.concatenate([y1b[:, 1:, :], zcol], axis=1)

        # ---- halo rows outside the image == conv2 top/bottom zero padding ----
        zrow = jnp.zeros((3, 1, W, COUTP), jnp.bfloat16)

        @pl.when(si == 0)
        def _():
            y1s_ref[:, 0:1, :, :] = zrow

        @pl.when(si == ns - 1)
        def _():
            y1s_ref[:, S + 1:S + 2, :, :] = zrow

        # ---- conv2: 3 dx copies x 3 aligned dy row-slices, VMEM accumulator --
        for t in range(9):
            ky, kx = t // 3, t % 3
            ys = y1s_ref[kx, ky:ky + S, :, :].reshape(S * W, COUTP)  # bf16
            part = jnp.dot(ys, w2_ref[t], preferred_element_type=jnp.float32)
            if t == 0:
                acc_ref[...] = part
            else:
                acc_ref[...] += part

        # ---- BN2 + ReLU + 2x2 average pool (pure VPU adds, no pool matmul) ---
        y2 = jnp.maximum(acc_ref[...] * s2_ref[...] + b2_ref[...], 0.0)
        y2 = y2.reshape(PS, 2 * W, COUTP)
        rsum = y2[:, :W, :] + y2[:, W:, :]            # add adjacent row pairs
        csum = rsum.reshape(PS, PW, 2, COUTP)
        pooled = (csum[:, :, 0, :] + csum[:, :, 1, :]) * 0.25
        out_ref[0] = pooled                            # (PS, PW, COUTP) f32

    flops = int(2 * B * H * W * K1 * COUTP            # conv1 (im2col matmul)
                + 2 * B * H * W * 9 * COUTP * COUTP   # conv2
                + 4 * B * PH * PW * COUTP)            # pooling adds
    bytes_accessed = int(x_strips.size * 2 + w1m.size * 2 + w2t.size * 2
                         + 4 * COUTP * 4 + B * PH * PW * COUTP * 4)

    out = pl.pallas_call(
        kernel,
        out_shape=jax.ShapeDtypeStruct((B, PH, PW, COUTP), jnp.float32),
        grid_spec=pltpu.PrefetchScalarGridSpec(
            num_scalar_prefetch=0,
            grid=(B, NS),
            in_specs=[
                pl.BlockSpec((1, 1, S + 2, W, K1), lambda b, s: (b, s, 0, 0, 0)),
                pl.BlockSpec((K1, COUTP), lambda b, s: (0, 0)),
                pl.BlockSpec((9, COUTP, COUTP), lambda b, s: (0, 0, 0)),
                pl.BlockSpec((1, COUTP), lambda b, s: (0, 0)),
                pl.BlockSpec((1, COUTP), lambda b, s: (0, 0)),
                pl.BlockSpec((1, COUTP), lambda b, s: (0, 0)),
                pl.BlockSpec((1, COUTP), lambda b, s: (0, 0)),
            ],
            out_specs=pl.BlockSpec((1, PS, PW, COUTP), lambda b, s: (b, s, 0, 0)),
            scratch_shapes=[
                pltpu.VMEM((3, S + 2, W, COUTP), jnp.bfloat16),   # shifted y1
                pltpu.VMEM((S * W, COUTP), jnp.float32),          # conv2 acc
            ],
        ),
        compiler_params=pltpu.CompilerParams(
            dimension_semantics=("parallel", "parallel"),
            vmem_limit_bytes=vmem_limit),
        cost_estimate=pl.CostEstimate(flops=flops, transcendentals=0,
                                      bytes_accessed=bytes_accessed),
    )(x_strips, w1m, w2t, s1, b1, s2, b2)

    # back to PyTorch layout (B, Cout, H//2, W//2)
    return jnp.transpose(out[..., :Cout], (0, 3, 1, 2))


# ----------------------------------------------------------------------------
# Pure-JAX reference (same math, no Pallas)
# ----------------------------------------------------------------------------
def convblock_ref(x, params):
    eps = params["eps"]

    def bn(y, p):
        s = p["gamma"] / jnp.sqrt(p["var"] + eps)
        b = p["beta"] - p["mean"] * s
        return y * s[None, :, None, None] + b[None, :, None, None]

    def conv(y, w):
        return jax.lax.conv_general_dilated(
            y, w, window_strides=(1, 1), padding=((1, 1), (1, 1)),
            dimension_numbers=("NCHW", "OIHW", "NCHW"))

    y = jnp.maximum(bn(conv(x.astype(jnp.float32), params["w1"]), params["bn1"]), 0.0)
    y = jnp.maximum(bn(conv(y, params["w2"]), params["bn2"]), 0.0)
    B, C, H, W = y.shape
    return y.reshape(B, C, H // 2, 2, W // 2, 2).mean(axis=(3, 5))


if __name__ == "__main__":
    key = jax.random.PRNGKey(0)
    kx, kp = jax.random.split(key)
    B, Cin, Cout, H, W = 2, 4, 16, 16, 16

    x = jax.random.normal(kx, (B, Cin, H, W), dtype=jnp.float32)
    params = make_convblock_params(kp, Cin, Cout)

    # strip_rows=8 -> 2 row strips per image (exercises the halo/strip path)
    out = convblock_pallas(x, params, strip_rows=8)
    out = jax.block_until_ready(out)

    ref = convblock_ref(x, params)
    assert out.shape == (B, Cout, H // 2, W // 2), out.shape
    # bf16 MXU matmuls with f32 accumulation -> allow bf16-level tolerance
    assert jnp.allclose(out, ref, rtol=2e-2, atol=2e-2), \
        float(jnp.max(jnp.abs(out - ref)))

    print("KERNEL_OK")
</pallas_src>

<mosaic_0001>
module attributes {stable_mosaic.version = 11 : i64} {
  func.func @kernel(%arg0: i32, %arg1: i32, %arg2: memref<1x1x10x16x36xbf16, #tpu.memory_space<vmem>>, %arg3: memref<36x128xbf16, #tpu.memory_space<vmem>>, %arg4: memref<9x128x128xbf16, #tpu.memory_space<vmem>>, %arg5: memref<1x128xf32, #tpu.memory_space<vmem>>, %arg6: memref<1x128xf32, #tpu.memory_space<vmem>>, %arg7: memref<1x128xf32, #tpu.memory_space<vmem>>, %arg8: memref<1x128xf32, #tpu.memory_space<vmem>>, %arg9: memref<1x4x8x128xf32, #tpu.memory_space<vmem>>, %arg10: memref<3x10x16x128xbf16, #tpu.memory_space<vmem>>, %arg11: memref<128x128xf32, #tpu.memory_space<vmem>>) attributes {dimension_semantics = [#tpu.dimension_semantics<parallel>, #tpu.dimension_semantics<parallel>], iteration_bounds = array<i64: 2, 2>, scalar_prefetch = 0 : i64, scratch_operands = 2 : i64, tpu.core_type = #tpu.core_type<tc>, window_params = [{transform_indices = @transform_0, window_bounds = array<i64: 1, 1, 10, 16, 36>}, {pipeline_mode = #tpu.pipeline_mode<synchronous>, transform_indices = @transform_1, window_bounds = array<i64: 36, 128>}, {pipeline_mode = #tpu.pipeline_mode<synchronous>, transform_indices = @transform_2, window_bounds = array<i64: 9, 128, 128>}, {pipeline_mode = #tpu.pipeline_mode<synchronous>, transform_indices = @transform_3, window_bounds = array<i64: 1, 128>}, {pipeline_mode = #tpu.pipeline_mode<synchronous>, transform_indices = @transform_4, window_bounds = array<i64: 1, 128>}, {pipeline_mode = #tpu.pipeline_mode<synchronous>, transform_indices = @transform_5, window_bounds = array<i64: 1, 128>}, {pipeline_mode = #tpu.pipeline_mode<synchronous>, transform_indices = @transform_6, window_bounds = array<i64: 1, 128>}, {transform_indices = @transform_7, window_bounds = array<i64: 1, 4, 8, 128>}]} {
    %c0 = arith.constant 0 : index
    %c0_0 = arith.constant 0 : index
    %c0_1 = arith.constant 0 : index
    %c0_2 = arith.constant 0 : index
    %c0_3 = arith.constant 0 : index
    %0 = vector.load %arg2[%c0, %c0_0, %c0_1, %c0_2, %c0_3] : memref<1x1x10x16x36xbf16, #tpu.memory_space<vmem>>, vector<1x1x10x16x36xbf16>
    %1 = vector.shape_cast %0 : vector<1x1x10x16x36xbf16> to vector<10x16x36xbf16>
    %2 = vector.shape_cast %1 : vector<10x16x36xbf16> to vector<160x36xbf16>
    %c0_4 = arith.constant 0 : index
    %c0_5 = arith.constant 0 : index
    %3 = vector.load %arg3[%c0_4, %c0_5] : memref<36x128xbf16, #tpu.memory_space<vmem>>, vector<36x128xbf16>
    %cst = arith.constant dense<0.000000e+00> : vector<160x128xf32>
    %4 = tpu.matmul %2, %3, %cst {dimension_numbers = #tpu.dot_dimension_numbers<[1], [0], [0], [1], [0, 0, 1, 1], [], []>} : vector<160x36xbf16>, vector<36x128xbf16>, vector<160x128xf32> -> vector<160x128xf32>
    %c0_6 = arith.constant 0 : index
    %c0_7 = arith.constant 0 : index
    %5 = vector.load %arg5[%c0_6, %c0_7] : memref<1x128xf32, #tpu.memory_space<vmem>>, vector<1x128xf32>
    %6 = vector.broadcast %5 : vector<1x128xf32> to vector<160x128xf32>
    %7 = arith.mulf %4, %6 : vector<160x128xf32>
    %c0_8 = arith.constant 0 : index
    %c0_9 = arith.constant 0 : index
    %8 = vector.load %arg6[%c0_8, %c0_9] : memref<1x128xf32, #tpu.memory_space<vmem>>, vector<1x128xf32>
    %9 = vector.broadcast %8 : vector<1x128xf32> to vector<160x128xf32>
    %10 = arith.addf %7, %9 : vector<160x128xf32>
    %cst_10 = arith.constant 0.000000e+00 : f32
    %11 = vector.broadcast %cst_10 : f32 to vector<160x128xf32>
    %12 = arith.maximumf %10, %11 : vector<160x128xf32>
    %13 = vector.shape_cast %12 : vector<160x128xf32> to vector<10x16x128xf32>
    %14 = arith.truncf %13 : vector<10x16x128xf32> to vector<10x16x128xbf16>
    %cst_11 = arith.constant 0.000000e+00 : bf16
    %15 = vector.broadcast %cst_11 : bf16 to vector<10x1x128xbf16>
    %16 = vector.extract_strided_slice %14 {offsets = [0, 0, 0], sizes = [10, 15, 128], strides = [1, 1, 1]} : vector<10x16x128xbf16> to vector<10x15x128xbf16>
    %17 = tpu.concatenate %15, %16 in 1 : vector<10x1x128xbf16>, vector<10x15x128xbf16> -> vector<10x16x128xbf16>
    %c0_12 = arith.constant 0 : index
    %c0_13 = arith.constant 0 : index
    %c0_14 = arith.constant 0 : index
    %c0_15 = arith.constant 0 : index
    %18 = vector.load %arg10[%c0_12, %c0_13, %c0_14, %c0_15] : memref<3x10x16x128xbf16, #tpu.memory_space<vmem>>, vector<1x10x16x128xbf16>
    %19 = vector.shape_cast %18 : vector<1x10x16x128xbf16> to vector<10x16x128xbf16>
    %20 = vector.shape_cast %17 : vector<10x16x128xbf16> to vector<1x10x16x128xbf16>
    tpu.vector_store %arg10[%c0_12, %c0_13, %c0_14, %c0_15], %20 {strides = array<i32>} : memref<3x10x16x128xbf16, #tpu.memory_space<vmem>>, vector<1x10x16x128xbf16>,
    %c1 = arith.constant 1 : index
    %c0_16 = arith.constant 0 : index
    %c0_17 = arith.constant 0 : index
    %c0_18 = arith.constant 0 : index
    %21 = vector.load %arg10[%c1, %c0_16, %c0_17, %c0_18] : memref<3x10x16x128xbf16, #tpu.memory_space<vmem>>, vector<1x10x16x128xbf16>
    %22 = vector.shape_cast %21 : vector<1x10x16x128xbf16> to vector<10x16x128xbf16>
    %23 = vector.shape_cast %14 : vector<10x16x128xbf16> to vector<1x10x16x128xbf16>
    tpu.vector_store %arg10[%c1, %c0_16, %c0_17, %c0_18], %23 {strides = array<i32>} : memref<3x10x16x128xbf16, #tpu.memory_space<vmem>>, vector<1x10x16x128xbf16>,
    %24 = vector.extract_strided_slice %14 {offsets = [0, 1, 0], sizes = [10, 15, 128], strides = [1, 1, 1]} : vector<10x16x128xbf16> to vector<10x15x128xbf16>
    %25 = tpu.concatenate %24, %15 in 1 : vector<10x15x128xbf16>, vector<10x1x128xbf16> -> vector<10x16x128xbf16>
    %c2 = arith.constant 2 : index
    %c0_19 = arith.constant 0 : index
    %c0_20 = arith.constant 0 : index
    %c0_21 = arith.constant 0 : index
    %26 = vector.load %arg10[%c2, %c0_19, %c0_20, %c0_21] : memref<3x10x16x128xbf16, #tpu.memory_space<vmem>>, vector<1x10x16x128xbf16>
    %27 = vector.shape_cast %26 : vector<1x10x16x128xbf16> to vector<10x16x128xbf16>
    %28 = vector.shape_cast %25 : vector<10x16x128xbf16> to vector<1x10x16x128xbf16>
    tpu.vector_store %arg10[%c2, %c0_19, %c0_20, %c0_21], %28 {strides = array<i32>} : memref<3x10x16x128xbf16, #tpu.memory_space<vmem>>, vector<1x10x16x128xbf16>,
    %cst_22 = arith.constant 0.000000e+00 : bf16
    %29 = vector.broadcast %cst_22 : bf16 to vector<3x1x16x128xbf16>
    %c0_i32 = arith.constant 0 : i32
    %30 = arith.cmpi eq, %arg1, %c0_i32 : i32
    %31 = arith.extui %30 : i1 to i32
    %c0_i32_23 = arith.constant 0 : i32
    %32 = arith.cmpi ne, %31, %c0_i32_23 : i32
    scf.if %32 {
      %c0_137 = arith.constant 0 : index
      %c0_138 = arith.constant 0 : index
      %c0_139 = arith.constant 0 : index
      %c0_140 = arith.constant 0 : index
      %139 = vector.load %arg10[%c0_137, %c0_138, %c0_139, %c0_140] : memref<3x10x16x128xbf16, #tpu.memory_space<vmem>>, vector<3x1x16x128xbf16>
      tpu.vector_store %arg10[%c0_137, %c0_138, %c0_139, %c0_140], %29 {strides = array<i32>} : memref<3x10x16x128xbf16, #tpu.memory_space<vmem>>, vector<3x1x16x128xbf16>,
    } else {
    }
    %c1_i32 = arith.constant 1 : i32
    %33 = arith.cmpi eq, %arg1, %c1_i32 : i32
    %34 = arith.extui %33 : i1 to i32
    %c0_i32_24 = arith.constant 0 : i32
    %35 = arith.cmpi ne, %34, %c0_i32_24 : i32
    scf.if %35 {
      %c0_137 = arith.constant 0 : index
      %c9 = arith.constant 9 : index
      %c0_138 = arith.constant 0 : index
      %c0_139 = arith.constant 0 : index
      %139 = vector.load %arg10[%c0_137, %c9, %c0_138, %c0_139] : memref<3x10x16x128xbf16, #tpu.memory_space<vmem>>, vector<3x1x16x128xbf16>
      tpu.vector_store %arg10[%c0_137, %c9, %c0_138, %c0_139], %29 {strides = array<i32>} : memref<3x10x16x128xbf16, #tpu.memory_space<vmem>>, vector<3x1x16x128xbf16>,
    } else {
    }
    %c0_25 = arith.constant 0 : index
    %c0_26 = arith.constant 0 : index
    %c0_27 = arith.constant 0 : index
    %c0_28 = arith.constant 0 : index
    %36 = vector.load %arg10[%c0_25, %c0_26, %c0_27, %c0_28] : memref<3x10x16x128xbf16, #tpu.memory_space<vmem>>, vector<1x8x16x128xbf16>
    %37 = vector.shape_cast %36 : vector<1x8x16x128xbf16> to vector<8x16x128xbf16>
    %38 = vector.shape_cast %37 : vector<8x16x128xbf16> to vector<128x128xbf16>
    %c0_29 = arith.constant 0 : index
    %c0_30 = arith.constant 0 : index
    %c0_31 = arith.constant 0 : index
    %39 = vector.load %arg4[%c0_29, %c0_30, %c0_31] : memref<9x128x128xbf16, #tpu.memory_space<vmem>>, vector<1x128x128xbf16>
    %40 = vector.shape_cast %39 : vector<1x128x128xbf16> to vector<128x128xbf16>
    %cst_32 = arith.constant dense<0.000000e+00> : vector<128x128xf32>
    %41 = tpu.matmul %38, %40, %cst_32 {dimension_numbers = #tpu.dot_dimension_numbers<[1], [0], [0], [1], [0, 0, 1, 1], [], []>} : vector<128x128xbf16>, vector<128x128xbf16>, vector<128x128xf32> -> vector<128x128xf32>
    %c0_33 = arith.constant 0 : index
    %c0_34 = arith.constant 0 : index
    %42 = vector.load %arg11[%c0_33, %c0_34] : memref<128x128xf32, #tpu.memory_space<vmem>>, vector<128x128xf32>
    tpu.vector_store %arg11[%c0_33, %c0_34], %41 {strides = array<i32>} : memref<128x128xf32, #tpu.memory_space<vmem>>, vector<128x128xf32>,
    %c1_35 = arith.constant 1 : index
    %c0_36 = arith.constant 0 : index
    %c0_37 = arith.constant 0 : index
    %c0_38 = arith.constant 0 : index
    %43 = vector.load %arg10[%c1_35, %c0_36, %c0_37, %c0_38] : memref<3x10x16x128xbf16, #tpu.memory_space<vmem>>, vector<1x8x16x128xbf16>
    %44 = vector.shape_cast %43 : vector<1x8x16x128xbf16> to vector<8x16x128xbf16>
    %45 = vector.shape_cast %44 : vector<8x16x128xbf16> to vector<128x128xbf16>
    %c1_39 = arith.constant 1 : index
    %c0_40 = arith.constant 0 : index
    %c0_41 = arith.constant 0 : index
    %46 = vector.load %arg4[%c1_39, %c0_40, %c0_41] : memref<9x128x128xbf16, #tpu.memory_space<vmem>>, vector<1x128x128xbf16>
    %47 = vector.shape_cast %46 : vector<1x128x128xbf16> to vector<128x128xbf16>
    %cst_42 = arith.constant dense<0.000000e+00> : vector<128x128xf32>
    %48 = tpu.matmul %45, %47, %cst_42 {dimension_numbers = #tpu.dot_dimension_numbers<[1], [0], [0], [1], [0, 0, 1, 1], [], []>} : vector<128x128xbf16>, vector<128x128xbf16>, vector<128x128xf32> -> vector<128x128xf32>
    %c0_43 = arith.constant 0 : index
    %c0_44 = arith.constant 0 : index
    %49 = vector.load %arg11[%c0_43, %c0_44] : memref<128x128xf32, #tpu.memory_space<vmem>>, vector<128x128xf32>
    %50 = arith.addf %49, %48 : vector<128x128xf32>
    %c0_45 = arith.constant 0 : index
    %c0_46 = arith.constant 0 : index
    %51 = vector.load %arg11[%c0_45, %c0_46] : memref<128x128xf32, #tpu.memory_space<vmem>>, vector<128x128xf32>
    tpu.vector_store %arg11[%c0_45, %c0_46], %50 {strides = array<i32>} : memref<128x128xf32, #tpu.memory_space<vmem>>, vector<128x128xf32>,
    %c2_47 = arith.constant 2 : index
    %c0_48 = arith.constant 0 : index
    %c0_49 = arith.constant 0 : index
    %c0_50 = arith.constant 0 : index
    %52 = vector.load %arg10[%c2_47, %c0_48, %c0_49, %c0_50] : memref<3x10x16x128xbf16, #tpu.memory_space<vmem>>, vector<1x8x16x128xbf16>
    %53 = vector.shape_cast %52 : vector<1x8x16x128xbf16> to vector<8x16x128xbf16>
    %54 = vector.shape_cast %53 : vector<8x16x128xbf16> to vector<128x128xbf16>
    %c2_51 = arith.constant 2 : index
    %c0_52 = arith.constant 0 : index
    %c0_53 = arith.constant 0 : index
    %55 = vector.load %arg4[%c2_51, %c0_52, %c0_53] : memref<9x128x128xbf16, #tpu.memory_space<vmem>>, vector<1x128x128xbf16>
    %56 = vector.shape_cast %55 : vector<1x128x128xbf16> to vector<128x128xbf16>
    %cst_54 = arith.constant dense<0.000000e+00> : vector<128x128xf32>
    %57 = tpu.matmul %54, %56, %cst_54 {dimension_numbers = #tpu.dot_dimension_numbers<[1], [0], [0], [1], [0, 0, 1, 1], [], []>} : vector<128x128xbf16>, vector<128x128xbf16>, vector<128x128xf32> -> vector<128x128xf32>
    %c0_55 = arith.constant 0 : index
    %c0_56 = arith.constant 0 : index
    %58 = vector.load %arg11[%c0_55, %c0_56] : memref<128x128xf32, #tpu.memory_space<vmem>>, vector<128x128xf32>
    %59 = arith.addf %58, %57 : vector<128x128xf32>
    %c0_57 = arith.constant 0 : index
    %c0_58 = arith.constant 0 : index
    %60 = vector.load %arg11[%c0_57, %c0_58] : memref<128x128xf32, #tpu.memory_space<vmem>>, vector<128x128xf32>
    tpu.vector_store %arg11[%c0_57, %c0_58], %59 {strides = array<i32>} : memref<128x128xf32, #tpu.memory_space<vmem>>, vector<128x128xf32>,
    %c0_59 = arith.constant 0 : index
    %c1_60 = arith.constant 1 : index
    %c0_61 = arith.constant 0 : index
    %c0_62 = arith.constant 0 : index
    %61 = vector.load %arg10[%c0_59, %c1_60, %c0_61, %c0_62] : memref<3x10x16x128xbf16, #tpu.memory_space<vmem>>, vector<1x8x16x128xbf16>
    %62 = vector.shape_cast %61 : vector<1x8x16x128xbf16> to vector<8x16x128xbf16>
    %63 = vector.shape_cast %62 : vector<8x16x128xbf16> to vector<128x128xbf16>
    %c3 = arith.constant 3 : index
    %c0_63 = arith.constant 0 : index
    %c0_64 = arith.constant 0 : index
    %64 = vector.load %arg4[%c3, %c0_63, %c0_64] : memref<9x128x128xbf16, #tpu.memory_space<vmem>>, vector<1x128x128xbf16>
    %65 = vector.shape_cast %64 : vector<1x128x128xbf16> to vector<128x128xbf16>
    %cst_65 = arith.constant dense<0.000000e+00> : vector<128x128xf32>
    %66 = tpu.matmul %63, %65, %cst_65 {dimension_numbers = #tpu.dot_dimension_numbers<[1], [0], [0], [1], [0, 0, 1, 1], [], []>} : vector<128x128xbf16>, vector<128x128xbf16>, vector<128x128xf32> -> vector<128x128xf32>
    %c0_66 = arith.constant 0 : index
    %c0_67 = arith.constant 0 : index
    %67 = vector.load %arg11[%c0_66, %c0_67] : memref<128x128xf32, #tpu.memory_space<vmem>>, vector<128x128xf32>
    %68 = arith.addf %67, %66 : vector<128x128xf32>
    %c0_68 = arith.constant 0 : index
    %c0_69 = arith.constant 0 : index
    %69 = vector.load %arg11[%c0_68, %c0_69] : memref<128x128xf32, #tpu.memory_space<vmem>>, vector<128x128xf32>
    tpu.vector_store %arg11[%c0_68, %c0_69], %68 {strides = array<i32>} : memref<128x128xf32, #tpu.memory_space<vmem>>, vector<128x128xf32>,
    %c1_70 = arith.constant 1 : index
    %c1_71 = arith.constant 1 : index
    %c0_72 = arith.constant 0 : index
    %c0_73 = arith.constant 0 : index
    %70 = vector.load %arg10[%c1_70, %c1_71, %c0_72, %c0_73] : memref<3x10x16x128xbf16, #tpu.memory_space<vmem>>, vector<1x8x16x128xbf16>
    %71 = vector.shape_cast %70 : vector<1x8x16x128xbf16> to vector<8x16x128xbf16>
    %72 = vector.shape_cast %71 : vector<8x16x128xbf16> to vector<128x128xbf16>
    %c4 = arith.constant 4 : index
    %c0_74 = arith.constant 0 : index
    %c0_75 = arith.constant 0 : index
    %73 = vector.load %arg4[%c4, %c0_74, %c0_75] : memref<9x128x128xbf16, #tpu.memory_space<vmem>>, vector<1x128x128xbf16>
    %74 = vector.shape_cast %73 : vector<1x128x128xbf16> to vector<128x128xbf16>
    %cst_76 = arith.constant dense<0.000000e+00> : vector<128x128xf32>
    %75 = tpu.matmul %72, %74, %cst_76 {dimension_numbers = #tpu.dot_dimension_numbers<[1], [0], [0], [1], [0, 0, 1, 1], [], []>} : vector<128x128xbf16>, vector<128x128xbf16>, vector<128x128xf32> -> vector<128x128xf32>
    %c0_77 = arith.constant 0 : index
    %c0_78 = arith.constant 0 : index
    %76 = vector.load %arg11[%c0_77, %c0_78] : memref<128x128xf32, #tpu.memory_space<vmem>>, vector<128x128xf32>
    %77 = arith.addf %76, %75 : vector<128x128xf32>
    %c0_79 = arith.constant 0 : index
    %c0_80 = arith.constant 0 : index
    %78 = vector.load %arg11[%c0_79, %c0_80] : memref<128x128xf32, #tpu.memory_space<vmem>>, vector<128x128xf32>
    tpu.vector_store %arg11[%c0_79, %c0_80], %77 {strides = array<i32>} : memref<128x128xf32, #tpu.memory_space<vmem>>, vector<128x128xf32>,
    %c2_81 = arith.constant 2 : index
    %c1_82 = arith.constant 1 : index
    %c0_83 = arith.constant 0 : index
    %c0_84 = arith.constant 0 : index
    %79 = vector.load %arg10[%c2_81, %c1_82, %c0_83, %c0_84] : memref<3x10x16x128xbf16, #tpu.memory_space<vmem>>, vector<1x8x16x128xbf16>
    %80 = vector.shape_cast %79 : vector<1x8x16x128xbf16> to vector<8x16x128xbf16>
    %81 = vector.shape_cast %80 : vector<8x16x128xbf16> to vector<128x128xbf16>
    %c5 = arith.constant 5 : index
    %c0_85 = arith.constant 0 : index
    %c0_86 = arith.constant 0 : index
    %82 = vector.load %arg4[%c5, %c0_85, %c0_86] : memref<9x128x128xbf16, #tpu.memory_space<vmem>>, vector<1x128x128xbf16>
    %83 = vector.shape_cast %82 : vector<1x128x128xbf16> to vector<128x128xbf16>
    %cst_87 = arith.constant dense<0.000000e+00> : vector<128x128xf32>
    %84 = tpu.matmul %81, %83, %cst_87 {dimension_numbers = #tpu.dot_dimension_numbers<[1], [0], [0], [1], [0, 0, 1, 1], [], []>} : vector<128x128xbf16>, vector<128x128xbf16>, vector<128x128xf32> -> vector<128x128xf32>
    %c0_88 = arith.constant 0 : index
    %c0_89 = arith.constant 0 : index
    %85 = vector.load %arg11[%c0_88, %c0_89] : memref<128x128xf32, #tpu.memory_space<vmem>>, vector<128x128xf32>
    %86 = arith.addf %85, %84 : vector<128x128xf32>
    %c0_90 = arith.constant 0 : index
    %c0_91 = arith.constant 0 : index
    %87 = vector.load %arg11[%c0_90, %c0_91] : memref<128x128xf32, #tpu.memory_space<vmem>>, vector<128x128xf32>
    tpu.vector_store %arg11[%c0_90, %c0_91], %86 {strides = array<i32>} : memref<128x128xf32, #tpu.memory_space<vmem>>, vector<128x128xf32>,
    %c0_92 = arith.constant 0 : index
    %c2_93 = arith.constant 2 : index
    %c0_94 = arith.constant 0 : index
    %c0_95 = arith.constant 0 : index
    %88 = vector.load %arg10[%c0_92, %c2_93, %c0_94, %c0_95] : memref<3x10x16x128xbf16, #tpu.memory_space<vmem>>, vector<1x8x16x128xbf16>
    %89 = vector.shape_cast %88 : vector<1x8x16x128xbf16> to vector<8x16x128xbf16>
    %90 = vector.shape_cast %89 : vector<8x16x128xbf16> to vector<128x128xbf16>
    %c6 = arith.constant 6 : index
    %c0_96 = arith.constant 0 : index
    %c0_97 = arith.constant 0 : index
    %91 = vector.load %arg4[%c6, %c0_96, %c0_97] : memref<9x128x128xbf16, #tpu.memory_space<vmem>>, vector<1x128x128xbf16>
    %92 = vector.shape_cast %91 : vector<1x128x128xbf16> to vector<128x128xbf16>
    %cst_98 = arith.constant dense<0.000000e+00> : vector<128x128xf32>
    %93 = tpu.matmul %90, %92, %cst_98 {dimension_numbers = #tpu.dot_dimension_numbers<[1], [0], [0], [1], [0, 0, 1, 1], [], []>} : vector<128x128xbf16>, vector<128x128xbf16>, vector<128x128xf32> -> vector<128x128xf32>
    %c0_99 = arith.constant 0 : index
    %c0_100 = arith.constant 0 : index
    %94 = vector.load %arg11[%c0_99, %c0_100] : memref<128x128xf32, #tpu.memory_space<vmem>>, vector<128x128xf32>
    %95 = arith.addf %94, %93 : vector<128x128xf32>
    %c0_101 = arith.constant 0 : index
    %c0_102 = arith.constant 0 : index
    %96 = vector.load %arg11[%c0_101, %c0_102] : memref<128x128xf32, #tpu.memory_space<vmem>>, vector<128x128xf32>
    tpu.vector_store %arg11[%c0_101, %c0_102], %95 {strides = array<i32>} : memref<128x128xf32, #tpu.memory_space<vmem>>, vector<128x128xf32>,
    %c1_103 = arith.constant 1 : index
    %c2_104 = arith.constant 2 : index
    %c0_105 = arith.constant 0 : index
    %c0_106 = arith.constant 0 : index
    %97 = vector.load %arg10[%c1_103, %c2_104, %c0_105, %c0_106] : memref<3x10x16x128xbf16, #tpu.memory_space<vmem>>, vector<1x8x16x128xbf16>
    %98 = vector.shape_cast %97 : vector<1x8x16x128xbf16> to vector<8x16x128xbf16>
    %99 = vector.shape_cast %98 : vector<8x16x128xbf16> to vector<128x128xbf16>
    %c7 = arith.constant 7 : index
    %c0_107 = arith.constant 0 : index
    %c0_108 = arith.constant 0 : index
    %100 = vector.load %arg4[%c7, %c0_107, %c0_108] : memref<9x128x128xbf16, #tpu.memory_space<vmem>>, vector<1x128x128xbf16>
    %101 = vector.shape_cast %100 : vector<1x128x128xbf16> to vector<128x128xbf16>
    %cst_109 = arith.constant dense<0.000000e+00> : vector<128x128xf32>
    %102 = tpu.matmul %99, %101, %cst_109 {dimension_numbers = #tpu.dot_dimension_numbers<[1], [0], [0], [1], [0, 0, 1, 1], [], []>} : vector<128x128xbf16>, vector<128x128xbf16>, vector<128x128xf32> -> vector<128x128xf32>
    %c0_110 = arith.constant 0 : index
    %c0_111 = arith.constant 0 : index
    %103 = vector.load %arg11[%c0_110, %c0_111] : memref<128x128xf32, #tpu.memory_space<vmem>>, vector<128x128xf32>
    %104 = arith.addf %103, %102 : vector<128x128xf32>
    %c0_112 = arith.constant 0 : index
    %c0_113 = arith.constant 0 : index
    %105 = vector.load %arg11[%c0_112, %c0_113] : memref<128x128xf32, #tpu.memory_space<vmem>>, vector<128x128xf32>
    tpu.vector_store %arg11[%c0_112, %c0_113], %104 {strides = array<i32>} : memref<128x128xf32, #tpu.memory_space<vmem>>, vector<128x128xf32>,
    %c2_114 = arith.constant 2 : index
    %c2_115 = arith.constant 2 : index
    %c0_116 = arith.constant 0 : index
    %c0_117 = arith.constant 0 : index
    %106 = vector.load %arg10[%c2_114, %c2_115, %c0_116, %c0_117] : memref<3x10x16x128xbf16, #tpu.memory_space<vmem>>, vector<1x8x16x128xbf16>
    %107 = vector.shape_cast %106 : vector<1x8x16x128xbf16> to vector<8x16x128xbf16>
    %108 = vector.shape_cast %107 : vector<8x16x128xbf16> to vector<128x128xbf16>
    %c8 = arith.constant 8 : index
    %c0_118 = arith.constant 0 : index
    %c0_119 = arith.constant 0 : index
    %109 = vector.load %arg4[%c8, %c0_118, %c0_119] : memref<9x128x128xbf16, #tpu.memory_space<vmem>>, vector<1x128x128xbf16>
    %110 = vector.shape_cast %109 : vector<1x128x128xbf16> to vector<128x128xbf16>
    %cst_120 = arith.constant dense<0.000000e+00> : vector<128x128xf32>
    %111 = tpu.matmul %108, %110, %cst_120 {dimension_numbers = #tpu.dot_dimension_numbers<[1], [0], [0], [1], [0, 0, 1, 1], [], []>} : vector<128x128xbf16>, vector<128x128xbf16>, vector<128x128xf32> -> vector<128x128xf32>
    %c0_121 = arith.constant 0 : index
    %c0_122 = arith.constant 0 : index
    %112 = vector.load %arg11[%c0_121, %c0_122] : memref<128x128xf32, #tpu.memory_space<vmem>>, vector<128x128xf32>
    %113 = arith.addf %112, %111 : vector<128x128xf32>
    %c0_123 = arith.constant 0 : index
    %c0_124 = arith.constant 0 : index
    %114 = vector.load %arg11[%c0_123, %c0_124] : memref<128x128xf32, #tpu.memory_space<vmem>>, vector<128x128xf32>
    tpu.vector_store %arg11[%c0_123, %c0_124], %113 {strides = array<i32>} : memref<128x128xf32, #tpu.memory_space<vmem>>, vector<128x128xf32>,
    %c0_125 = arith.constant 0 : index
    %c0_126 = arith.constant 0 : index
    %115 = vector.load %arg11[%c0_125, %c0_126] : memref<128x128xf32, #tpu.memory_space<vmem>>, vector<128x128xf32>
    %c0_127 = arith.constant 0 : index
    %c0_128 = arith.constant 0 : index
    %116 = vector.load %arg7[%c0_127, %c0_128] : memref<1x128xf32, #tpu.memory_space<vmem>>, vector<1x128xf32>
    %117 = vector.broadcast %116 : vector<1x128xf32> to vector<128x128xf32>
    %118 = arith.mulf %115, %117 : vector<128x128xf32>
    %c0_129 = arith.constant 0 : index
    %c0_130 = arith.constant 0 : index
    %119 = vector.load %arg8[%c0_129, %c0_130] : memref<1x128xf32, #tpu.memory_space<vmem>>, vector<1x128xf32>
    %120 = vector.broadcast %119 : vector<1x128xf32> to vector<128x128xf32>
    %121 = arith.addf %118, %120 : vector<128x128xf32>
    %cst_131 = arith.constant 0.000000e+00 : f32
    %122 = vector.broadcast %cst_131 : f32 to vector<128x128xf32>
    %123 = arith.maximumf %121, %122 : vector<128x128xf32>
    %124 = vector.shape_cast %123 : vector<128x128xf32> to vector<4x32x128xf32>
    %125 = vector.extract_strided_slice %124 {offsets = [0, 0, 0], sizes = [4, 16, 128], strides = [1, 1, 1]} : vector<4x32x128xf32> to vector<4x16x128xf32>
    %126 = vector.extract_strided_slice %124 {offsets = [0, 16, 0], sizes = [4, 16, 128], strides = [1, 1, 1]} : vector<4x32x128xf32> to vector<4x16x128xf32>
    %127 = arith.addf %125, %126 : vector<4x16x128xf32>
    %128 = vector.shape_cast %127 : vector<4x16x128xf32> to vector<4x8x2x128xf32>
    %129 = vector.extract_strided_slice %128 {offsets = [0, 0, 0, 0], sizes = [4, 8, 1, 128], strides = [1, 1, 1, 1]} : vector<4x8x2x128xf32> to vector<4x8x1x128xf32>
    %130 = vector.shape_cast %129 : vector<4x8x1x128xf32> to vector<4x8x128xf32>
    %131 = vector.extract_strided_slice %128 {offsets = [0, 0, 1, 0], sizes = [4, 8, 1, 128], strides = [1, 1, 1, 1]} : vector<4x8x2x128xf32> to vector<4x8x1x128xf32>
    %132 = vector.shape_cast %131 : vector<4x8x1x128xf32> to vector<4x8x128xf32>
    %133 = arith.addf %130, %132 : vector<4x8x128xf32>
    %cst_132 = arith.constant 2.500000e-01 : f32
    %134 = vector.broadcast %cst_132 : f32 to vector<4x8x128xf32>
    %135 = arith.mulf %133, %134 : vector<4x8x128xf32>
    %c0_133 = arith.constant 0 : index
    %c0_134 = arith.constant 0 : index
    %c0_135 = arith.constant 0 : index
    %c0_136 = arith.constant 0 : index
    %136 = vector.load %arg9[%c0_133, %c0_134, %c0_135, %c0_136] : memref<1x4x8x128xf32, #tpu.memory_space<vmem>>, vector<1x4x8x128xf32>
    %137 = vector.shape_cast %136 : vector<1x4x8x128xf32> to vector<4x8x128xf32>
    %138 = vector.shape_cast %135 : vector<4x8x128xf32> to vector<1x4x8x128xf32>
    tpu.vector_store %arg9[%c0_133, %c0_134, %c0_135, %c0_136], %138 {strides = array<i32>} : memref<1x4x8x128xf32, #tpu.memory_space<vmem>>, vector<1x4x8x128xf32>,
    return
  }
  func.func @transform_0(%arg0: i32, %arg1: i32) -> (i32, i32, i32, i32, i32) {
    %c0_i32 = arith.constant 0 : i32
    %c0_i32_0 = arith.constant 0 : i32
    %c0_i32_1 = arith.constant 0 : i32
    %c0_i32_2 = arith.constant 0 : i32
    return %arg0, %arg1, %c0_i32, %c0_i32_0, %c0_i32_1 : i32, i32, i32, i32, i32
  }
  func.func @transform_1(%arg0: i32, %arg1: i32) -> (i32, i32) {
    %c0_i32 = arith.constant 0 : i32
    %c0_i32_0 = arith.constant 0 : i32
    %c0_i32_1 = arith.constant 0 : i32
    return %c0_i32, %c0_i32_0 : i32, i32
  }
  func.func @transform_2(%arg0: i32, %arg1: i32) -> (i32, i32, i32) {
    %c0_i32 = arith.constant 0 : i32
    %c0_i32_0 = arith.constant 0 : i32
    %c0_i32_1 = arith.constant 0 : i32
    %c0_i32_2 = arith.constant 0 : i32
    return %c0_i32, %c0_i32_0, %c0_i32_1 : i32, i32, i32
  }
  func.func @transform_3(%arg0: i32, %arg1: i32) -> (i32, i32) {
    %c0_i32 = arith.constant 0 : i32
    %c0_i32_0 = arith.constant 0 : i32
    %c0_i32_1 = arith.constant 0 : i32
    return %c0_i32, %c0_i32_0 : i32, i32
  }
  func.func @transform_4(%arg0: i32, %arg1: i32) -> (i32, i32) {
    %c0_i32 = arith.constant 0 : i32
    %c0_i32_0 = arith.constant 0 : i32
    %c0_i32_1 = arith.constant 0 : i32
    return %c0_i32, %c0_i32_0 : i32, i32
  }
  func.func @transform_5(%arg0: i32, %arg1: i32) -> (i32, i32) {
    %c0_i32 = arith.constant 0 : i32
    %c0_i32_0 = arith.constant 0 : i32
    %c0_i32_1 = arith.constant 0 : i32
    return %c0_i32, %c0_i32_0 : i32, i32
  }
  func.func @transform_6(%arg0: i32, %arg1: i32) -> (i32, i32) {
    %c0_i32 = arith.constant 0 : i32
    %c0_i32_0 = arith.constant 0 : i32
    %c0_i32_1 = arith.constant 0 : i32
    return %c0_i32, %c0_i32_0 : i32, i32
  }
  func.func @transform_7(%arg0: i32, %arg1: i32) -> (i32, i32, i32, i32) {
    %c0_i32 = arith.constant 0 : i32
    %c0_i32_0 = arith.constant 0 : i32
    %c0_i32_1 = arith.constant 0 : i32
    return %arg0, %arg1, %c0_i32, %c0_i32_0 : i32, i32, i32, i32
  }
}

</mosaic_0001>

<llo_original>
// kernel: tpu_custom_call.1
$region0: #{tpu_custom_call.1}
  #allocation0 [shape = 'u32[]', space=smem, size = 0x4, offset = 0x4, fixed_abs, tag = 'smem constant byte address 0x4 - core index']
  #allocation1 [shape = 'u32[144,128]{1,0:T(1,128)}', space=vmem, size = 0x12000, scoped, tag = 'internal scratch']
  #allocation2 [shape = 'bf16[3,10,16,128]{3,2,1,0:T(8,128)(2,1)}', space=vmem, size = 0x1e000, scoped, tag = 'scratch operand']
  #allocation3 [shape = 'f32[128,128]{1,0:T(8,128)}', space=vmem, size = 0x10000, scoped, tag = 'scratch operand']
  %s0 = inlined_call_operand.hbm [shape: bf16[2,2,10,16,36], index: 0, kind: input, shape index: {}]
  %s1 = inlined_call_operand.hbm [shape: bf16[36,128], index: 1, kind: input, shape index: {}]
  %s2 = inlined_call_operand.hbm [shape: bf16[9,128,128], index: 2, kind: input, shape index: {}]
  %s3 = inlined_call_operand.vmem [shape: f32[1,128], index: 3, kind: input, shape index: {}]
  %s4 = inlined_call_operand.vmem [shape: f32[1,128], index: 4, kind: input, shape index: {}]
  %s5 = inlined_call_operand.vmem [shape: f32[1,128], index: 5, kind: input, shape index: {}]
  %s6 = inlined_call_operand.vmem [shape: f32[1,128], index: 6, kind: input, shape index: {}]
  %s7 = inlined_call_operand.hbm [shape: f32[2,8,8,128], index: 7, kind: output, shape index: {}]
  %s8 = sld [smem:[#allocation0]]
  $region81: #{tpu_custom_call.1} parent=0
    _
  %s10 = ssub.s32 1, %s8
  %s11 = scalar_select 0, %s10, %s8
  $region1: #{tpu_custom_call.1} parent=0
    #allocation4 [shape = 'u8[81920]{0}', space=vmem, size = 0x14000, scoped, tag = 'input window, operand 0']
    #allocation5 [shape = 's32[2]{0}', space=sflag, size = 0x8, scoped, tag = 'scoped memory for tpu_custom_call.1']
    #allocation6 [shape = 's32[2]{0}', space=sflag, size = 0x8, scoped, tag = 'scoped memory for tpu_custom_call.1']
    #allocation7 [shape = 'u8[10240]{0}', space=vmem, size = 0x2800, scoped, tag = 'input window, operand 1, single buffered']
    #allocation8 [shape = 's32[1]{0}', space=sflag, size = 0x4, scoped, tag = 'scoped memory for tpu_custom_call.1']
    #allocation9 [shape = 'u8[294912]{0}', space=vmem, size = 0x48000, scoped, tag = 'input window, operand 2, single buffered']
    #allocation10 [shape = 'u8[32768]{0}', space=vmem, size = 0x8000, scoped, tag = 'output window, operand 0']
    %12 = vsyncpa [#allocation5], 0
    %s13 = scalar_lea.sflag [#allocation5], 1
    %14 = vsyncpa %s13, 0
    %15 = vsyncpa [#allocation8], 0
    %16 = vsyncpa [#allocation6], 0
    %s17 = scalar_lea.sflag [#allocation6], 1
    %18 = vsyncpa %s17, 0
    loop: start=0, step=1, limit=6
    $region2: #{tpu_custom_call.1} parent=1 // loop_pre_header
      _
    $region3: #{tpu_custom_call.1} parent=1 // loop_header
      %s20 = sphi 0, %s24
      %p21 = scmp.ge.s32.totalorder %s20, 6
      %s27 = sphi 0, %s39
      %s28 = sphi 0, %s35
      %s29 = sphi 0, %s27
      %s30 = sphi 0, %s28
      %s31 = sphi 0, %s29
      %s32 = sphi 0, %s30
      %s44 = sphi 0, %s46
      %s47 = sphi 0, %s44
      %s48 = sphi 0, %s47
      %s64 = sphi 0, %s48
      %s68 = sphi 0, %s68
      %s70 = sphi 0, %s68
      %s71 = sphi 0, %s70
      %s85 = sphi 0, %s71
      %s89 = sphi 0, %s89
      %s91 = sphi 0, %s89
      %s92 = sphi 0, %s91
      %s106 = sphi 0, %s92
      %s110 = sphi 0, %s110
      %s112 = sphi 0, %s110
      %s113 = sphi 0, %s112
      %s127 = sphi 0, %s113
      %s131 = sphi 0, %s131
      %s133 = sphi 0, %s131
      %s134 = sphi 0, %s133
      %s148 = sphi 0, %s134
      %s152 = sphi 0, %s152
      %s154 = sphi 0, %s152
      %s155 = sphi 0, %s154
      %s169 = sphi 0, %s155
      %s173 = sphi 0, %s173
      %s175 = sphi 0, %s173
      %s176 = sphi 0, %s175
      %s190 = sphi 0, %s176
      %s198 = sphi 0, %s200
      %s201 = sphi 0, %s198
      %s202 = sphi 0, %s201
      %s218 = sphi 0, %s202
    $region4: #{tpu_custom_call.1} parent=1 // loop_header_branch
      %23 = sbr.rel (%p21) target = $region8
    $region5: #{tpu_custom_call.1} parent=1 // loop_body
      %s25 = ssub.s32 %s20, 1
      %s26 = ssub.s32 %s20, 2
      %s33 = sadd.s32 1, %s28
      %p34 = scmp.ge.s32.totalorder %s33, 2
      %s35 = scalar_select %p34, 0, %s33
      %s36 = sadd.s32 1, %s27
      %s37 = scalar_select %p34, %s36, %s27
      %p38 = scmp.ge.s32.totalorder %s37, 2
      %s39 = scalar_select %p38, 0, %s37
      %s40 = ssub.s32 %s27, %s39
      %s41 = ssub.s32 %s28, %s35
      %s42 = sor.u32 %s40, %s41
      %p43 = scmp.eq.s32.totalorder %s42, 0
      %s45 = sadd.s32 %s44, 1
      %s46 = scalar_select %p43, %s44, %s45
      %p49 = pneg %p43
      %p50 = scmp.eq.s32.totalorder %s20, 3
      %p51 = por %p49, %p50
      %p52 = scmp.ne.s32.totalorder %s44, %s47
      %p53 = scmp.eq.s32.totalorder %s20, 0
      %p54 = por %p52, %p53
      %p55 = scmp.ne.s32.totalorder %s44, %s47
      %p56 = scmp.eq.s32.totalorder %s25, 3
      %p57 = por %p55, %p56
      %p58 = scmp.ne.s32.totalorder %s47, %s48
      %p59 = scmp.eq.s32.totalorder %s25, 0
      %p60 = por %p58, %p59
      %p61 = scmp.ne.s32.totalorder %s47, %s48
      %p62 = scmp.eq.s32.totalorder %s26, 3
      %p63 = por %p61, %p62
      %p65 = scmp.ne.s32.totalorder %s48, %s64
      %p66 = scmp.eq.s32.totalorder %s26, 0
      %p67 = por %p65, %p66
      %s69 = sadd.s32 %s68, 1
      %p72 = scmp.eq.s32.totalorder %s20, 3
      %p73 = scmp.ne.s32.totalorder %s68, %s70
      %p74 = scmp.eq.s32.totalorder %s20, 0
      %p75 = por %p73, %p74
      %p76 = scmp.ne.s32.totalorder %s68, %s70
      %p77 = scmp.eq.s32.totalorder %s25, 3
      %p78 = por %p76, %p77
      %p79 = scmp.ne.s32.totalorder %s70, %s71
      %p80 = scmp.eq.s32.totalorder %s25, 0
      %p81 = por %p79, %p80
      %p82 = scmp.ne.s32.totalorder %s70, %s71
      %p83 = scmp.eq.s32.totalorder %s26, 3
      %p84 = por %p82, %p83
      %p86 = scmp.ne.s32.totalorder %s71, %s85
      %p87 = scmp.eq.s32.totalorder %s26, 0
      %p88 = por %p86, %p87
      %s90 = sadd.s32 %s89, 1
      %p93 = scmp.eq.s32.totalorder %s20, 3
      %p94 = scmp.ne.s32.totalorder %s89, %s91
      %p95 = scmp.eq.s32.totalorder %s20, 0
      %p96 = por %p94, %p95
      %p97 = scmp.ne.s32.totalorder %s89, %s91
      %p98 = scmp.eq.s32.totalorder %s25, 3
      %p99 = por %p97, %p98
      %p100 = scmp.ne.s32.totalorder %s91, %s92
      %p101 = scmp.eq.s32.totalorder %s25, 0
      %p102 = por %p100, %p101
      %p103 = scmp.ne.s32.totalorder %s91, %s92
      %p104 = scmp.eq.s32.totalorder %s26, 3
      %p105 = por %p103, %p104
      %p107 = scmp.ne.s32.totalorder %s92, %s106
      %p108 = scmp.eq.s32.totalorder %s26, 0
      %p109 = por %p107, %p108
      %s111 = sadd.s32 %s110, 1
      %p114 = scmp.eq.s32.totalorder %s20, 3
      %p115 = scmp.ne.s32.totalorder %s110, %s112
      %p116 = scmp.eq.s32.totalorder %s20, 0
      %p117 = por %p115, %p116
      %p118 = scmp.ne.s32.totalorder %s110, %s112
      %p119 = scmp.eq.s32.totalorder %s25, 3
      %p120 = por %p118, %p119
      %p121 = scmp.ne.s32.totalorder %s112, %s113
      %p122 = scmp.eq.s32.totalorder %s25, 0
      %p123 = por %p121, %p122
      %p124 = scmp.ne.s32.totalorder %s112, %s113
      %p125 = scmp.eq.s32.totalorder %s26, 3
      %p126 = por %p124, %p125
      %p128 = scmp.ne.s32.totalorder %s113, %s127
      %p129 = scmp.eq.s32.totalorder %s26, 0
      %p130 = por %p128, %p129
      %s132 = sadd.s32 %s131, 1
      %p135 = scmp.eq.s32.totalorder %s20, 3
      %p136 = scmp.ne.s32.totalorder %s131, %s133
      %p137 = scmp.eq.s32.totalorder %s20, 0
      %p138 = por %p136, %p137
      %p139 = scmp.ne.s32.totalorder %s131, %s133
      %p140 = scmp.eq.s32.totalorder %s25, 3
      %p141 = por %p139, %p140
      %p142 = scmp.ne.s32.totalorder %s133, %s134
      %p143 = scmp.eq.s32.totalorder %s25, 0
      %p144 = por %p142, %p143
      %p145 = scmp.ne.s32.totalorder %s133, %s134
      %p146 = scmp.eq.s32.totalorder %s26, 3
      %p147 = por %p145, %p146
      %p149 = scmp.ne.s32.totalorder %s134, %s148
      %p150 = scmp.eq.s32.totalorder %s26, 0
      %p151 = por %p149, %p150
      %s153 = sadd.s32 %s152, 1
      %p156 = scmp.eq.s32.totalorder %s20, 3
      %p157 = scmp.ne.s32.totalorder %s152, %s154
      %p158 = scmp.eq.s32.totalorder %s20, 0
      %p159 = por %p157, %p158
      %p160 = scmp.ne.s32.totalorder %s152, %s154
      %p161 = scmp.eq.s32.totalorder %s25, 3
      %p162 = por %p160, %p161
      %p163 = scmp.ne.s32.totalorder %s154, %s155
      %p164 = scmp.eq.s32.totalorder %s25, 0
      %p165 = por %p163, %p164
      %p166 = scmp.ne.s32.totalorder %s154, %s155
      %p167 = scmp.eq.s32.totalorder %s26, 3
      %p168 = por %p166, %p167
      %p170 = scmp.ne.s32.totalorder %s155, %s169
      %p171 = scmp.eq.s32.totalorder %s26, 0
      %p172 = por %p170, %p171
      %s174 = sadd.s32 %s173, 1
      %p177 = scmp.eq.s32.totalorder %s20, 3
      %p178 = scmp.ne.s32.totalorder %s173, %s175
      %p179 = scmp.eq.s32.totalorder %s20, 0
      %p180 = por %p178, %p179
      %p181 = scmp.ne.s32.totalorder %s173, %s175
      %p182 = scmp.eq.s32.totalorder %s25, 3
      %p183 = por %p181, %p182
      %p184 = scmp.ne.s32.totalorder %s175, %s176
      %p185 = scmp.eq.s32.totalorder %s25, 0
      %p186 = por %p184, %p185
      %p187 = scmp.ne.s32.totalorder %s175, %s176
      %p188 = scmp.eq.s32.totalorder %s26, 3
      %p189 = por %p187, %p188
      %p191 = scmp.ne.s32.totalorder %s176, %s190
      %p192 = scmp.eq.s32.totalorder %s26, 0
      %p193 = por %p191, %p192
      %s194 = ssub.s32 %s27, %s39
      %s195 = ssub.s32 %s28, %s35
      %s196 = sor.u32 %s194, %s195
      %p197 = scmp.eq.s32.totalorder %s196, 0
      %s199 = sadd.s32 %s198, 1
      %s200 = scalar_select %p197, %s198, %s199
      %p203 = pneg %p197
      %p204 = scmp.eq.s32.totalorder %s20, 3
      %p205 = por %p203, %p204
      %p206 = scmp.ne.s32.totalorder %s198, %s201
      %p207 = scmp.eq.s32.totalorder %s20, 0
      %p208 = por %p206, %p207
      %p209 = scmp.ne.s32.totalorder %s198, %s201
      %p210 = scmp.eq.s32.totalorder %s25, 3
      %p211 = por %p209, %p210
      %p212 = scmp.ne.s32.totalorder %s201, %s202
      %p213 = scmp.eq.s32.totalorder %s25, 0
      %p214 = por %p212, %p213
      %p215 = scmp.ne.s32.totalorder %s201, %s202
      %p216 = scmp.eq.s32.totalorder %s26, 3
      %p217 = por %p215, %p216
      %p219 = scmp.ne.s32.totalorder %s202, %s218
      %p220 = scmp.eq.s32.totalorder %s26, 0
      %p221 = por %p219, %p220
      %p222 = scmp.le.s32.totalorder 1, %s20
      %p223 = scmp.lt.s32.totalorder %s20, 5
      %p224 = pnand %p222, %p223
      %p225 = pneg %p224
      // Predicated region
      $region9: #{tpu_custom_call.1} parent=5 // pred_check
        _
      $region10: #{tpu_custom_call.1} parent=5 // pred_check_branch
        %227 = sbr.rel (%p224) target = $region12
      $region11: #{tpu_custom_call.1} parent=5 // pred_region
        %s228 = ssub.s32 %s20, 1
        // Predicated region
        $region13: #{tpu_custom_call.1} parent=11 // pred_check
          %p229 = pneg %p81
        $region14: #{tpu_custom_call.1} parent=11 // pred_check_branch
          %231 = sbr.rel (%p229) target = $region16
        $region15: #{tpu_custom_call.1} parent=11 // pred_region
          %s233 = ssub.s32 320, 320
          %234 = vsyncadd [#allocation8], %s233
          %s235 = sshll.u32 [#allocation7], 4
          %s236 = int_to_ptr.vmem [resolvable:$true] %s235
          %241 = dma.hbm_to_vmem [thread:$0]  %s1, 320, %s236, [#allocation8], 64, 64, 4
        $region16: #{tpu_custom_call.1} parent=11 // pred_fallthru
          _
        // Predicated region
        $region17: #{tpu_custom_call.1} parent=11 // pred_check
          %p242 = pneg %p102
        $region18: #{tpu_custom_call.1} parent=11 // pred_check_branch
          %244 = sbr.rel (%p242) target = $region20
        $region19: #{tpu_custom_call.1} parent=11 // pred_region
          %s246 = ssub.s32 9216, 9216
          %247 = vsyncadd [#allocation8], %s246
          %s248 = sshll.u32 [#allocation9], 4
          %s249 = int_to_ptr.vmem [resolvable:$true] %s248
          %254 = dma.hbm_to_vmem [thread:$0]  %s2, 9216, %s249, [#allocation8], 64, 64, 4
        $region20: #{tpu_custom_call.1} parent=11 // pred_fallthru
          _
        // Predicated region
        $region21: #{tpu_custom_call.1} parent=11 // pred_check
          %p255 = pneg %p123
        $region22: #{tpu_custom_call.1} parent=11 // pred_check_branch
          %257 = sbr.rel (%p255) target = $region24
        $region23: #{tpu_custom_call.1} parent=11 // pred_region
          _
        $region24: #{tpu_custom_call.1} parent=11 // pred_fallthru
          _
        // Predicated region
        $region25: #{tpu_custom_call.1} parent=11 // pred_check
          %p258 = pneg %p144
        $region26: #{tpu_custom_call.1} parent=11 // pred_check_branch
          %260 = sbr.rel (%p258) target = $region28
        $region27: #{tpu_custom_call.1} parent=11 // pred_region
          _
        $region28: #{tpu_custom_call.1} parent=11 // pred_fallthru
          _
        // Predicated region
        $region29: #{tpu_custom_call.1} parent=11 // pred_check
          %p261 = pneg %p165
        $region30: #{tpu_custom_call.1} parent=11 // pred_check_branch
          %263 = sbr.rel (%p261) target = $region32
        $region31: #{tpu_custom_call.1} parent=11 // pred_region
          _
        $region32: #{tpu_custom_call.1} parent=11 // pred_fallthru
          _
        // Predicated region
        $region33: #{tpu_custom_call.1} parent=11 // pred_check
          %p264 = pneg %p186
        $region34: #{tpu_custom_call.1} parent=11 // pred_check_branch
          %266 = sbr.rel (%p264) target = $region36
        $region35: #{tpu_custom_call.1} parent=11 // pred_region
          _
        $region36: #{tpu_custom_call.1} parent=11 // pred_fallthru
          _
      $region12: #{tpu_custom_call.1} parent=5 // pred_fallthru
        _
      %p267 = scmp.lt.s32.totalorder %s20, 4
      // Predicated region
      $region37: #{tpu_custom_call.1} parent=5 // pred_check
        %p268 = pneg %p267
      $region38: #{tpu_custom_call.1} parent=5 // pred_check_branch
        %270 = sbr.rel (%p268) target = $region40
      $region39: #{tpu_custom_call.1} parent=5 // pred_region
        // Predicated region
        $region41: #{tpu_custom_call.1} parent=39 // pred_check
          %p271 = pneg %p54
        $region42: #{tpu_custom_call.1} parent=39 // pred_check_branch
          %273 = sbr.rel (%p271) target = $region44
        $region43: #{tpu_custom_call.1} parent=39 // pred_region
          %s274 = sand.u32 %s44, 1
          %s275 = scalar_lea.sflag [#allocation5], %s274
          %s276 = sand.u32 %s44, 1
          %s277 = smul.addr %s276, 80
          %s278 = scalar_lea.vmem [#allocation4], %s277
          %s280 = ssub.s32 1280, 1280
          %281 = vsyncadd %s275, %s280
          %s282 = smul.addr %s28, 20
          %s283 = smul.addr %s27, 40
          %s284 = sadd.s32 %s282, %s283
          %s285 = smul.addr %s284, 64
          %s286 = scalar_lea.hbm %s0, %s285
          %s287 = sshll.u32 %s278, 4
          %s288 = int_to_ptr.vmem [resolvable:$true] %s287
          %293 = dma.hbm_to_vmem [thread:$0]  %s286, 1280, %s288, %s275, 64, 64, 4
        $region44: #{tpu_custom_call.1} parent=39 // pred_fallthru
          _
      $region40: #{tpu_custom_call.1} parent=5 // pred_fallthru
        _
      %p294 = scmp.le.s32.totalorder 1, %s20
      %p295 = scmp.lt.s32.totalorder %s20, 5
      %p296 = pnand %p294, %p295
      %p297 = pneg %p296
      // Predicated region
      $region45: #{tpu_custom_call.1} parent=5 // pred_check
        _
      $region46: #{tpu_custom_call.1} parent=5 // pred_check_branch
        %299 = sbr.rel (%p296) target = $region48
      $region47: #{tpu_custom_call.1} parent=5 // pred_region
        %s300 = ssub.s32 %s20, 1
        %s301 = sand.u32 %s47, 1
        %s302 = scalar_lea.sflag [#allocation5], %s301
        %s303 = sand.u32 %s47, 1
        %s304 = smul.addr %s303, 80
        %s305 = scalar_lea.vmem [#allocation4], %s304
        // Predicated region
        $region49: #{tpu_custom_call.1} parent=47 // pred_check
          %p306 = pneg %p60
        $region50: #{tpu_custom_call.1} parent=47 // pred_check_branch
          %308 = sbr.rel (%p306) target = $region52
        $region51: #{tpu_custom_call.1} parent=47 // pred_region
          %309 = dma.done %s302, 1280
        $region52: #{tpu_custom_call.1} parent=47 // pred_fallthru
          _
        // Predicated region
        $region53: #{tpu_custom_call.1} parent=47 // pred_check
          %p310 = pneg %p81
        $region54: #{tpu_custom_call.1} parent=47 // pred_check_branch
          %312 = sbr.rel (%p310) target = $region56
        $region55: #{tpu_custom_call.1} parent=47 // pred_region
          %313 = dma.done [#allocation8], 320
        $region56: #{tpu_custom_call.1} parent=47 // pred_fallthru
          _
        // Predicated region
        $region57: #{tpu_custom_call.1} parent=47 // pred_check
          %p314 = pneg %p102
        $region58: #{tpu_custom_call.1} parent=47 // pred_check_branch
          %316 = sbr.rel (%p314) target = $region60
        $region59: #{tpu_custom_call.1} parent=47 // pred_region
          %317 = dma.done [#allocation8], 9216
        $region60: #{tpu_custom_call.1} parent=47 // pred_fallthru
          _
        %s318 = sand.u32 %s47, 1
        %s319 = scalar_lea.sflag [#allocation5], %s318
        %s320 = sand.u32 %s47, 1
        %s321 = smul.addr %s320, 80
        %s322 = scalar_lea.vmem [#allocation4], %s321
        %p323 = pneg %p60
        %p324 = pneg %p57
        %p325 = pneg %p81
        %p326 = pneg %p78
        %p327 = pneg %p102
        %p328 = pneg %p99
        %p329 = pneg %p123
        %p330 = pneg %p120
        %p331 = pneg %p144
        %p332 = pneg %p141
        %p333 = pneg %p165
        %p334 = pneg %p162
        %p335 = pneg %p186
        %p336 = pneg %p183
        %p337 = pneg %p214
        %p338 = pneg %p211
        %s339 = sand.u32 %s201, 1
        %s340 = scalar_lea.sflag [#allocation6], %s339
        %s341 = sand.u32 %s201, 1
        %s342 = smul.addr %s341, 32
        %s343 = scalar_lea.vmem [#allocation10], %s342
        %s344 = smul.u32 4, %s30
        %v346 = vld [vmem:[%s305] sm:$0xf]
        %v347 = vld [vmem:[%s305 + $0x4] sm:$0xf]
        %v348 = vld [vmem:[%s305 + $0x8] sm:$0xf]
        %v349 = vld [vmem:[%s305 + $0xc] sm:$0xf]
        %v350 = vld [vmem:[%s305 + $0x10] sm:$0xf]
        %v351 = vld [vmem:[%s305 + $0x14] sm:$0xf]
        %v352 = vld [vmem:[%s305 + $0x18] sm:$0xf]
        %v353 = vld [vmem:[%s305 + $0x1c] sm:$0xf]
        %v354 = vld [vmem:[%s305 + $0x20] sm:$0xf]
        %v355 = vld [vmem:[%s305 + $0x24] sm:$0xf]
        %v356 = vld [vmem:[%s305 + $0x28] sm:$0xf]
        %v357 = vld [vmem:[%s305 + $0x2c] sm:$0xf]
        %v358 = vld [vmem:[%s305 + $0x30] sm:$0xf]
        %v359 = vld [vmem:[%s305 + $0x34] sm:$0xf]
        %v360 = vld [vmem:[%s305 + $0x38] sm:$0xf]
        %v361 = vld [vmem:[%s305 + $0x3c] sm:$0xf]
        %v362 = vld [vmem:[%s305 + $0x40] sm:$0xf]
        %v363 = vld [vmem:[%s305 + $0x44] sm:$0xf]
        %v364 = vld [vmem:[%s305 + $0x48] sm:$0xf]
        %v365 = vld [vmem:[%s305 + $0x4c] sm:$0xf]
        %v366 = vld [vmem:[#allocation7] sm:$0xf]
        %v367 = vld [vmem:[#allocation7 + $0x4] sm:$0xf]
        %v368 = vld [vmem:[#allocation7 + $0x8] sm:$0xf]
        %v369 = vld [vmem:[#allocation7 + $0xc] sm:$0xf]
        %v370 = vld [vmem:[#allocation7 + $0x10] sm:$0x3]
        %v391 = vunpack.c.l.b16 %v346
        %v392 = vunpack.c.l.b16 %v347
        %v393 = vunpack.c.l.b16 %v348
        %v394 = vunpack.c.l.b16 %v349
        %v395 = vunpack.c.l.b16 %v350
        %v396 = vunpack.c.l.b16 %v351
        %v397 = vunpack.c.l.b16 %v352
        %v398 = vunpack.c.l.b16 %v353
        %v399 = vunpack.c.l.b16 %v354
        %v400 = vunpack.c.l.b16 %v355
        %v401 = vunpack.c.l.b16 %v356
        %v402 = vunpack.c.l.b16 %v357
        %v403 = vunpack.c.l.b16 %v358
        %v404 = vunpack.c.l.b16 %v359
        %v405 = vunpack.c.l.b16 %v360
        %v406 = vunpack.c.l.b16 %v361
        %v407 = vunpack.c.l.b16 %v362
        %v408 = vunpack.c.l.b16 %v363
        %v409 = vunpack.c.l.b16 %v364
        %v410 = vunpack.c.l.b16 %v365
        %v411 = vpack.c.b16 %v392, %v391
        %v412 = vpack.c.b16 %v394, %v393
        %v413 = vpack.c.b16 %v396, %v395
        %v414 = vpack.c.b16 %v398, %v397
        %v415 = vpack.c.b16 %v400, %v399
        %v416 = vpack.c.b16 %v402, %v401
        %v417 = vpack.c.b16 %v404, %v403
        %v418 = vpack.c.b16 %v406, %v405
        %v419 = vpack.c.b16 %v408, %v407
        %v420 = vpack.c.b16 %v410, %v409
        %v426 = vunpack.c.l.b16 %v366
        %v427 = vunpack.c.l.b16 %v367
        %v428 = vunpack.c.l.b16 %v368
        %v429 = vunpack.c.l.b16 %v369
        %v430 = vunpack.c.l.b16 %v370
        %v431 = vpack.c.b16 %v427, %v426
        %v432 = vpack.c.b16 %v429, %v428
        %v433 = vpack.c.b16 %v430, %v430
        %vm436 = vcmask 293888
        %v438 = vsel %vm436, %v411, 0
        %v441 = vsel %vm436, %v412, 0
        %v444 = vsel %vm436, %v413, 0
        %v447 = vsel %vm436, %v414, 0
        %v450 = vsel %vm436, %v415, 0
        %v453 = vsel %vm436, %v416, 0
        %v456 = vsel %vm436, %v417, 0
        %v459 = vsel %vm436, %v418, 0
        %v462 = vsel %vm436, %v419, 0
        %v465 = vsel %vm436, %v420, 0
        %vm467 = vcmask 1041408
        %v469 = vsel %vm467, %v433, 0
        %471 = vmatprep.subr.bf16.mxu0 0
        %472 = vmatpush1.bf16.msra.mxu0 0
        %473 = vmatprep.subr.bf16.mxu0 0
        %474 = vmatpush1.bf16.msra.mxu0 0
        %475 = vmatprep.subr.bf16.mxu0 0
        %476 = vmatpush1.bf16.msra.mxu0 0
        %477 = vmatprep.subr.bf16.mxu0 0
        %478 = vmatpush1.bf16.msra.mxu0 0
        %479 = vmatprep.subr.bf16.mxu0 0
        %480 = vmatpush1.bf16.msra.mxu0 0
        %481 = vmatprep.subr.bf16.mxu0 0
        %482 = vmatpush1.bf16.msra.mxu0 %v469
        %483 = vmatprep.subr.bf16.mxu0 0
        %484 = vmatpush1.bf16.msra.mxu0 %v432
        %485 = vmatprep.subr.bf16.mxu0 0
        %486 = vmatpush1.bf16.msra.mxu0 %v431
        %487 = vmatprep.subr.bf16.mxu0 0
        %488 = vmatpush2.bf16.msra.mxu0 0
        %489 = vmatprep.subr.bf16.mxu0 0
        %490 = vmatpush2.bf16.msra.mxu0 0
        %491 = vmatprep.subr.bf16.mxu0 0
        %492 = vmatpush2.bf16.msra.mxu0 0
        %493 = vmatprep.subr.bf16.mxu0 0
        %494 = vmatpush2.bf16.msra.mxu0 0
        %495 = vmatprep.subr.bf16.mxu0 0
        %496 = vmatpush2.bf16.msra.mxu0 0
        %497 = vmatprep.subr.bf16.mxu0 0
        %498 = vmatpush2.bf16.msra.mxu0 0
        %499 = vmatprep.subr.bf16.mxu0 0
        %500 = vmatpush2.bf16.msra.mxu0 0
        %501 = vmatprep.subr.bf16.mxu0 0
        %502 = vmatpush2.bf16.msra.mxu0 0
        %503 = vmatprep.mubr.bf16.mxu0 0
        %504 = vmatmul.mubr.bf16.gmra.mxu0 %v438
        %v505 = vpop.f32.mrf.mxu0
        %v506 = vadd.f32 0.0, %v505
        %v507 = vpop.f32.mrf.mxu0
        %v508 = vpop.f32.mrf.mxu0
        %v509 = vadd.f32 0.0, %v508
        %v510 = vpop.f32.mrf.mxu0
        %511 = vmatprep.mubr.bf16.mxu0 0
        %512 = vmatmul.mubr.bf16.gmra.mxu0 %v441
        %v513 = vpop.f32.mrf.mxu0
        %v514 = vadd.f32 0.0, %v513
        %v515 = vpop.f32.mrf.mxu0
        %v516 = vpop.f32.mrf.mxu0
        %v517 = vadd.f32 0.0, %v516
        %v518 = vpop.f32.mrf.mxu0
        %519 = vmatprep.mubr.bf16.mxu0 0
        %520 = vmatmul.mubr.bf16.gmra.mxu0 %v444
        %v521 = vpop.f32.mrf.mxu0
        %v522 = vadd.f32 0.0, %v521
        %v523 = vpop.f32.mrf.mxu0
        %v524 = vpop.f32.mrf.mxu0
        %v525 = vadd.f32 0.0, %v524
        %v526 = vpop.f32.mrf.mxu0
        %527 = vmatprep.mubr.bf16.mxu0 0
        %528 = vmatmul.mubr.bf16.gmra.mxu0 %v447
        %v529 = vpop.f32.mrf.mxu0
        %v530 = vadd.f32 0.0, %v529
        %v531 = vpop.f32.mrf.mxu0
        %v532 = vpop.f32.mrf.mxu0
        %v533 = vadd.f32 0.0, %v532
        %v534 = vpop.f32.mrf.mxu0
        %535 = vmatprep.mubr.bf16.mxu0 0
        %536 = vmatmul.mubr.bf16.gmra.mxu0 %v450
        %v537 = vpop.f32.mrf.mxu0
        %v538 = vadd.f32 0.0, %v537
        %v539 = vpop.f32.mrf.mxu0
        %v540 = vpop.f32.mrf.mxu0
        %v541 = vadd.f32 0.0, %v540
        %v542 = vpop.f32.mrf.mxu0
        %543 = vmatprep.mubr.bf16.mxu0 0
        %544 = vmatmul.mubr.bf16.gmra.mxu0 %v453
        %v545 = vpop.f32.mrf.mxu0
        %v546 = vadd.f32 0.0, %v545
        %v547 = vpop.f32.mrf.mxu0
        %v548 = vpop.f32.mrf.mxu0
        %v549 = vadd.f32 0.0, %v548
        %v550 = vpop.f32.mrf.mxu0
        %551 = vmatprep.mubr.bf16.mxu0 0
        %552 = vmatmul.mubr.bf16.gmra.mxu0 %v456
        %v553 = vpop.f32.mrf.mxu0
        %v554 = vadd.f32 0.0, %v553
        %v555 = vpop.f32.mrf.mxu0
        %v556 = vpop.f32.mrf.mxu0
        %v557 = vadd.f32 0.0, %v556
        %v558 = vpop.f32.mrf.mxu0
        %559 = vmatprep.mubr.bf16.mxu0 0
        %560 = vmatmul.mubr.bf16.gmra.mxu0 %v459
        %v561 = vpop.f32.mrf.mxu0
        %v562 = vadd.f32 0.0, %v561
        %v563 = vpop.f32.mrf.mxu0
        %v564 = vpop.f32.mrf.mxu0
        %v565 = vadd.f32 0.0, %v564
        %v566 = vpop.f32.mrf.mxu0
        %567 = vmatprep.mubr.bf16.mxu0 0
        %568 = vmatmul.mubr.bf16.gmra.mxu0 %v462
        %v569 = vpop.f32.mrf.mxu0
        %v570 = vadd.f32 0.0, %v569
        %v571 = vpop.f32.mrf.mxu0
        %v572 = vpop.f32.mrf.mxu0
        %v573 = vadd.f32 0.0, %v572
        %v574 = vpop.f32.mrf.mxu0
        %575 = vmatprep.mubr.bf16.mxu0 0
        %576 = vmatmul.mubr.bf16.gmra.mxu0 %v465
        %v577 = vpop.f32.mrf.mxu0
        %v578 = vadd.f32 0.0, %v577
        %v579 = vpop.f32.mrf.mxu0
        %v580 = vpop.f32.mrf.mxu0
        %v581 = vadd.f32 0.0, %v580
        %v582 = vpop.f32.mrf.mxu0
        %583 = vdwg.mxu0
        %v584 = vld [vmem:[%s3] sm:$0x1]
        %v586 = vlaneseq
        %v587 = vshrl.u32 %v586, 7
        %v588 = vsub.s32 0, %v587
        %v589 = vrot.slane %v584, %v588
        %v591 = vmul.f32 %v506, %v589
        %v592 = vmul.f32 %v509, %v589
        %v593 = vmul.f32 %v514, %v589
        %v594 = vmul.f32 %v517, %v589
        %v595 = vmul.f32 %v522, %v589
        %v596 = vmul.f32 %v525, %v589
        %v597 = vmul.f32 %v530, %v589
        %v598 = vmul.f32 %v533, %v589
        %v599 = vmul.f32 %v538, %v589
        %v600 = vmul.f32 %v541, %v589
        %v601 = vmul.f32 %v546, %v589
        %v602 = vmul.f32 %v549, %v589
        %v603 = vmul.f32 %v554, %v589
        %v604 = vmul.f32 %v557, %v589
        %v605 = vmul.f32 %v562, %v589
        %v606 = vmul.f32 %v565, %v589
        %v607 = vmul.f32 %v570, %v589
        %v608 = vmul.f32 %v573, %v589
        %v609 = vmul.f32 %v578, %v589
        %v610 = vmul.f32 %v581, %v589
        %v611 = vld [vmem:[%s4] sm:$0x1]
        %v613 = vlaneseq
        %v614 = vshrl.u32 %v613, 7
        %v615 = vsub.s32 0, %v614
        %v616 = vrot.slane %v611, %v615
        %v618 = vadd.f32 %v591, %v616
        %v619 = vadd.f32 %v592, %v616
        %v620 = vadd.f32 %v593, %v616
        %v621 = vadd.f32 %v594, %v616
        %v622 = vadd.f32 %v595, %v616
        %v623 = vadd.f32 %v596, %v616
        %v624 = vadd.f32 %v597, %v616
        %v625 = vadd.f32 %v598, %v616
        %v626 = vadd.f32 %v599, %v616
        %v627 = vadd.f32 %v600, %v616
        %v628 = vadd.f32 %v601, %v616
        %v629 = vadd.f32 %v602, %v616
        %v630 = vadd.f32 %v603, %v616
        %v631 = vadd.f32 %v604, %v616
        %v632 = vadd.f32 %v605, %v616
        %v633 = vadd.f32 %v606, %v616
        %v634 = vadd.f32 %v607, %v616
        %v635 = vadd.f32 %v608, %v616
        %v636 = vadd.f32 %v609, %v616
        %v637 = vadd.f32 %v610, %v616
        %v638 = vmax.f32 %v618, 0.0
        %v639 = vmax.f32 %v619, 0.0
        %v640 = vmax.f32 %v620, 0.0
        %v641 = vmax.f32 %v621, 0.0
        %v642 = vmax.f32 %v622, 0.0
        %v643 = vmax.f32 %v623, 0.0
        %v644 = vmax.f32 %v624, 0.0
        %v645 = vmax.f32 %v625, 0.0
        %v646 = vmax.f32 %v626, 0.0
        %v647 = vmax.f32 %v627, 0.0
        %v648 = vmax.f32 %v628, 0.0
        %v649 = vmax.f32 %v629, 0.0
        %v650 = vmax.f32 %v630, 0.0
        %v651 = vmax.f32 %v631, 0.0
        %v652 = vmax.f32 %v632, 0.0
        %v653 = vmax.f32 %v633, 0.0
        %v654 = vmax.f32 %v634, 0.0
        %v655 = vmax.f32 %v635, 0.0
        %v656 = vmax.f32 %v636, 0.0
        %v657 = vmax.f32 %v637, 0.0
        %v658 = vpack.c.bf16 %v639, %v638
        %v659 = vpack.c.bf16 %v641, %v640
        %v660 = vpack.c.bf16 %v643, %v642
        %v661 = vpack.c.bf16 %v645, %v644
        %v662 = vpack.c.bf16 %v647, %v646
        %v663 = vpack.c.bf16 %v649, %v648
        %v664 = vpack.c.bf16 %v651, %v650
        %v665 = vpack.c.bf16 %v653, %v652
        %v666 = vpack.c.bf16 %v655, %v654
        %v667 = vpack.c.bf16 %v657, %v656
        %v669 = vshrl.u32 %v658, 16
        %v671 = vrot.slane %v669, 7
        %v672 = vshll.u32 %v658, 16
        %v674 = vor.u32 %v671, %v672
        %v676 = vshrl.u32 %v659, 16
        %v678 = vrot.slane %v676, 7
        %v679 = vshll.u32 %v659, 16
        %v681 = vor.u32 %v678, %v679
        %v683 = vshrl.u32 %v660, 16
        %v685 = vrot.slane %v683, 7
        %v686 = vshll.u32 %v660, 16
        %v688 = vor.u32 %v685, %v686
        %v690 = vshrl.u32 %v661, 16
        %v692 = vrot.slane %v690, 7
        %v693 = vshll.u32 %v661, 16
        %v695 = vor.u32 %v692, %v693
        %v697 = vshrl.u32 %v662, 16
        %v699 = vrot.slane %v697, 7
        %v700 = vshll.u32 %v662, 16
        %v702 = vor.u32 %v699, %v700
        %v704 = vshrl.u32 %v663, 16
        %v706 = vrot.slane %v704, 7
        %v707 = vshll.u32 %v663, 16
        %v709 = vor.u32 %v706, %v707
        %v711 = vshrl.u32 %v664, 16
        %v713 = vrot.slane %v711, 7
        %v714 = vshll.u32 %v664, 16
        %v716 = vor.u32 %v713, %v714
        %v718 = vshrl.u32 %v665, 16
        %v720 = vrot.slane %v718, 7
        %v721 = vshll.u32 %v665, 16
        %v723 = vor.u32 %v720, %v721
        %v725 = vshrl.u32 %v666, 16
        %v727 = vrot.slane %v725, 7
        %v728 = vshll.u32 %v666, 16
        %v730 = vor.u32 %v727, %v728
        %v732 = vshrl.u32 %v667, 16
        %v734 = vrot.slane %v732, 7
        %v735 = vshll.u32 %v667, 16
        %v737 = vor.u32 %v734, %v735
        %vm748 = vcmask 1040384
        %vm749 = vsmask.f32 256
        %vm750 = vmand %vm748, %vm749
        %v751 = vsel %vm750, 0, %v674
        %v752 = vsel %vm750, 0, %v681
        %v753 = vsel %vm750, 0, %v688
        %v754 = vsel %vm750, 0, %v695
        %v755 = vsel %vm750, 0, %v702
        %v756 = vsel %vm750, 0, %v709
        %v757 = vsel %vm750, 0, %v716
        %v758 = vsel %vm750, 0, %v723
        %v759 = vsel %vm750, 0, %v730
        %v760 = vsel %vm750, 0, %v737
        %v771 = vunpack.c.l.b16 %v751
        %v772 = vunpack.c.h.b16 %v751
        %v773 = vunpack.c.l.b16 %v752
        %v774 = vunpack.c.h.b16 %v752
        %v775 = vunpack.c.l.b16 %v753
        %v776 = vunpack.c.h.b16 %v753
        %v777 = vunpack.c.l.b16 %v754
        %v778 = vunpack.c.h.b16 %v754
        %v779 = vunpack.c.l.b16 %v755
        %v780 = vunpack.c.h.b16 %v755
        %v781 = vunpack.c.l.b16 %v756
        %v782 = vunpack.c.h.b16 %v756
        %v783 = vunpack.c.l.b16 %v757
        %v784 = vunpack.c.h.b16 %v757
        %v785 = vunpack.c.l.b16 %v758
        %v786 = vunpack.c.h.b16 %v758
        %v787 = vunpack.c.l.b16 %v759
        %v788 = vunpack.c.h.b16 %v759
        %v789 = vunpack.c.l.b16 %v760
        %v790 = vunpack.c.h.b16 %v760
        %v791 = vpack.c.b16 %v771, %v771
        %v792 = vpack.c.b16 %v772, %v772
        %v793 = vpack.c.b16 %v773, %v773
        %v794 = vpack.c.b16 %v774, %v774
        %v795 = vpack.c.b16 %v775, %v775
        %v796 = vpack.c.b16 %v776, %v776
        %v797 = vpack.c.b16 %v777, %v777
        %v798 = vpack.c.b16 %v778, %v778
        %v799 = vpack.c.b16 %v779, %v779
        %v800 = vpack.c.b16 %v780, %v780
        %v801 = vpack.c.b16 %v781, %v781
        %v802 = vpack.c.b16 %v782, %v782
        %v803 = vpack.c.b16 %v783, %v783
        %v804 = vpack.c.b16 %v784, %v784
        %v805 = vpack.c.b16 %v785, %v785
        %v806 = vpack.c.b16 %v786, %v786
        %v807 = vpack.c.b16 %v787, %v787
        %v808 = vpack.c.b16 %v788, %v788
        %v809 = vpack.c.b16 %v789, %v789
        %v810 = vpack.c.b16 %v790, %v790
        %831 = vst [vmem:[#allocation2] sm:$0xf] %v791
        %832 = vst [vmem:[#allocation2 + $0x4] sm:$0xf] %v792
        %833 = vst [vmem:[#allocation2 + $0x8] sm:$0xf] %v793
        %834 = vst [vmem:[#allocation2 + $0xc] sm:$0xf] %v794
        %835 = vst [vmem:[#allocation2 + $0x10] sm:$0xf] %v795
        %836 = vst [vmem:[#allocation2 + $0x14] sm:$0xf] %v796
        %837 = vst [vmem:[#allocation2 + $0x18] sm:$0xf] %v797
        %838 = vst [vmem:[#allocation2 + $0x1c] sm:$0xf] %v798
        %839 = vst [vmem:[#allocation2 + $0x20] sm:$0xf] %v799
        %840 = vst [vmem:[#allocation2 + $0x24] sm:$0xf] %v800
        %841 = vst [vmem:[#allocation2 + $0x28] sm:$0xf] %v801
        %842 = vst [vmem:[#allocation2 + $0x2c] sm:$0xf] %v802
        %843 = vst [vmem:[#allocation2 + $0x30] sm:$0xf] %v803
        %844 = vst [vmem:[#allocation2 + $0x34] sm:$0xf] %v804
        %845 = vst [vmem:[#allocation2 + $0x38] sm:$0xf] %v805
        %846 = vst [vmem:[#allocation2 + $0x3c] sm:$0xf] %v806
        %847 = vst [vmem:[#allocation2 + $0x40] sm:$0xf] %v807
        %848 = vst [vmem:[#allocation2 + $0x44] sm:$0xf] %v808
        %849 = vst [vmem:[#allocation2 + $0x48] sm:$0xf] %v809
        %850 = vst [vmem:[#allocation2 + $0x4c] sm:$0xf] %v810
        %v861 = vunpack.c.l.b16 %v658
        %v862 = vunpack.c.h.b16 %v658
        %v863 = vunpack.c.l.b16 %v659
        %v864 = vunpack.c.h.b16 %v659
        %v865 = vunpack.c.l.b16 %v660
        %v866 = vunpack.c.h.b16 %v660
        %v867 = vunpack.c.l.b16 %v661
        %v868 = vunpack.c.h.b16 %v661
        %v869 = vunpack.c.l.b16 %v662
        %v870 = vunpack.c.h.b16 %v662
        %v871 = vunpack.c.l.b16 %v663
        %v872 = vunpack.c.h.b16 %v663
        %v873 = vunpack.c.l.b16 %v664
        %v874 = vunpack.c.h.b16 %v664
        %v875 = vunpack.c.l.b16 %v665
        %v876 = vunpack.c.h.b16 %v665
        %v877 = vunpack.c.l.b16 %v666
        %v878 = vunpack.c.h.b16 %v666
        %v879 = vunpack.c.l.b16 %v667
        %v880 = vunpack.c.h.b16 %v667
        %v881 = vpack.c.b16 %v861, %v861
        %v882 = vpack.c.b16 %v862, %v862
        %v883 = vpack.c.b16 %v863, %v863
        %v884 = vpack.c.b16 %v864, %v864
        %v885 = vpack.c.b16 %v865, %v865
        %v886 = vpack.c.b16 %v866, %v866
        %v887 = vpack.c.b16 %v867, %v867
        %v888 = vpack.c.b16 %v868, %v868
        %v889 = vpack.c.b16 %v869, %v869
        %v890 = vpack.c.b16 %v870, %v870
        %v891 = vpack.c.b16 %v871, %v871
        %v892 = vpack.c.b16 %v872, %v872
        %v893 = vpack.c.b16 %v873, %v873
        %v894 = vpack.c.b16 %v874, %v874
        %v895 = vpack.c.b16 %v875, %v875
        %v896 = vpack.c.b16 %v876, %v876
        %v897 = vpack.c.b16 %v877, %v877
        %v898 = vpack.c.b16 %v878, %v878
        %v899 = vpack.c.b16 %v879, %v879
        %v900 = vpack.c.b16 %v880, %v880
        %s921 = scalar_lea.vmem [#allocation2], 80
        %922 = vst [vmem:[%s921] sm:$0xf] %v881
        %923 = vst [vmem:[%s921 + $0x4] sm:$0xf] %v882
        %924 = vst [vmem:[%s921 + $0x8] sm:$0xf] %v883
        %925 = vst [vmem:[%s921 + $0xc] sm:$0xf] %v884
        %926 = vst [vmem:[%s921 + $0x10] sm:$0xf] %v885
        %927 = vst [vmem:[%s921 + $0x14] sm:$0xf] %v886
        %928 = vst [vmem:[%s921 + $0x18] sm:$0xf] %v887
        %929 = vst [vmem:[%s921 + $0x1c] sm:$0xf] %v888
        %930 = vst [vmem:[%s921 + $0x20] sm:$0xf] %v889
        %931 = vst [vmem:[%s921 + $0x24] sm:$0xf] %v890
        %932 = vst [vmem:[%s921 + $0x28] sm:$0xf] %v891
        %933 = vst [vmem:[%s921 + $0x2c] sm:$0xf] %v892
        %934 = vst [vmem:[%s921 + $0x30] sm:$0xf] %v893
        %935 = vst [vmem:[%s921 + $0x34] sm:$0xf] %v894
        %936 = vst [vmem:[%s921 + $0x38] sm:$0xf] %v895
        %937 = vst [vmem:[%s921 + $0x3c] sm:$0xf] %v896
        %938 = vst [vmem:[%s921 + $0x40] sm:$0xf] %v897
        %939 = vst [vmem:[%s921 + $0x44] sm:$0xf] %v898
        %940 = vst [vmem:[%s921 + $0x48] sm:$0xf] %v899
        %941 = vst [vmem:[%s921 + $0x4c] sm:$0xf] %v900
        %v942 = vrot.slane %v672, 1
        %v943 = vor.u32 %v669, %v942
        %v944 = vrot.slane %v679, 1
        %v945 = vor.u32 %v676, %v944
        %v946 = vrot.slane %v686, 1
        %v947 = vor.u32 %v683, %v946
        %v948 = vrot.slane %v693, 1
        %v949 = vor.u32 %v690, %v948
        %v950 = vrot.slane %v700, 1
        %v951 = vor.u32 %v697, %v950
        %v952 = vrot.slane %v707, 1
        %v953 = vor.u32 %v704, %v952
        %v954 = vrot.slane %v714, 1
        %v955 = vor.u32 %v711, %v954
        %v956 = vrot.slane %v721, 1
        %v957 = vor.u32 %v718, %v956
        %v958 = vrot.slane %v728, 1
        %v959 = vor.u32 %v725, %v958
        %v960 = vrot.slane %v735, 1
        %v961 = vor.u32 %v732, %v960
        %vm972 = vcmask 1047552
        %vm973 = vsmask.f32 7424
        %vm974 = vmand %vm972, %vm973
        %v975 = vsel %vm974, %v943, 0
        %v976 = vsel %vm974, %v945, 0
        %v977 = vsel %vm974, %v947, 0
        %v978 = vsel %vm974, %v949, 0
        %v979 = vsel %vm974, %v951, 0
        %v980 = vsel %vm974, %v953, 0
        %v981 = vsel %vm974, %v955, 0
        %v982 = vsel %vm974, %v957, 0
        %v983 = vsel %vm974, %v959, 0
        %v984 = vsel %vm974, %v961, 0
        %v995 = vunpack.c.l.b16 %v975
        %v996 = vunpack.c.h.b16 %v975
        %v997 = vunpack.c.l.b16 %v976
        %v998 = vunpack.c.h.b16 %v976
        %v999 = vunpack.c.l.b16 %v977
        %v1000 = vunpack.c.h.b16 %v977
        %v1001 = vunpack.c.l.b16 %v978
        %v1002 = vunpack.c.h.b16 %v978
        %v1003 = vunpack.c.l.b16 %v979
        %v1004 = vunpack.c.h.b16 %v979
        %v1005 = vunpack.c.l.b16 %v980
        %v1006 = vunpack.c.h.b16 %v980
        %v1007 = vunpack.c.l.b16 %v981
        %v1008 = vunpack.c.h.b16 %v981
        %v1009 = vunpack.c.l.b16 %v982
        %v1010 = vunpack.c.h.b16 %v982
        %v1011 = vunpack.c.l.b16 %v983
        %v1012 = vunpack.c.h.b16 %v983
        %v1013 = vunpack.c.l.b16 %v984
        %v1014 = vunpack.c.h.b16 %v984
        %v1015 = vpack.c.b16 %v995, %v995
        %v1016 = vpack.c.b16 %v996, %v996
        %v1017 = vpack.c.b16 %v997, %v997
        %v1018 = vpack.c.b16 %v998, %v998
        %v1019 = vpack.c.b16 %v999, %v999
        %v1020 = vpack.c.b16 %v1000, %v1000
        %v1021 = vpack.c.b16 %v1001, %v1001
        %v1022 = vpack.c.b16 %v1002, %v1002
        %v1023 = vpack.c.b16 %v1003, %v1003
        %v1024 = vpack.c.b16 %v1004, %v1004
        %v1025 = vpack.c.b16 %v1005, %v1005
        %v1026 = vpack.c.b16 %v1006, %v1006
        %v1027 = vpack.c.b16 %v1007, %v1007
        %v1028 = vpack.c.b16 %v1008, %v1008
        %v1029 = vpack.c.b16 %v1009, %v1009
        %v1030 = vpack.c.b16 %v1010, %v1010
        %v1031 = vpack.c.b16 %v1011, %v1011
        %v1032 = vpack.c.b16 %v1012, %v1012
        %v1033 = vpack.c.b16 %v1013, %v1013
        %v1034 = vpack.c.b16 %v1014, %v1014
        %s1055 = scalar_lea.vmem [#allocation2], 160
        %1056 = vst [vmem:[%s1055] sm:$0xf] %v1015
        %1057 = vst [vmem:[%s1055 + $0x4] sm:$0xf] %v1016
        %1058 = vst [vmem:[%s1055 + $0x8] sm:$0xf] %v1017
        %1059 = vst [vmem:[%s1055 + $0xc] sm:$0xf] %v1018
        %1060 = vst [vmem:[%s1055 + $0x10] sm:$0xf] %v1019
        %1061 = vst [vmem:[%s1055 + $0x14] sm:$0xf] %v1020
        %1062 = vst [vmem:[%s1055 + $0x18] sm:$0xf] %v1021
        %1063 = vst [vmem:[%s1055 + $0x1c] sm:$0xf] %v1022
        %1064 = vst [vmem:[%s1055 + $0x20] sm:$0xf] %v1023
        %1065 = vst [vmem:[%s1055 + $0x24] sm:$0xf] %v1024
        %1066 = vst [vmem:[%s1055 + $0x28] sm:$0xf] %v1025
        %1067 = vst [vmem:[%s1055 + $0x2c] sm:$0xf] %v1026
        %1068 = vst [vmem:[%s1055 + $0x30] sm:$0xf] %v1027
        %1069 = vst [vmem:[%s1055 + $0x34] sm:$0xf] %v1028
        %1070 = vst [vmem:[%s1055 + $0x38] sm:$0xf] %v1029
        %1071 = vst [vmem:[%s1055 + $0x3c] sm:$0xf] %v1030
        %1072 = vst [vmem:[%s1055 + $0x40] sm:$0xf] %v1031
        %1073 = vst [vmem:[%s1055 + $0x44] sm:$0xf] %v1032
        %1074 = vst [vmem:[%s1055 + $0x48] sm:$0xf] %v1033
        %1075 = vst [vmem:[%s1055 + $0x4c] sm:$0xf] %v1034
        %p1076 = scmp.eq.s32.totalorder %s30, 0
        // Predicated region
        $region61: #{tpu_custom_call.1} parent=47 // pred_check
          %p1077 = pneg %p1076
        $region62: #{tpu_custom_call.1} parent=47 // pred_check_branch
          %1079 = sbr.rel (%p1077) target = $region64
        $region63: #{tpu_custom_call.1} parent=47 // pred_region
          %1080 = vst [vmem:[#allocation2] sm:$0xf] 0
          %1081 = vst [vmem:[#allocation2 + $0x4] sm:$0xf] 0
          %1082 = vst [vmem:[#allocation2 + $0x50] sm:$0xf] 0
          %1083 = vst [vmem:[#allocation2 + $0x54] sm:$0xf] 0
          %1084 = vst [vmem:[#allocation2 + $0xa0] sm:$0xf] 0
          %1085 = vst [vmem:[#allocation2 + $0xa4] sm:$0xf] 0
        $region64: #{tpu_custom_call.1} parent=47 // pred_fallthru
          _
        %p1086 = scmp.eq.s32.totalorder %s30, 1
        // Predicated region
        $region65: #{tpu_custom_call.1} parent=47 // pred_check
          %p1087 = pneg %p1086
        $region66: #{tpu_custom_call.1} parent=47 // pred_check_branch
          %1089 = sbr.rel (%p1087) target = $region68
        $region67: #{tpu_custom_call.1} parent=47 // pred_region
          %s1090 = scalar_lea.vmem [#allocation2], 72
          %1091 = vst [vmem:[%s1090] sm:$0xf] 0
          %1092 = vst [vmem:[%s1090 + $0x4] sm:$0xf] 0
          %1093 = vst [vmem:[%s1090 + $0x50] sm:$0xf] 0
          %1094 = vst [vmem:[%s1090 + $0x54] sm:$0xf] 0
          %1095 = vst [vmem:[%s1090 + $0xa0] sm:$0xf] 0
          %1096 = vst [vmem:[%s1090 + $0xa4] sm:$0xf] 0
        $region68: #{tpu_custom_call.1} parent=47 // pred_fallthru
          _
        %v1097 = vld [vmem:[#allocation2] sm:$0xf]
        %v1098 = vld [vmem:[#allocation2 + $0x4] sm:$0xf]
        %v1099 = vld [vmem:[#allocation2 + $0x8] sm:$0xf]
        %v1100 = vld [vmem:[#allocation2 + $0xc] sm:$0xf]
        %v1101 = vld [vmem:[#allocation2 + $0x10] sm:$0xf]
        %v1102 = vld [vmem:[#allocation2 + $0x14] sm:$0xf]
        %v1103 = vld [vmem:[#allocation2 + $0x18] sm:$0xf]
        %v1104 = vld [vmem:[#allocation2 + $0x1c] sm:$0xf]
        %v1105 = vld [vmem:[#allocation2 + $0x20] sm:$0xf]
        %v1106 = vld [vmem:[#allocation2 + $0x24] sm:$0xf]
        %v1107 = vld [vmem:[#allocation2 + $0x28] sm:$0xf]
        %v1108 = vld [vmem:[#allocation2 + $0x2c] sm:$0xf]
        %v1109 = vld [vmem:[#allocation2 + $0x30] sm:$0xf]
        %v1110 = vld [vmem:[#allocation2 + $0x34] sm:$0xf]
        %v1111 = vld [vmem:[#allocation2 + $0x38] sm:$0xf]
        %v1112 = vld [vmem:[#allocation2 + $0x3c] sm:$0xf]
        %v1113 = vld [vmem:[#allocation9] sm:$0xf]
        %v1114 = vld [vmem:[#allocation9 + $0x4] sm:$0xf]
        %v1115 = vld [vmem:[#allocation9 + $0x8] sm:$0xf]
        %v1116 = vld [vmem:[#allocation9 + $0xc] sm:$0xf]
        %v1117 = vld [vmem:[#allocation9 + $0x10] sm:$0xf]
        %v1118 = vld [vmem:[#allocation9 + $0x14] sm:$0xf]
        %v1119 = vld [vmem:[#allocation9 + $0x18] sm:$0xf]
        %v1120 = vld [vmem:[#allocation9 + $0x1c] sm:$0xf]
        %v1121 = vld [vmem:[#allocation9 + $0x20] sm:$0xf]
        %v1122 = vld [vmem:[#allocation9 + $0x24] sm:$0xf]
        %v1123 = vld [vmem:[#allocation9 + $0x28] sm:$0xf]
        %v1124 = vld [vmem:[#allocation9 + $0x2c] sm:$0xf]
        %v1125 = vld [vmem:[#allocation9 + $0x30] sm:$0xf]
        %v1126 = vld [vmem:[#allocation9 + $0x34] sm:$0xf]
        %v1127 = vld [vmem:[#allocation9 + $0x38] sm:$0xf]
        %v1128 = vld [vmem:[#allocation9 + $0x3c] sm:$0xf]
        %v1145 = vunpack.c.l.b16 %v1097
        %v1146 = vunpack.c.l.b16 %v1098
        %v1147 = vunpack.c.l.b16 %v1099
        %v1148 = vunpack.c.l.b16 %v1100
        %v1149 = vunpack.c.l.b16 %v1101
        %v1150 = vunpack.c.l.b16 %v1102
        %v1151 = vunpack.c.l.b16 %v1103
        %v1152 = vunpack.c.l.b16 %v1104
        %v1153 = vunpack.c.l.b16 %v1105
        %v1154 = vunpack.c.l.b16 %v1106
        %v1155 = vunpack.c.l.b16 %v1107
        %v1156 = vunpack.c.l.b16 %v1108
        %v1157 = vunpack.c.l.b16 %v1109
        %v1158 = vunpack.c.l.b16 %v1110
        %v1159 = vunpack.c.l.b16 %v1111
        %v1160 = vunpack.c.l.b16 %v1112
        %v1161 = vpack.c.b16 %v1146, %v1145
        %v1162 = vpack.c.b16 %v1148, %v1147
        %v1163 = vpack.c.b16 %v1150, %v1149
        %v1164 = vpack.c.b16 %v1152, %v1151
        %v1165 = vpack.c.b16 %v1154, %v1153
        %v1166 = vpack.c.b16 %v1156, %v1155
        %v1167 = vpack.c.b16 %v1158, %v1157
        %v1168 = vpack.c.b16 %v1160, %v1159
        %v1193 = vunpack.c.l.b16 %v1113
        %v1194 = vunpack.c.l.b16 %v1114
        %v1195 = vunpack.c.l.b16 %v1115
        %v1196 = vunpack.c.l.b16 %v1116
        %v1197 = vunpack.c.l.b16 %v1117
        %v1198 = vunpack.c.l.b16 %v1118
        %v1199 = vunpack.c.l.b16 %v1119
        %v1200 = vunpack.c.l.b16 %v1120
        %v1201 = vunpack.c.l.b16 %v1121
        %v1202 = vunpack.c.l.b16 %v1122
        %v1203 = vunpack.c.l.b16 %v1123
        %v1204 = vunpack.c.l.b16 %v1124
        %v1205 = vunpack.c.l.b16 %v1125
        %v1206 = vunpack.c.l.b16 %v1126
        %v1207 = vunpack.c.l.b16 %v1127
        %v1208 = vunpack.c.l.b16 %v1128
        %v1209 = vpack.c.b16 %v1194, %v1193
        %v1210 = vpack.c.b16 %v1196, %v1195
        %v1211 = vpack.c.b16 %v1198, %v1197
        %v1212 = vpack.c.b16 %v1200, %v1199
        %v1213 = vpack.c.b16 %v1202, %v1201
        %v1214 = vpack.c.b16 %v1204, %v1203
        %v1215 = vpack.c.b16 %v1206, %v1205
        %v1216 = vpack.c.b16 %v1208, %v1207
        %1225 = vmatprep.subr.bf16.mxu0 0
        %1226 = vmatpush1.bf16.msra.mxu0 %v1216
        %1227 = vmatprep.subr.bf16.mxu0 0
        %1228 = vmatpush1.bf16.msra.mxu0 %v1215
        %1229 = vmatprep.subr.bf16.mxu0 0
        %1230 = vmatpush1.bf16.msra.mxu0 %v1214
        %1231 = vmatprep.subr.bf16.mxu0 0
        %1232 = vmatpush1.bf16.msra.mxu0 %v1213
        %1233 = vmatprep.subr.bf16.mxu0 0
        %1234 = vmatpush1.bf16.msra.mxu0 %v1212
        %1235 = vmatprep.subr.bf16.mxu0 0
        %1236 = vmatpush1.bf16.msra.mxu0 %v1211
        %1237 = vmatprep.subr.bf16.mxu0 0
        %1238 = vmatpush1.bf16.msra.mxu0 %v1210
        %1239 = vmatprep.subr.bf16.mxu0 0
        %1240 = vmatpush1.bf16.msra.mxu0 %v1209
        %1241 = vmatprep.subr.bf16.mxu0 0
        %1242 = vmatpush2.bf16.msra.mxu0 0
        %1243 = vmatprep.subr.bf16.mxu0 0
        %1244 = vmatpush2.bf16.msra.mxu0 0
        %1245 = vmatprep.subr.bf16.mxu0 0
        %1246 = vmatpush2.bf16.msra.mxu0 0
        %1247 = vmatprep.subr.bf16.mxu0 0
        %1248 = vmatpush2.bf16.msra.mxu0 0
        %1249 = vmatprep.subr.bf16.mxu0 0
        %1250 = vmatpush2.bf16.msra.mxu0 0
        %1251 = vmatprep.subr.bf16.mxu0 0
        %1252 = vmatpush2.bf16.msra.mxu0 0
        %1253 = vmatprep.subr.bf16.mxu0 0
        %1254 = vmatpush2.bf16.msra.mxu0 0
        %1255 = vmatprep.subr.bf16.mxu0 0
        %1256 = vmatpush2.bf16.msra.mxu0 0
        %1257 = vmatprep.mubr.bf16.mxu0 0
        %1258 = vmatmul.mubr.bf16.gmra.mxu0 %v1161
        %v1259 = vpop.f32.mrf.mxu0
        %v1260 = vadd.f32 0.0, %v1259
        %v1261 = vpop.f32.mrf.mxu0
        %v1262 = vpop.f32.mrf.mxu0
        %v1263 = vadd.f32 0.0, %v1262
        %v1264 = vpop.f32.mrf.mxu0
        %1265 = vmatprep.mubr.bf16.mxu0 0
        %1266 = vmatmul.mubr.bf16.gmra.mxu0 %v1162
        %v1267 = vpop.f32.mrf.mxu0
        %v1268 = vadd.f32 0.0, %v1267
        %v1269 = vpop.f32.mrf.mxu0
        %v1270 = vpop.f32.mrf.mxu0
        %v1271 = vadd.f32 0.0, %v1270
        %v1272 = vpop.f32.mrf.mxu0
        %1273 = vmatprep.mubr.bf16.mxu0 0
        %1274 = vmatmul.mubr.bf16.gmra.mxu0 %v1163
        %v1275 = vpop.f32.mrf.mxu0
        %v1276 = vadd.f32 0.0, %v1275
        %v1277 = vpop.f32.mrf.mxu0
        %v1278 = vpop.f32.mrf.mxu0
        %v1279 = vadd.f32 0.0, %v1278
        %v1280 = vpop.f32.mrf.mxu0
        %1281 = vmatprep.mubr.bf16.mxu0 0
        %1282 = vmatmul.mubr.bf16.gmra.mxu0 %v1164
        %v1283 = vpop.f32.mrf.mxu0
        %v1284 = vadd.f32 0.0, %v1283
        %v1285 = vpop.f32.mrf.mxu0
        %v1286 = vpop.f32.mrf.mxu0
        %v1287 = vadd.f32 0.0, %v1286
        %v1288 = vpop.f32.mrf.mxu0
        %1289 = vmatprep.mubr.bf16.mxu0 0
        %1290 = vmatmul.mubr.bf16.gmra.mxu0 %v1165
        %v1291 = vpop.f32.mrf.mxu0
        %v1292 = vadd.f32 0.0, %v1291
        %v1293 = vpop.f32.mrf.mxu0
        %v1294 = vpop.f32.mrf.mxu0
        %v1295 = vadd.f32 0.0, %v1294
        %v1296 = vpop.f32.mrf.mxu0
        %1297 = vmatprep.mubr.bf16.mxu0 0
        %1298 = vmatmul.mubr.bf16.gmra.mxu0 %v1166
        %v1299 = vpop.f32.mrf.mxu0
        %v1300 = vadd.f32 0.0, %v1299
        %v1301 = vpop.f32.mrf.mxu0
        %v1302 = vpop.f32.mrf.mxu0
        %v1303 = vadd.f32 0.0, %v1302
        %v1304 = vpop.f32.mrf.mxu0
        %1305 = vmatprep.mubr.bf16.mxu0 0
        %1306 = vmatmul.mubr.bf16.gmra.mxu0 %v1167
        %v1307 = vpop.f32.mrf.mxu0
        %v1308 = vadd.f32 0.0, %v1307
        %v1309 = vpop.f32.mrf.mxu0
        %v1310 = vpop.f32.mrf.mxu0
        %v1311 = vadd.f32 0.0, %v1310
        %v1312 = vpop.f32.mrf.mxu0
        %1313 = vmatprep.mubr.bf16.mxu0 0
        %1314 = vmatmul.mubr.bf16.gmra.mxu0 %v1168
        %v1315 = vpop.f32.mrf.mxu0
        %v1316 = vadd.f32 0.0, %v1315
        %v1317 = vpop.f32.mrf.mxu0
        %v1318 = vpop.f32.mrf.mxu0
        %v1319 = vadd.f32 0.0, %v1318
        %v1320 = vpop.f32.mrf.mxu0
        %1321 = vdwg.mxu0
        %1322 = vst [vmem:[#allocation3] sm:$0xff] %v1260
        %1323 = vst [vmem:[#allocation3 + $0x8] sm:$0xff] %v1263
        %1324 = vst [vmem:[#allocation3 + $0x10] sm:$0xff] %v1268
        %1325 = vst [vmem:[#allocation3 + $0x18] sm:$0xff] %v1271
        %1326 = vst [vmem:[#allocation3 + $0x20] sm:$0xff] %v1276
        %1327 = vst [vmem:[#allocation3 + $0x28] sm:$0xff] %v1279
        %1328 = vst [vmem:[#allocation3 + $0x30] sm:$0xff] %v1284
        %1329 = vst [vmem:[#allocation3 + $0x38] sm:$0xff] %v1287
        %1330 = vst [vmem:[#allocation3 + $0x40] sm:$0xff] %v1292
        %1331 = vst [vmem:[#allocation3 + $0x48] sm:$0xff] %v1295
        %1332 = vst [vmem:[#allocation3 + $0x50] sm:$0xff] %v1300
        %1333 = vst [vmem:[#allocation3 + $0x58] sm:$0xff] %v1303
        %1334 = vst [vmem:[#allocation3 + $0x60] sm:$0xff] %v1308
        %1335 = vst [vmem:[#allocation3 + $0x68] sm:$0xff] %v1311
        %1336 = vst [vmem:[#allocation3 + $0x70] sm:$0xff] %v1316
        %1337 = vst [vmem:[#allocation3 + $0x78] sm:$0xff] %v1319
        %v1338 = vld [vmem:[%s921] sm:$0xf]
        %v1339 = vld [vmem:[%s921 + $0x4] sm:$0xf]
        %v1340 = vld [vmem:[%s921 + $0x8] sm:$0xf]
        %v1341 = vld [vmem:[%s921 + $0xc] sm:$0xf]
        %v1342 = vld [vmem:[%s921 + $0x10] sm:$0xf]
        %v1343 = vld [vmem:[%s921 + $0x14] sm:$0xf]
        %v1344 = vld [vmem:[%s921 + $0x18] sm:$0xf]
        %v1345 = vld [vmem:[%s921 + $0x1c] sm:$0xf]
        %v1346 = vld [vmem:[%s921 + $0x20] sm:$0xf]
        %v1347 = vld [vmem:[%s921 + $0x24] sm:$0xf]
        %v1348 = vld [vmem:[%s921 + $0x28] sm:$0xf]
        %v1349 = vld [vmem:[%s921 + $0x2c] sm:$0xf]
        %v1350 = vld [vmem:[%s921 + $0x30] sm:$0xf]
        %v1351 = vld [vmem:[%s921 + $0x34] sm:$0xf]
        %v1352 = vld [vmem:[%s921 + $0x38] sm:$0xf]
        %v1353 = vld [vmem:[%s921 + $0x3c] sm:$0xf]
        %s1354 = scalar_lea.vmem [#allocation9], 64
        %v1355 = vld [vmem:[%s1354] sm:$0xf]
        %v1356 = vld [vmem:[%s1354 + $0x4] sm:$0xf]
        %v1357 = vld [vmem:[%s1354 + $0x8] sm:$0xf]
        %v1358 = vld [vmem:[%s1354 + $0xc] sm:$0xf]
        %v1359 = vld [vmem:[%s1354 + $0x10] sm:$0xf]
        %v1360 = vld [vmem:[%s1354 + $0x14] sm:$0xf]
        %v1361 = vld [vmem:[%s1354 + $0x18] sm:$0xf]
        %v1362 = vld [vmem:[%s1354 + $0x1c] sm:$0xf]
        %v1363 = vld [vmem:[%s1354 + $0x20] sm:$0xf]
        %v1364 = vld [vmem:[%s1354 + $0x24] sm:$0xf]
        %v1365 = vld [vmem:[%s1354 + $0x28] sm:$0xf]
        %v1366 = vld [vmem:[%s1354 + $0x2c] sm:$0xf]
        %v1367 = vld [vmem:[%s1354 + $0x30] sm:$0xf]
        %v1368 = vld [vmem:[%s1354 + $0x34] sm:$0xf]
        %v1369 = vld [vmem:[%s1354 + $0x38] sm:$0xf]
        %v1370 = vld [vmem:[%s1354 + $0x3c] sm:$0xf]
        %v1387 = vunpack.c.l.b16 %v1338
        %v1388 = vunpack.c.l.b16 %v1339
        %v1389 = vunpack.c.l.b16 %v1340
        %v1390 = vunpack.c.l.b16 %v1341
        %v1391 = vunpack.c.l.b16 %v1342
        %v1392 = vunpack.c.l.b16 %v1343
        %v1393 = vunpack.c.l.b16 %v1344
        %v1394 = vunpack.c.l.b16 %v1345
        %v1395 = vunpack.c.l.b16 %v1346
        %v1396 = vunpack.c.l.b16 %v1347
        %v1397 = vunpack.c.l.b16 %v1348
        %v1398 = vunpack.c.l.b16 %v1349
        %v1399 = vunpack.c.l.b16 %v1350
        %v1400 = vunpack.c.l.b16 %v1351
        %v1401 = vunpack.c.l.b16 %v1352
        %v1402 = vunpack.c.l.b16 %v1353
        %v1403 = vpack.c.b16 %v1388, %v1387
        %v1404 = vpack.c.b16 %v1390, %v1389
        %v1405 = vpack.c.b16 %v1392, %v1391
        %v1406 = vpack.c.b16 %v1394, %v1393
        %v1407 = vpack.c.b16 %v1396, %v1395
        %v1408 = vpack.c.b16 %v1398, %v1397
        %v1409 = vpack.c.b16 %v1400, %v1399
        %v1410 = vpack.c.b16 %v1402, %v1401
        %v1435 = vunpack.c.l.b16 %v1355
        %v1436 = vunpack.c.l.b16 %v1356
        %v1437 = vunpack.c.l.b16 %v1357
        %v1438 = vunpack.c.l.b16 %v1358
        %v1439 = vunpack.c.l.b16 %v1359
        %v1440 = vunpack.c.l.b16 %v1360
        %v1441 = vunpack.c.l.b16 %v1361
        %v1442 = vunpack.c.l.b16 %v1362
        %v1443 = vunpack.c.l.b16 %v1363
        %v1444 = vunpack.c.l.b16 %v1364
        %v1445 = vunpack.c.l.b16 %v1365
        %v1446 = vunpack.c.l.b16 %v1366
        %v1447 = vunpack.c.l.b16 %v1367
        %v1448 = vunpack.c.l.b16 %v1368
        %v1449 = vunpack.c.l.b16 %v1369
        %v1450 = vunpack.c.l.b16 %v1370
        %v1451 = vpack.c.b16 %v1436, %v1435
        %v1452 = vpack.c.b16 %v1438, %v1437
        %v1453 = vpack.c.b16 %v1440, %v1439
        %v1454 = vpack.c.b16 %v1442, %v1441
        %v1455 = vpack.c.b16 %v1444, %v1443
        %v1456 = vpack.c.b16 %v1446, %v1445
        %v1457 = vpack.c.b16 %v1448, %v1447
        %v1458 = vpack.c.b16 %v1450, %v1449
        %1467 = vmatprep.subr.bf16.mxu0 0
        %1468 = vmatpush1.bf16.msra.mxu0 %v1458
        %1469 = vmatprep.subr.bf16.mxu0 0
        %1470 = vmatpush1.bf16.msra.mxu0 %v1457
        %1471 = vmatprep.subr.bf16.mxu0 0
        %1472 = vmatpush1.bf16.msra.mxu0 %v1456
        %1473 = vmatprep.subr.bf16.mxu0 0
        %1474 = vmatpush1.bf16.msra.mxu0 %v1455
        %1475 = vmatprep.subr.bf16.mxu0 0
        %1476 = vmatpush1.bf16.msra.mxu0 %v1454
        %1477 = vmatprep.subr.bf16.mxu0 0
        %1478 = vmatpush1.bf16.msra.mxu0 %v1453
        %1479 = vmatprep.subr.bf16.mxu0 0
        %1480 = vmatpush1.bf16.msra.mxu0 %v1452
        %1481 = vmatprep.subr.bf16.mxu0 0
        %1482 = vmatpush1.bf16.msra.mxu0 %v1451
        %1483 = vmatprep.subr.bf16.mxu0 0
        %1484 = vmatpush2.bf16.msra.mxu0 0
        %1485 = vmatprep.subr.bf16.mxu0 0
        %1486 = vmatpush2.bf16.msra.mxu0 0
        %1487 = vmatprep.subr.bf16.mxu0 0
        %1488 = vmatpush2.bf16.msra.mxu0 0
        %1489 = vmatprep.subr.bf16.mxu0 0
        %1490 = vmatpush2.bf16.msra.mxu0 0
        %1491 = vmatprep.subr.bf16.mxu0 0
        %1492 = vmatpush2.bf16.msra.mxu0 0
        %1493 = vmatprep.subr.bf16.mxu0 0
        %1494 = vmatpush2.bf16.msra.mxu0 0
        %1495 = vmatprep.subr.bf16.mxu0 0
        %1496 = vmatpush2.bf16.msra.mxu0 0
        %1497 = vmatprep.subr.bf16.mxu0 0
        %1498 = vmatpush2.bf16.msra.mxu0 0
        %1499 = vmatprep.mubr.bf16.mxu0 0
        %1500 = vmatmul.mubr.bf16.gmra.mxu0 %v1403
        %v1501 = vpop.f32.mrf.mxu0
        %v1502 = vadd.f32 0.0, %v1501
        %v1503 = vpop.f32.mrf.mxu0
        %v1504 = vpop.f32.mrf.mxu0
        %v1505 = vadd.f32 0.0, %v1504
        %v1506 = vpop.f32.mrf.mxu0
        %1507 = vmatprep.mubr.bf16.mxu0 0
        %1508 = vmatmul.mubr.bf16.gmra.mxu0 %v1404
        %v1509 = vpop.f32.mrf.mxu0
        %v1510 = vadd.f32 0.0, %v1509
        %v1511 = vpop.f32.mrf.mxu0
        %v1512 = vpop.f32.mrf.mxu0
        %v1513 = vadd.f32 0.0, %v1512
        %v1514 = vpop.f32.mrf.mxu0
        %1515 = vmatprep.mubr.bf16.mxu0 0
        %1516 = vmatmul.mubr.bf16.gmra.mxu0 %v1405
        %v1517 = vpop.f32.mrf.mxu0
        %v1518 = vadd.f32 0.0, %v1517
        %v1519 = vpop.f32.mrf.mxu0
        %v1520 = vpop.f32.mrf.mxu0
        %v1521 = vadd.f32 0.0, %v1520
        %v1522 = vpop.f32.mrf.mxu0
        %1523 = vmatprep.mubr.bf16.mxu0 0
        %1524 = vmatmul.mubr.bf16.gmra.mxu0 %v1406
        %v1525 = vpop.f32.mrf.mxu0
        %v1526 = vadd.f32 0.0, %v1525
        %v1527 = vpop.f32.mrf.mxu0
        %v1528 = vpop.f32.mrf.mxu0
        %v1529 = vadd.f32 0.0, %v1528
        %v1530 = vpop.f32.mrf.mxu0
        %1531 = vmatprep.mubr.bf16.mxu0 0
        %1532 = vmatmul.mubr.bf16.gmra.mxu0 %v1407
        %v1533 = vpop.f32.mrf.mxu0
        %v1534 = vadd.f32 0.0, %v1533
        %v1535 = vpop.f32.mrf.mxu0
        %v1536 = vpop.f32.mrf.mxu0
        %v1537 = vadd.f32 0.0, %v1536
        %v1538 = vpop.f32.mrf.mxu0
        %1539 = vmatprep.mubr.bf16.mxu0 0
        %1540 = vmatmul.mubr.bf16.gmra.mxu0 %v1408
        %v1541 = vpop.f32.mrf.mxu0
        %v1542 = vadd.f32 0.0, %v1541
        %v1543 = vpop.f32.mrf.mxu0
        %v1544 = vpop.f32.mrf.mxu0
        %v1545 = vadd.f32 0.0, %v1544
        %v1546 = vpop.f32.mrf.mxu0
        %1547 = vmatprep.mubr.bf16.mxu0 0
        %1548 = vmatmul.mubr.bf16.gmra.mxu0 %v1409
        %v1549 = vpop.f32.mrf.mxu0
        %v1550 = vadd.f32 0.0, %v1549
        %v1551 = vpop.f32.mrf.mxu0
        %v1552 = vpop.f32.mrf.mxu0
        %v1553 = vadd.f32 0.0, %v1552
        %v1554 = vpop.f32.mrf.mxu0
        %1555 = vmatprep.mubr.bf16.mxu0 0
        %1556 = vmatmul.mubr.bf16.gmra.mxu0 %v1410
        %v1557 = vpop.f32.mrf.mxu0
        %v1558 = vadd.f32 0.0, %v1557
        %v1559 = vpop.f32.mrf.mxu0
        %v1560 = vpop.f32.mrf.mxu0
        %v1561 = vadd.f32 0.0, %v1560
        %v1562 = vpop.f32.mrf.mxu0
        %1563 = vdwg.mxu0
        %v1564 = vld [vmem:[#allocation3] sm:$0xff]
        %v1565 = vld [vmem:[#allocation3 + $0x8] sm:$0xff]
        %v1566 = vld [vmem:[#allocation3 + $0x10] sm:$0xff]
        %v1567 = vld [vmem:[#allocation3 + $0x18] sm:$0xff]
        %v1568 = vld [vmem:[#allocation3 + $0x20] sm:$0xff]
        %v1569 = vld [vmem:[#allocation3 + $0x28] sm:$0xff]
        %v1570 = vld [vmem:[#allocation3 + $0x30] sm:$0xff]
        %v1571 = vld [vmem:[#allocation3 + $0x38] sm:$0xff]
        %v1572 = vld [vmem:[#allocation3 + $0x40] sm:$0xff]
        %v1573 = vld [vmem:[#allocation3 + $0x48] sm:$0xff]
        %v1574 = vld [vmem:[#allocation3 + $0x50] sm:$0xff]
        %v1575 = vld [vmem:[#allocation3 + $0x58] sm:$0xff]
        %v1576 = vld [vmem:[#allocation3 + $0x60] sm:$0xff]
        %v1577 = vld [vmem:[#allocation3 + $0x68] sm:$0xff]
        %v1578 = vld [vmem:[#allocation3 + $0x70] sm:$0xff]
        %v1579 = vld [vmem:[#allocation3 + $0x78] sm:$0xff]
        %v1580 = vadd.f32 %v1564, %v1502
        %v1581 = vadd.f32 %v1565, %v1505
        %v1582 = vadd.f32 %v1566, %v1510
        %v1583 = vadd.f32 %v1567, %v1513
        %v1584 = vadd.f32 %v1568, %v1518
        %v1585 = vadd.f32 %v1569, %v1521
        %v1586 = vadd.f32 %v1570, %v1526
        %v1587 = vadd.f32 %v1571, %v1529
        %v1588 = vadd.f32 %v1572, %v1534
        %v1589 = vadd.f32 %v1573, %v1537
        %v1590 = vadd.f32 %v1574, %v1542
        %v1591 = vadd.f32 %v1575, %v1545
        %v1592 = vadd.f32 %v1576, %v1550
        %v1593 = vadd.f32 %v1577, %v1553
        %v1594 = vadd.f32 %v1578, %v1558
        %v1595 = vadd.f32 %v1579, %v1561
        %1596 = vst [vmem:[#allocation3] sm:$0xff] %v1580
        %1597 = vst [vmem:[#allocation3 + $0x8] sm:$0xff] %v1581
        %1598 = vst [vmem:[#allocation3 + $0x10] sm:$0xff] %v1582
        %1599 = vst [vmem:[#allocation3 + $0x18] sm:$0xff] %v1583
        %1600 = vst [vmem:[#allocation3 + $0x20] sm:$0xff] %v1584
        %1601 = vst [vmem:[#allocation3 + $0x28] sm:$0xff] %v1585
        %1602 = vst [vmem:[#allocation3 + $0x30] sm:$0xff] %v1586
        %1603 = vst [vmem:[#allocation3 + $0x38] sm:$0xff] %v1587
        %1604 = vst [vmem:[#allocation3 + $0x40] sm:$0xff] %v1588
        %1605 = vst [vmem:[#allocation3 + $0x48] sm:$0xff] %v1589
        %1606 = vst [vmem:[#allocation3 + $0x50] sm:$0xff] %v1590
        %1607 = vst [vmem:[#allocation3 + $0x58] sm:$0xff] %v1591
        %1608 = vst [vmem:[#allocation3 + $0x60] sm:$0xff] %v1592
        %1609 = vst [vmem:[#allocation3 + $0x68] sm:$0xff] %v1593
        %1610 = vst [vmem:[#allocation3 + $0x70] sm:$0xff] %v1594
        %1611 = vst [vmem:[#allocation3 + $0x78] sm:$0xff] %v1595
        %v1612 = vld [vmem:[%s1055] sm:$0xf]
        %v1613 = vld [vmem:[%s1055 + $0x4] sm:$0xf]
        %v1614 = vld [vmem:[%s1055 + $0x8] sm:$0xf]
        %v1615 = vld [vmem:[%s1055 + $0xc] sm:$0xf]
        %v1616 = vld [vmem:[%s1055 + $0x10] sm:$0xf]
        %v1617 = vld [vmem:[%s1055 + $0x14] sm:$0xf]
        %v1618 = vld [vmem:[%s1055 + $0x18] sm:$0xf]
        %v1619 = vld [vmem:[%s1055 + $0x1c] sm:$0xf]
        %v1620 = vld [vmem:[%s1055 + $0x20] sm:$0xf]
        %v1621 = vld [vmem:[%s1055 + $0x24] sm:$0xf]
        %v1622 = vld [vmem:[%s1055 + $0x28] sm:$0xf]
        %v1623 = vld [vmem:[%s1055 + $0x2c] sm:$0xf]
        %v1624 = vld [vmem:[%s1055 + $0x30] sm:$0xf]
        %v1625 = vld [vmem:[%s1055 + $0x34] sm:$0xf]
        %v1626 = vld [vmem:[%s1055 + $0x38] sm:$0xf]
        %v1627 = vld [vmem:[%s1055 + $0x3c] sm:$0xf]
        %s1628 = scalar_lea.vmem [#allocation9], 128
        %v1629 = vld [vmem:[%s1628] sm:$0xf]
        %v1630 = vld [vmem:[%s1628 + $0x4] sm:$0xf]
        %v1631 = vld [vmem:[%s1628 + $0x8] sm:$0xf]
        %v1632 = vld [vmem:[%s1628 + $0xc] sm:$0xf]
        %v1633 = vld [vmem:[%s1628 + $0x10] sm:$0xf]
        %v1634 = vld [vmem:[%s1628 + $0x14] sm:$0xf]
        %v1635 = vld [vmem:[%s1628 + $0x18] sm:$0xf]
        %v1636 = vld [vmem:[%s1628 + $0x1c] sm:$0xf]
        %v1637 = vld [vmem:[%s1628 + $0x20] sm:$0xf]
        %v1638 = vld [vmem:[%s1628 + $0x24] sm:$0xf]
        %v1639 = vld [vmem:[%s1628 + $0x28] sm:$0xf]
        %v1640 = vld [vmem:[%s1628 + $0x2c] sm:$0xf]
        %v1641 = vld [vmem:[%s1628 + $0x30] sm:$0xf]
        %v1642 = vld [vmem:[%s1628 + $0x34] sm:$0xf]
        %v1643 = vld [vmem:[%s1628 + $0x38] sm:$0xf]
        %v1644 = vld [vmem:[%s1628 + $0x3c] sm:$0xf]
        %v1661 = vunpack.c.l.b16 %v1612
        %v1662 = vunpack.c.l.b16 %v1613
        %v1663 = vunpack.c.l.b16 %v1614
        %v1664 = vunpack.c.l.b16 %v1615
        %v1665 = vunpack.c.l.b16 %v1616
        %v1666 = vunpack.c.l.b16 %v1617
        %v1667 = vunpack.c.l.b16 %v1618
        %v1668 = vunpack.c.l.b16 %v1619
        %v1669 = vunpack.c.l.b16 %v1620
        %v1670 = vunpack.c.l.b16 %v1621
        %v1671 = vunpack.c.l.b16 %v1622
        %v1672 = vunpack.c.l.b16 %v1623
        %v1673 = vunpack.c.l.b16 %v1624
        %v1674 = vunpack.c.l.b16 %v1625
        %v1675 = vunpack.c.l.b16 %v1626
        %v1676 = vunpack.c.l.b16 %v1627
        %v1677 = vpack.c.b16 %v1662, %v1661
        %v1678 = vpack.c.b16 %v1664, %v1663
        %v1679 = vpack.c.b16 %v1666, %v1665
        %v1680 = vpack.c.b16 %v1668, %v1667
        %v1681 = vpack.c.b16 %v1670, %v1669
        %v1682 = vpack.c.b16 %v1672, %v1671
        %v1683 = vpack.c.b16 %v1674, %v1673
        %v1684 = vpack.c.b16 %v1676, %v1675
        %v1709 = vunpack.c.l.b16 %v1629
        %v1710 = vunpack.c.l.b16 %v1630
        %v1711 = vunpack.c.l.b16 %v1631
        %v1712 = vunpack.c.l.b16 %v1632
        %v1713 = vunpack.c.l.b16 %v1633
        %v1714 = vunpack.c.l.b16 %v1634
        %v1715 = vunpack.c.l.b16 %v1635
        %v1716 = vunpack.c.l.b16 %v1636
        %v1717 = vunpack.c.l.b16 %v1637
        %v1718 = vunpack.c.l.b16 %v1638
        %v1719 = vunpack.c.l.b16 %v1639
        %v1720 = vunpack.c.l.b16 %v1640
        %v1721 = vunpack.c.l.b16 %v1641
        %v1722 = vunpack.c.l.b16 %v1642
        %v1723 = vunpack.c.l.b16 %v1643
        %v1724 = vunpack.c.l.b16 %v1644
        %v1725 = vpack.c.b16 %v1710, %v1709
        %v1726 = vpack.c.b16 %v1712, %v1711
        %v1727 = vpack.c.b16 %v1714, %v1713
        %v1728 = vpack.c.b16 %v1716, %v1715
        %v1729 = vpack.c.b16 %v1718, %v1717
        %v1730 = vpack.c.b16 %v1720, %v1719
        %v1731 = vpack.c.b16 %v1722, %v1721
        %v1732 = vpack.c.b16 %v1724, %v1723
        %1741 = vmatprep.subr.bf16.mxu0 0
        %1742 = vmatpush1.bf16.msra.mxu0 %v1732
        %1743 = vmatprep.subr.bf16.mxu0 0
        %1744 = vmatpush1.bf16.msra.mxu0 %v1731
        %1745 = vmatprep.subr.bf16.mxu0 0
        %1746 = vmatpush1.bf16.msra.mxu0 %v1730
        %1747 = vmatprep.subr.bf16.mxu0 0
        %1748 = vmatpush1.bf16.msra.mxu0 %v1729
        %1749 = vmatprep.subr.bf16.mxu0 0
        %1750 = vmatpush1.bf16.msra.mxu0 %v1728
        %1751 = vmatprep.subr.bf16.mxu0 0
        %1752 = vmatpush1.bf16.msra.mxu0 %v1727
        %1753 = vmatprep.subr.bf16.mxu0 0
        %1754 = vmatpush1.bf16.msra.mxu0 %v1726
        %1755 = vmatprep.subr.bf16.mxu0 0
        %1756 = vmatpush1.bf16.msra.mxu0 %v1725
        %1757 = vmatprep.subr.bf16.mxu0 0
        %1758 = vmatpush2.bf16.msra.mxu0 0
        %1759 = vmatprep.subr.bf16.mxu0 0
        %1760 = vmatpush2.bf16.msra.mxu0 0
        %1761 = vmatprep.subr.bf16.mxu0 0
        %1762 = vmatpush2.bf16.msra.mxu0 0
        %1763 = vmatprep.subr.bf16.mxu0 0
        %1764 = vmatpush2.bf16.msra.mxu0 0
        %1765 = vmatprep.subr.bf16.mxu0 0
        %1766 = vmatpush2.bf16.msra.mxu0 0
        %1767 = vmatprep.subr.bf16.mxu0 0
        %1768 = vmatpush2.bf16.msra.mxu0 0
        %1769 = vmatprep.subr.bf16.mxu0 0
        %1770 = vmatpush2.bf16.msra.mxu0 0
        %1771 = vmatprep.subr.bf16.mxu0 0
        %1772 = vmatpush2.bf16.msra.mxu0 0
        %1773 = vmatprep.mubr.bf16.mxu0 0
        %1774 = vmatmul.mubr.bf16.gmra.mxu0 %v1677
        %v1775 = vpop.f32.mrf.mxu0
        %v1776 = vadd.f32 0.0, %v1775
        %v1777 = vpop.f32.mrf.mxu0
        %v1778 = vpop.f32.mrf.mxu0
        %v1779 = vadd.f32 0.0, %v1778
        %v1780 = vpop.f32.mrf.mxu0
        %1781 = vmatprep.mubr.bf16.mxu0 0
        %1782 = vmatmul.mubr.bf16.gmra.mxu0 %v1678
        %v1783 = vpop.f32.mrf.mxu0
        %v1784 = vadd.f32 0.0, %v1783
        %v1785 = vpop.f32.mrf.mxu0
        %v1786 = vpop.f32.mrf.mxu0
        %v1787 = vadd.f32 0.0, %v1786
        %v1788 = vpop.f32.mrf.mxu0
        %1789 = vmatprep.mubr.bf16.mxu0 0
        %1790 = vmatmul.mubr.bf16.gmra.mxu0 %v1679
        %v1791 = vpop.f32.mrf.mxu0
        %v1792 = vadd.f32 0.0, %v1791
        %v1793 = vpop.f32.mrf.mxu0
        %v1794 = vpop.f32.mrf.mxu0
        %v1795 = vadd.f32 0.0, %v1794
        %v1796 = vpop.f32.mrf.mxu0
        %1797 = vmatprep.mubr.bf16.mxu0 0
        %1798 = vmatmul.mubr.bf16.gmra.mxu0 %v1680
        %v1799 = vpop.f32.mrf.mxu0
        %v1800 = vadd.f32 0.0, %v1799
        %v1801 = vpop.f32.mrf.mxu0
        %v1802 = vpop.f32.mrf.mxu0
        %v1803 = vadd.f32 0.0, %v1802
        %v1804 = vpop.f32.mrf.mxu0
        %1805 = vmatprep.mubr.bf16.mxu0 0
        %1806 = vmatmul.mubr.bf16.gmra.mxu0 %v1681
        %v1807 = vpop.f32.mrf.mxu0
        %v1808 = vadd.f32 0.0, %v1807
        %v1809 = vpop.f32.mrf.mxu0
        %v1810 = vpop.f32.mrf.mxu0
        %v1811 = vadd.f32 0.0, %v1810
        %v1812 = vpop.f32.mrf.mxu0
        %1813 = vmatprep.mubr.bf16.mxu0 0
        %1814 = vmatmul.mubr.bf16.gmra.mxu0 %v1682
        %v1815 = vpop.f32.mrf.mxu0
        %v1816 = vadd.f32 0.0, %v1815
        %v1817 = vpop.f32.mrf.mxu0
        %v1818 = vpop.f32.mrf.mxu0
        %v1819 = vadd.f32 0.0, %v1818
        %v1820 = vpop.f32.mrf.mxu0
        %1821 = vmatprep.mubr.bf16.mxu0 0
        %1822 = vmatmul.mubr.bf16.gmra.mxu0 %v1683
        %v1823 = vpop.f32.mrf.mxu0
        %v1824 = vadd.f32 0.0, %v1823
        %v1825 = vpop.f32.mrf.mxu0
        %v1826 = vpop.f32.mrf.mxu0
        %v1827 = vadd.f32 0.0, %v1826
        %v1828 = vpop.f32.mrf.mxu0
        %1829 = vmatprep.mubr.bf16.mxu0 0
        %1830 = vmatmul.mubr.bf16.gmra.mxu0 %v1684
        %v1831 = vpop.f32.mrf.mxu0
        %v1832 = vadd.f32 0.0, %v1831
        %v1833 = vpop.f32.mrf.mxu0
        %v1834 = vpop.f32.mrf.mxu0
        %v1835 = vadd.f32 0.0, %v1834
        %v1836 = vpop.f32.mrf.mxu0
        %1837 = vdwg.mxu0
        %v1838 = vld [vmem:[#allocation3] sm:$0xff]
        %v1839 = vld [vmem:[#allocation3 + $0x8] sm:$0xff]
        %v1840 = vld [vmem:[#allocation3 + $0x10] sm:$0xff]
        %v1841 = vld [vmem:[#allocation3 + $0x18] sm:$0xff]
        %v1842 = vld [vmem:[#allocation3 + $0x20] sm:$0xff]
        %v1843 = vld [vmem:[#allocation3 + $0x28] sm:$0xff]
        %v1844 = vld [vmem:[#allocation3 + $0x30] sm:$0xff]
        %v1845 = vld [vmem:[#allocation3 + $0x38] sm:$0xff]
        %v1846 = vld [vmem:[#allocation3 + $0x40] sm:$0xff]
        %v1847 = vld [vmem:[#allocation3 + $0x48] sm:$0xff]
        %v1848 = vld [vmem:[#allocation3 + $0x50] sm:$0xff]
        %v1849 = vld [vmem:[#allocation3 + $0x58] sm:$0xff]
        %v1850 = vld [vmem:[#allocation3 + $0x60] sm:$0xff]
        %v1851 = vld [vmem:[#allocation3 + $0x68] sm:$0xff]
        %v1852 = vld [vmem:[#allocation3 + $0x70] sm:$0xff]
        %v1853 = vld [vmem:[#allocation3 + $0x78] sm:$0xff]
        %v1854 = vadd.f32 %v1838, %v1776
        %v1855 = vadd.f32 %v1839, %v1779
        %v1856 = vadd.f32 %v1840, %v1784
        %v1857 = vadd.f32 %v1841, %v1787
        %v1858 = vadd.f32 %v1842, %v1792
        %v1859 = vadd.f32 %v1843, %v1795
        %v1860 = vadd.f32 %v1844, %v1800
        %v1861 = vadd.f32 %v1845, %v1803
        %v1862 = vadd.f32 %v1846, %v1808
        %v1863 = vadd.f32 %v1847, %v1811
        %v1864 = vadd.f32 %v1848, %v1816
        %v1865 = vadd.f32 %v1849, %v1819
        %v1866 = vadd.f32 %v1850, %v1824
        %v1867 = vadd.f32 %v1851, %v1827
        %v1868 = vadd.f32 %v1852, %v1832
        %v1869 = vadd.f32 %v1853, %v1835
        %1870 = vst [vmem:[#allocation3] sm:$0xff] %v1854
        %1871 = vst [vmem:[#allocation3 + $0x8] sm:$0xff] %v1855
        %1872 = vst [vmem:[#allocation3 + $0x10] sm:$0xff] %v1856
        %1873 = vst [vmem:[#allocation3 + $0x18] sm:$0xff] %v1857
        %1874 = vst [vmem:[#allocation3 + $0x20] sm:$0xff] %v1858
        %1875 = vst [vmem:[#allocation3 + $0x28] sm:$0xff] %v1859
        %1876 = vst [vmem:[#allocation3 + $0x30] sm:$0xff] %v1860
        %1877 = vst [vmem:[#allocation3 + $0x38] sm:$0xff] %v1861
        %1878 = vst [vmem:[#allocation3 + $0x40] sm:$0xff] %v1862
        %1879 = vst [vmem:[#allocation3 + $0x48] sm:$0xff] %v1863
        %1880 = vst [vmem:[#allocation3 + $0x50] sm:$0xff] %v1864
        %1881 = vst [vmem:[#allocation3 + $0x58] sm:$0xff] %v1865
        %1882 = vst [vmem:[#allocation3 + $0x60] sm:$0xff] %v1866
        %1883 = vst [vmem:[#allocation3 + $0x68] sm:$0xff] %v1867
        %1884 = vst [vmem:[#allocation3 + $0x70] sm:$0xff] %v1868
        %1885 = vst [vmem:[#allocation3 + $0x78] sm:$0xff] %v1869
        %s1886 = scalar_lea.vmem [#allocation2], 8
        %v1887 = vld [vmem:[%s1886] sm:$0xf]
        %v1888 = vld [vmem:[%s1886 + $0x4] sm:$0xf]
        %v1889 = vld [vmem:[%s1886 + $0x8] sm:$0xf]
        %v1890 = vld [vmem:[%s1886 + $0xc] sm:$0xf]
        %v1891 = vld [vmem:[%s1886 + $0x10] sm:$0xf]
        %v1892 = vld [vmem:[%s1886 + $0x14] sm:$0xf]
        %v1893 = vld [vmem:[%s1886 + $0x18] sm:$0xf]
        %v1894 = vld [vmem:[%s1886 + $0x1c] sm:$0xf]
        %v1895 = vld [vmem:[%s1886 + $0x20] sm:$0xf]
        %v1896 = vld [vmem:[%s1886 + $0x24] sm:$0xf]
        %v1897 = vld [vmem:[%s1886 + $0x28] sm:$0xf]
        %v1898 = vld [vmem:[%s1886 + $0x2c] sm:$0xf]
        %v1899 = vld [vmem:[%s1886 + $0x30] sm:$0xf]
        %v1900 = vld [vmem:[%s1886 + $0x34] sm:$0xf]
        %v1901 = vld [vmem:[%s1886 + $0x38] sm:$0xf]
        %v1902 = vld [vmem:[%s1886 + $0x3c] sm:$0xf]
        %s1903 = scalar_lea.vmem [#allocation9], 192
        %v1904 = vld [vmem:[%s1903] sm:$0xf]
        %v1905 = vld [vmem:[%s1903 + $0x4] sm:$0xf]
        %v1906 = vld [vmem:[%s1903 + $0x8] sm:$0xf]
        %v1907 = vld [vmem:[%s1903 + $0xc] sm:$0xf]
        %v1908 = vld [vmem:[%s1903 + $0x10] sm:$0xf]
        %v1909 = vld [vmem:[%s1903 + $0x14] sm:$0xf]
        %v1910 = vld [vmem:[%s1903 + $0x18] sm:$0xf]
        %v1911 = vld [vmem:[%s1903 + $0x1c] sm:$0xf]
        %v1912 = vld [vmem:[%s1903 + $0x20] sm:$0xf]
        %v1913 = vld [vmem:[%s1903 + $0x24] sm:$0xf]
        %v1914 = vld [vmem:[%s1903 + $0x28] sm:$0xf]
        %v1915 = vld [vmem:[%s1903 + $0x2c] sm:$0xf]
        %v1916 = vld [vmem:[%s1903 + $0x30] sm:$0xf]
        %v1917 = vld [vmem:[%s1903 + $0x34] sm:$0xf]
        %v1918 = vld [vmem:[%s1903 + $0x38] sm:$0xf]
        %v1919 = vld [vmem:[%s1903 + $0x3c] sm:$0xf]
        %v1936 = vunpack.c.l.b16 %v1887
        %v1937 = vunpack.c.l.b16 %v1888
        %v1938 = vunpack.c.l.b16 %v1889
        %v1939 = vunpack.c.l.b16 %v1890
        %v1940 = vunpack.c.l.b16 %v1891
        %v1941 = vunpack.c.l.b16 %v1892
        %v1942 = vunpack.c.l.b16 %v1893
        %v1943 = vunpack.c.l.b16 %v1894
        %v1944 = vunpack.c.l.b16 %v1895
        %v1945 = vunpack.c.l.b16 %v1896
        %v1946 = vunpack.c.l.b16 %v1897
        %v1947 = vunpack.c.l.b16 %v1898
        %v1948 = vunpack.c.l.b16 %v1899
        %v1949 = vunpack.c.l.b16 %v1900
        %v1950 = vunpack.c.l.b16 %v1901
        %v1951 = vunpack.c.l.b16 %v1902
        %v1952 = vpack.c.b16 %v1937, %v1936
        %v1953 = vpack.c.b16 %v1939, %v1938
        %v1954 = vpack.c.b16 %v1941, %v1940
        %v1955 = vpack.c.b16 %v1943, %v1942
        %v1956 = vpack.c.b16 %v1945, %v1944
        %v1957 = vpack.c.b16 %v1947, %v1946
        %v1958 = vpack.c.b16 %v1949, %v1948
        %v1959 = vpack.c.b16 %v1951, %v1950
        %v1984 = vunpack.c.l.b16 %v1904
        %v1985 = vunpack.c.l.b16 %v1905
        %v1986 = vunpack.c.l.b16 %v1906
        %v1987 = vunpack.c.l.b16 %v1907
        %v1988 = vunpack.c.l.b16 %v1908
        %v1989 = vunpack.c.l.b16 %v1909
        %v1990 = vunpack.c.l.b16 %v1910
        %v1991 = vunpack.c.l.b16 %v1911
        %v1992 = vunpack.c.l.b16 %v1912
        %v1993 = vunpack.c.l.b16 %v1913
        %v1994 = vunpack.c.l.b16 %v1914
        %v1995 = vunpack.c.l.b16 %v1915
        %v1996 = vunpack.c.l.b16 %v1916
        %v1997 = vunpack.c.l.b16 %v1917
        %v1998 = vunpack.c.l.b16 %v1918
        %v1999 = vunpack.c.l.b16 %v1919
        %v2000 = vpack.c.b16 %v1985, %v1984
        %v2001 = vpack.c.b16 %v1987, %v1986
        %v2002 = vpack.c.b16 %v1989, %v1988
        %v2003 = vpack.c.b16 %v1991, %v1990
        %v2004 = vpack.c.b16 %v1993, %v1992
        %v2005 = vpack.c.b16 %v1995, %v1994
        %v2006 = vpack.c.b16 %v1997, %v1996
        %v2007 = vpack.c.b16 %v1999, %v1998
        %2016 = vmatprep.subr.bf16.mxu0 0
        %2017 = vmatpush1.bf16.msra.mxu0 %v2007
        %2018 = vmatprep.subr.bf16.mxu0 0
        %2019 = vmatpush1.bf16.msra.mxu0 %v2006
        %2020 = vmatprep.subr.bf16.mxu0 0
        %2021 = vmatpush1.bf16.msra.mxu0 %v2005
        %2022 = vmatprep.subr.bf16.mxu0 0
        %2023 = vmatpush1.bf16.msra.mxu0 %v2004
        %2024 = vmatprep.subr.bf16.mxu0 0
        %2025 = vmatpush1.bf16.msra.mxu0 %v2003
        %2026 = vmatprep.subr.bf16.mxu0 0
        %2027 = vmatpush1.bf16.msra.mxu0 %v2002
        %2028 = vmatprep.subr.bf16.mxu0 0
        %2029 = vmatpush1.bf16.msra.mxu0 %v2001
        %2030 = vmatprep.subr.bf16.mxu0 0
        %2031 = vmatpush1.bf16.msra.mxu0 %v2000
        %2032 = vmatprep.subr.bf16.mxu0 0
        %2033 = vmatpush2.bf16.msra.mxu0 0
        %2034 = vmatprep.subr.bf16.mxu0 0
        %2035 = vmatpush2.bf16.msra.mxu0 0
        %2036 = vmatprep.subr.bf16.mxu0 0
        %2037 = vmatpush2.bf16.msra.mxu0 0
        %2038 = vmatprep.subr.bf16.mxu0 0
        %2039 = vmatpush2.bf16.msra.mxu0 0
        %2040 = vmatprep.subr.bf16.mxu0 0
        %2041 = vmatpush2.bf16.msra.mxu0 0
        %2042 = vmatprep.subr.bf16.mxu0 0
        %2043 = vmatpush2.bf16.msra.mxu0 0
        %2044 = vmatprep.subr.bf16.mxu0 0
        %2045 = vmatpush2.bf16.msra.mxu0 0
        %2046 = vmatprep.subr.bf16.mxu0 0
        %2047 = vmatpush2.bf16.msra.mxu0 0
        %2048 = vmatprep.mubr.bf16.mxu0 0
        %2049 = vmatmul.mubr.bf16.gmra.mxu0 %v1952
        %v2050 = vpop.f32.mrf.mxu0
        %v2051 = vadd.f32 0.0, %v2050
        %v2052 = vpop.f32.mrf.mxu0
        %v2053 = vpop.f32.mrf.mxu0
        %v2054 = vadd.f32 0.0, %v2053
        %v2055 = vpop.f32.mrf.mxu0
        %2056 = vmatprep.mubr.bf16.mxu0 0
        %2057 = vmatmul.mubr.bf16.gmra.mxu0 %v1953
        %v2058 = vpop.f32.mrf.mxu0
        %v2059 = vadd.f32 0.0, %v2058
        %v2060 = vpop.f32.mrf.mxu0
        %v2061 = vpop.f32.mrf.mxu0
        %v2062 = vadd.f32 0.0, %v2061
        %v2063 = vpop.f32.mrf.mxu0
        %2064 = vmatprep.mubr.bf16.mxu0 0
        %2065 = vmatmul.mubr.bf16.gmra.mxu0 %v1954
        %v2066 = vpop.f32.mrf.mxu0
        %v2067 = vadd.f32 0.0, %v2066
        %v2068 = vpop.f32.mrf.mxu0
        %v2069 = vpop.f32.mrf.mxu0
        %v2070 = vadd.f32 0.0, %v2069
        %v2071 = vpop.f32.mrf.mxu0
        %2072 = vmatprep.mubr.bf16.mxu0 0
        %2073 = vmatmul.mubr.bf16.gmra.mxu0 %v1955
        %v2074 = vpop.f32.mrf.mxu0
        %v2075 = vadd.f32 0.0, %v2074
        %v2076 = vpop.f32.mrf.mxu0
        %v2077 = vpop.f32.mrf.mxu0
        %v2078 = vadd.f32 0.0, %v2077
        %v2079 = vpop.f32.mrf.mxu0
        %2080 = vmatprep.mubr.bf16.mxu0 0
        %2081 = vmatmul.mubr.bf16.gmra.mxu0 %v1956
        %v2082 = vpop.f32.mrf.mxu0
        %v2083 = vadd.f32 0.0, %v2082
        %v2084 = vpop.f32.mrf.mxu0
        %v2085 = vpop.f32.mrf.mxu0
        %v2086 = vadd.f32 0.0, %v2085
        %v2087 = vpop.f32.mrf.mxu0
        %2088 = vmatprep.mubr.bf16.mxu0 0
        %2089 = vmatmul.mubr.bf16.gmra.mxu0 %v1957
        %v2090 = vpop.f32.mrf.mxu0
        %v2091 = vadd.f32 0.0, %v2090
        %v2092 = vpop.f32.mrf.mxu0
        %v2093 = vpop.f32.mrf.mxu0
        %v2094 = vadd.f32 0.0, %v2093
        %v2095 = vpop.f32.mrf.mxu0
        %2096 = vmatprep.mubr.bf16.mxu0 0
        %2097 = vmatmul.mubr.bf16.gmra.mxu0 %v1958
        %v2098 = vpop.f32.mrf.mxu0
        %v2099 = vadd.f32 0.0, %v2098
        %v2100 = vpop.f32.mrf.mxu0
        %v2101 = vpop.f32.mrf.mxu0
        %v2102 = vadd.f32 0.0, %v2101
        %v2103 = vpop.f32.mrf.mxu0
        %2104 = vmatprep.mubr.bf16.mxu0 0
        %2105 = vmatmul.mubr.bf16.gmra.mxu0 %v1959
        %v2106 = vpop.f32.mrf.mxu0
        %v2107 = vadd.f32 0.0, %v2106
        %v2108 = vpop.f32.mrf.mxu0
        %v2109 = vpop.f32.mrf.mxu0
        %v2110 = vadd.f32 0.0, %v2109
        %v2111 = vpop.f32.mrf.mxu0
        %2112 = vdwg.mxu0
        %v2113 = vld [vmem:[#allocation3] sm:$0xff]
        %v2114 = vld [vmem:[#allocation3 + $0x8] sm:$0xff]
        %v2115 = vld [vmem:[#allocation3 + $0x10] sm:$0xff]
        %v2116 = vld [vmem:[#allocation3 + $0x18] sm:$0xff]
        %v2117 = vld [vmem:[#allocation3 + $0x20] sm:$0xff]
        %v2118 = vld [vmem:[#allocation3 + $0x28] sm:$0xff]
        %v2119 = vld [vmem:[#allocation3 + $0x30] sm:$0xff]
        %v2120 = vld [vmem:[#allocation3 + $0x38] sm:$0xff]
        %v2121 = vld [vmem:[#allocation3 + $0x40] sm:$0xff]
        %v2122 = vld [vmem:[#allocation3 + $0x48] sm:$0xff]
        %v2123 = vld [vmem:[#allocation3 + $0x50] sm:$0xff]
        %v2124 = vld [vmem:[#allocation3 + $0x58] sm:$0xff]
        %v2125 = vld [vmem:[#allocation3 + $0x60] sm:$0xff]
        %v2126 = vld [vmem:[#allocation3 + $0x68] sm:$0xff]
        %v2127 = vld [vmem:[#allocation3 + $0x70] sm:$0xff]
        %v2128 = vld [vmem:[#allocation3 + $0x78] sm:$0xff]
        %v2129 = vadd.f32 %v2113, %v2051
        %v2130 = vadd.f32 %v2114, %v2054
        %v2131 = vadd.f32 %v2115, %v2059
        %v2132 = vadd.f32 %v2116, %v2062
        %v2133 = vadd.f32 %v2117, %v2067
        %v2134 = vadd.f32 %v2118, %v2070
        %v2135 = vadd.f32 %v2119, %v2075
        %v2136 = vadd.f32 %v2120, %v2078
        %v2137 = vadd.f32 %v2121, %v2083
        %v2138 = vadd.f32 %v2122, %v2086
        %v2139 = vadd.f32 %v2123, %v2091
        %v2140 = vadd.f32 %v2124, %v2094
        %v2141 = vadd.f32 %v2125, %v2099
        %v2142 = vadd.f32 %v2126, %v2102
        %v2143 = vadd.f32 %v2127, %v2107
        %v2144 = vadd.f32 %v2128, %v2110
        %2145 = vst [vmem:[#allocation3] sm:$0xff] %v2129
        %2146 = vst [vmem:[#allocation3 + $0x8] sm:$0xff] %v2130
        %2147 = vst [vmem:[#allocation3 + $0x10] sm:$0xff] %v2131
        %2148 = vst [vmem:[#allocation3 + $0x18] sm:$0xff] %v2132
        %2149 = vst [vmem:[#allocation3 + $0x20] sm:$0xff] %v2133
        %2150 = vst [vmem:[#allocation3 + $0x28] sm:$0xff] %v2134
        %2151 = vst [vmem:[#allocation3 + $0x30] sm:$0xff] %v2135
        %2152 = vst [vmem:[#allocation3 + $0x38] sm:$0xff] %v2136
        %2153 = vst [vmem:[#allocation3 + $0x40] sm:$0xff] %v2137
        %2154 = vst [vmem:[#allocation3 + $0x48] sm:$0xff] %v2138
        %2155 = vst [vmem:[#allocation3 + $0x50] sm:$0xff] %v2139
        %2156 = vst [vmem:[#allocation3 + $0x58] sm:$0xff] %v2140
        %2157 = vst [vmem:[#allocation3 + $0x60] sm:$0xff] %v2141
        %2158 = vst [vmem:[#allocation3 + $0x68] sm:$0xff] %v2142
        %2159 = vst [vmem:[#allocation3 + $0x70] sm:$0xff] %v2143
        %2160 = vst [vmem:[#allocation3 + $0x78] sm:$0xff] %v2144
        %s2161 = scalar_lea.vmem [#allocation2], 88
        %v2162 = vld [vmem:[%s2161] sm:$0xf]
        %v2163 = vld [vmem:[%s2161 + $0x4] sm:$0xf]
        %v2164 = vld [vmem:[%s2161 + $0x8] sm:$0xf]
        %v2165 = vld [vmem:[%s2161 + $0xc] sm:$0xf]
        %v2166 = vld [vmem:[%s2161 + $0x10] sm:$0xf]
        %v2167 = vld [vmem:[%s2161 + $0x14] sm:$0xf]
        %v2168 = vld [vmem:[%s2161 + $0x18] sm:$0xf]
        %v2169 = vld [vmem:[%s2161 + $0x1c] sm:$0xf]
        %v2170 = vld [vmem:[%s2161 + $0x20] sm:$0xf]
        %v2171 = vld [vmem:[%s2161 + $0x24] sm:$0xf]
        %v2172 = vld [vmem:[%s2161 + $0x28] sm:$0xf]
        %v2173 = vld [vmem:[%s2161 + $0x2c] sm:$0xf]
        %v2174 = vld [vmem:[%s2161 + $0x30] sm:$0xf]
        %v2175 = vld [vmem:[%s2161 + $0x34] sm:$0xf]
        %v2176 = vld [vmem:[%s2161 + $0x38] sm:$0xf]
        %v2177 = vld [vmem:[%s2161 + $0x3c] sm:$0xf]
        %s2178 = scalar_lea.vmem [#allocation9], 256
        %v2179 = vld [vmem:[%s2178] sm:$0xf]
        %v2180 = vld [vmem:[%s2178 + $0x4] sm:$0xf]
        %v2181 = vld [vmem:[%s2178 + $0x8] sm:$0xf]
        %v2182 = vld [vmem:[%s2178 + $0xc] sm:$0xf]
        %v2183 = vld [vmem:[%s2178 + $0x10] sm:$0xf]
        %v2184 = vld [vmem:[%s2178 + $0x14] sm:$0xf]
        %v2185 = vld [vmem:[%s2178 + $0x18] sm:$0xf]
        %v2186 = vld [vmem:[%s2178 + $0x1c] sm:$0xf]
        %v2187 = vld [vmem:[%s2178 + $0x20] sm:$0xf]
        %v2188 = vld [vmem:[%s2178 + $0x24] sm:$0xf]
        %v2189 = vld [vmem:[%s2178 + $0x28] sm:$0xf]
        %v2190 = vld [vmem:[%s2178 + $0x2c] sm:$0xf]
        %v2191 = vld [vmem:[%s2178 + $0x30] sm:$0xf]
        %v2192 = vld [vmem:[%s2178 + $0x34] sm:$0xf]
        %v2193 = vld [vmem:[%s2178 + $0x38] sm:$0xf]
        %v2194 = vld [vmem:[%s2178 + $0x3c] sm:$0xf]
        %v2211 = vunpack.c.l.b16 %v2162
        %v2212 = vunpack.c.l.b16 %v2163
        %v2213 = vunpack.c.l.b16 %v2164
        %v2214 = vunpack.c.l.b16 %v2165
        %v2215 = vunpack.c.l.b16 %v2166
        %v2216 = vunpack.c.l.b16 %v2167
        %v2217 = vunpack.c.l.b16 %v2168
        %v2218 = vunpack.c.l.b16 %v2169
        %v2219 = vunpack.c.l.b16 %v2170
        %v2220 = vunpack.c.l.b16 %v2171
        %v2221 = vunpack.c.l.b16 %v2172
        %v2222 = vunpack.c.l.b16 %v2173
        %v2223 = vunpack.c.l.b16 %v2174
        %v2224 = vunpack.c.l.b16 %v2175
        %v2225 = vunpack.c.l.b16 %v2176
        %v2226 = vunpack.c.l.b16 %v2177
        %v2227 = vpack.c.b16 %v2212, %v2211
        %v2228 = vpack.c.b16 %v2214, %v2213
        %v2229 = vpack.c.b16 %v2216, %v2215
        %v2230 = vpack.c.b16 %v2218, %v2217
        %v2231 = vpack.c.b16 %v2220, %v2219
        %v2232 = vpack.c.b16 %v2222, %v2221
        %v2233 = vpack.c.b16 %v2224, %v2223
        %v2234 = vpack.c.b16 %v2226, %v2225
        %v2259 = vunpack.c.l.b16 %v2179
        %v2260 = vunpack.c.l.b16 %v2180
        %v2261 = vunpack.c.l.b16 %v2181
        %v2262 = vunpack.c.l.b16 %v2182
        %v2263 = vunpack.c.l.b16 %v2183
        %v2264 = vunpack.c.l.b16 %v2184
        %v2265 = vunpack.c.l.b16 %v2185
        %v2266 = vunpack.c.l.b16 %v2186
        %v2267 = vunpack.c.l.b16 %v2187
        %v2268 = vunpack.c.l.b16 %v2188
        %v2269 = vunpack.c.l.b16 %v2189
        %v2270 = vunpack.c.l.b16 %v2190
        %v2271 = vunpack.c.l.b16 %v2191
        %v2272 = vunpack.c.l.b16 %v2192
        %v2273 = vunpack.c.l.b16 %v2193
        %v2274 = vunpack.c.l.b16 %v2194
        %v2275 = vpack.c.b16 %v2260, %v2259
        %v2276 = vpack.c.b16 %v2262, %v2261
        %v2277 = vpack.c.b16 %v2264, %v2263
        %v2278 = vpack.c.b16 %v2266, %v2265
        %v2279 = vpack.c.b16 %v2268, %v2267
        %v2280 = vpack.c.b16 %v2270, %v2269
        %v2281 = vpack.c.b16 %v2272, %v2271
        %v2282 = vpack.c.b16 %v2274, %v2273
        %2291 = vmatprep.subr.bf16.mxu0 0
        %2292 = vmatpush1.bf16.msra.mxu0 %v2282
        %2293 = vmatprep.subr.bf16.mxu0 0
        %2294 = vmatpush1.bf16.msra.mxu0 %v2281
        %2295 = vmatprep.subr.bf16.mxu0 0
        %2296 = vmatpush1.bf16.msra.mxu0 %v2280
        %2297 = vmatprep.subr.bf16.mxu0 0
        %2298 = vmatpush1.bf16.msra.mxu0 %v2279
        %2299 = vmatprep.subr.bf16.mxu0 0
        %2300 = vmatpush1.bf16.msra.mxu0 %v2278
        %2301 = vmatprep.subr.bf16.mxu0 0
        %2302 = vmatpush1.bf16.msra.mxu0 %v2277
        %2303 = vmatprep.subr.bf16.mxu0 0
        %2304 = vmatpush1.bf16.msra.mxu0 %v2276
        %2305 = vmatprep.subr.bf16.mxu0 0
        %2306 = vmatpush1.bf16.msra.mxu0 %v2275
        %2307 = vmatprep.subr.bf16.mxu0 0
        %2308 = vmatpush2.bf16.msra.mxu0 0
        %2309 = vmatprep.subr.bf16.mxu0 0
        %2310 = vmatpush2.bf16.msra.mxu0 0
        %2311 = vmatprep.subr.bf16.mxu0 0
        %2312 = vmatpush2.bf16.msra.mxu0 0
        %2313 = vmatprep.subr.bf16.mxu0 0
        %2314 = vmatpush2.bf16.msra.mxu0 0
        %2315 = vmatprep.subr.bf16.mxu0 0
        %2316 = vmatpush2.bf16.msra.mxu0 0
        %2317 = vmatprep.subr.bf16.mxu0 0
        %2318 = vmatpush2.bf16.msra.mxu0 0
        %2319 = vmatprep.subr.bf16.mxu0 0
        %2320 = vmatpush2.bf16.msra.mxu0 0
        %2321 = vmatprep.subr.bf16.mxu0 0
        %2322 = vmatpush2.bf16.msra.mxu0 0
        %2323 = vmatprep.mubr.bf16.mxu0 0
        %2324 = vmatmul.mubr.bf16.gmra.mxu0 %v2227
        %v2325 = vpop.f32.mrf.mxu0
        %v2326 = vadd.f32 0.0, %v2325
        %v2327 = vpop.f32.mrf.mxu0
        %v2328 = vpop.f32.mrf.mxu0
        %v2329 = vadd.f32 0.0, %v2328
        %v2330 = vpop.f32.mrf.mxu0
        %2331 = vmatprep.mubr.bf16.mxu0 0
        %2332 = vmatmul.mubr.bf16.gmra.mxu0 %v2228
        %v2333 = vpop.f32.mrf.mxu0
        %v2334 = vadd.f32 0.0, %v2333
        %v2335 = vpop.f32.mrf.mxu0
        %v2336 = vpop.f32.mrf.mxu0
        %v2337 = vadd.f32 0.0, %v2336
        %v2338 = vpop.f32.mrf.mxu0
        %2339 = vmatprep.mubr.bf16.mxu0 0
        %2340 = vmatmul.mubr.bf16.gmra.mxu0 %v2229
        %v2341 = vpop.f32.mrf.mxu0
        %v2342 = vadd.f32 0.0, %v2341
        %v2343 = vpop.f32.mrf.mxu0
        %v2344 = vpop.f32.mrf.mxu0
        %v2345 = vadd.f32 0.0, %v2344
        %v2346 = vpop.f32.mrf.mxu0
        %2347 = vmatprep.mubr.bf16.mxu0 0
        %2348 = vmatmul.mubr.bf16.gmra.mxu0 %v2230
        %v2349 = vpop.f32.mrf.mxu0
        %v2350 = vadd.f32 0.0, %v2349
        %v2351 = vpop.f32.mrf.mxu0
        %v2352 = vpop.f32.mrf.mxu0
        %v2353 = vadd.f32 0.0, %v2352
        %v2354 = vpop.f32.mrf.mxu0
        %2355 = vmatprep.mubr.bf16.mxu0 0
        %2356 = vmatmul.mubr.bf16.gmra.mxu0 %v2231
        %v2357 = vpop.f32.mrf.mxu0
        %v2358 = vadd.f32 0.0, %v2357
        %v2359 = vpop.f32.mrf.mxu0
        %v2360 = vpop.f32.mrf.mxu0
        %v2361 = vadd.f32 0.0, %v2360
        %v2362 = vpop.f32.mrf.mxu0
        %2363 = vmatprep.mubr.bf16.mxu0 0
        %2364 = vmatmul.mubr.bf16.gmra.mxu0 %v2232
        %v2365 = vpop.f32.mrf.mxu0
        %v2366 = vadd.f32 0.0, %v2365
        %v2367 = vpop.f32.mrf.mxu0
        %v2368 = vpop.f32.mrf.mxu0
        %v2369 = vadd.f32 0.0, %v2368
        %v2370 = vpop.f32.mrf.mxu0
        %2371 = vmatprep.mubr.bf16.mxu0 0
        %2372 = vmatmul.mubr.bf16.gmra.mxu0 %v2233
        %v2373 = vpop.f32.mrf.mxu0
        %v2374 = vadd.f32 0.0, %v2373
        %v2375 = vpop.f32.mrf.mxu0
        %v2376 = vpop.f32.mrf.mxu0
        %v2377 = vadd.f32 0.0, %v2376
        %v2378 = vpop.f32.mrf.mxu0
        %2379 = vmatprep.mubr.bf16.mxu0 0
        %2380 = vmatmul.mubr.bf16.gmra.mxu0 %v2234
        %v2381 = vpop.f32.mrf.mxu0
        %v2382 = vadd.f32 0.0, %v2381
        %v2383 = vpop.f32.mrf.mxu0
        %v2384 = vpop.f32.mrf.mxu0
        %v2385 = vadd.f32 0.0, %v2384
        %v2386 = vpop.f32.mrf.mxu0
        %2387 = vdwg.mxu0
        %v2388 = vld [vmem:[#allocation3] sm:$0xff]
        %v2389 = vld [vmem:[#allocation3 + $0x8] sm:$0xff]
        %v2390 = vld [vmem:[#allocation3 + $0x10] sm:$0xff]
        %v2391 = vld [vmem:[#allocation3 + $0x18] sm:$0xff]
        %v2392 = vld [vmem:[#allocation3 + $0x20] sm:$0xff]
        %v2393 = vld [vmem:[#allocation3 + $0x28] sm:$0xff]
        %v2394 = vld [vmem:[#allocation3 + $0x30] sm:$0xff]
        %v2395 = vld [vmem:[#allocation3 + $0x38] sm:$0xff]
        %v2396 = vld [vmem:[#allocation3 + $0x40] sm:$0xff]
        %v2397 = vld [vmem:[#allocation3 + $0x48] sm:$0xff]
        %v2398 = vld [vmem:[#allocation3 + $0x50] sm:$0xff]
        %v2399 = vld [vmem:[#allocation3 + $0x58] sm:$0xff]
        %v2400 = vld [vmem:[#allocation3 + $0x60] sm:$0xff]
        %v2401 = vld [vmem:[#allocation3 + $0x68] sm:$0xff]
        %v2402 = vld [vmem:[#allocation3 + $0x70] sm:$0xff]
        %v2403 = vld [vmem:[#allocation3 + $0x78] sm:$0xff]
        %v2404 = vadd.f32 %v2388, %v2326
        %v2405 = vadd.f32 %v2389, %v2329
        %v2406 = vadd.f32 %v2390, %v2334
        %v2407 = vadd.f32 %v2391, %v2337
        %v2408 = vadd.f32 %v2392, %v2342
        %v2409 = vadd.f32 %v2393, %v2345
        %v2410 = vadd.f32 %v2394, %v2350
        %v2411 = vadd.f32 %v2395, %v2353
        %v2412 = vadd.f32 %v2396, %v2358
        %v2413 = vadd.f32 %v2397, %v2361
        %v2414 = vadd.f32 %v2398, %v2366
        %v2415 = vadd.f32 %v2399, %v2369
        %v2416 = vadd.f32 %v2400, %v2374
        %v2417 = vadd.f32 %v2401, %v2377
        %v2418 = vadd.f32 %v2402, %v2382
        %v2419 = vadd.f32 %v2403, %v2385
        %2420 = vst [vmem:[#allocation3] sm:$0xff] %v2404
        %2421 = vst [vmem:[#allocation3 + $0x8] sm:$0xff] %v2405
        %2422 = vst [vmem:[#allocation3 + $0x10] sm:$0xff] %v2406
        %2423 = vst [vmem:[#allocation3 + $0x18] sm:$0xff] %v2407
        %2424 = vst [vmem:[#allocation3 + $0x20] sm:$0xff] %v2408
        %2425 = vst [vmem:[#allocation3 + $0x28] sm:$0xff] %v2409
        %2426 = vst [vmem:[#allocation3 + $0x30] sm:$0xff] %v2410
        %2427 = vst [vmem:[#allocation3 + $0x38] sm:$0xff] %v2411
        %2428 = vst [vmem:[#allocation3 + $0x40] sm:$0xff] %v2412
        %2429 = vst [vmem:[#allocation3 + $0x48] sm:$0xff] %v2413
        %2430 = vst [vmem:[#allocation3 + $0x50] sm:$0xff] %v2414
        %2431 = vst [vmem:[#allocation3 + $0x58] sm:$0xff] %v2415
        %2432 = vst [vmem:[#allocation3 + $0x60] sm:$0xff] %v2416
        %2433 = vst [vmem:[#allocation3 + $0x68] sm:$0xff] %v2417
        %2434 = vst [vmem:[#allocation3 + $0x70] sm:$0xff] %v2418
        %2435 = vst [vmem:[#allocation3 + $0x78] sm:$0xff] %v2419
        %s2436 = scalar_lea.vmem [#allocation2], 168
        %v2437 = vld [vmem:[%s2436] sm:$0xf]
        %v2438 = vld [vmem:[%s2436 + $0x4] sm:$0xf]
        %v2439 = vld [vmem:[%s2436 + $0x8] sm:$0xf]
        %v2440 = vld [vmem:[%s2436 + $0xc] sm:$0xf]
        %v2441 = vld [vmem:[%s2436 + $0x10] sm:$0xf]
        %v2442 = vld [vmem:[%s2436 + $0x14] sm:$0xf]
        %v2443 = vld [vmem:[%s2436 + $0x18] sm:$0xf]
        %v2444 = vld [vmem:[%s2436 + $0x1c] sm:$0xf]
        %v2445 = vld [vmem:[%s2436 + $0x20] sm:$0xf]
        %v2446 = vld [vmem:[%s2436 + $0x24] sm:$0xf]
        %v2447 = vld [vmem:[%s2436 + $0x28] sm:$0xf]
        %v2448 = vld [vmem:[%s2436 + $0x2c] sm:$0xf]
        %v2449 = vld [vmem:[%s2436 + $0x30] sm:$0xf]
        %v2450 = vld [vmem:[%s2436 + $0x34] sm:$0xf]
        %v2451 = vld [vmem:[%s2436 + $0x38] sm:$0xf]
        %v2452 = vld [vmem:[%s2436 + $0x3c] sm:$0xf]
        %s2453 = scalar_lea.vmem [#allocation9], 320
        %v2454 = vld [vmem:[%s2453] sm:$0xf]
        %v2455 = vld [vmem:[%s2453 + $0x4] sm:$0xf]
        %v2456 = vld [vmem:[%s2453 + $0x8] sm:$0xf]
        %v2457 = vld [vmem:[%s2453 + $0xc] sm:$0xf]
        %v2458 = vld [vmem:[%s2453 + $0x10] sm:$0xf]
        %v2459 = vld [vmem:[%s2453 + $0x14] sm:$0xf]
        %v2460 = vld [vmem:[%s2453 + $0x18] sm:$0xf]
        %v2461 = vld [vmem:[%s2453 + $0x1c] sm:$0xf]
        %v2462 = vld [vmem:[%s2453 + $0x20] sm:$0xf]
        %v2463 = vld [vmem:[%s2453 + $0x24] sm:$0xf]
        %v2464 = vld [vmem:[%s2453 + $0x28] sm:$0xf]
        %v2465 = vld [vmem:[%s2453 + $0x2c] sm:$0xf]
        %v2466 = vld [vmem:[%s2453 + $0x30] sm:$0xf]
        %v2467 = vld [vmem:[%s2453 + $0x34] sm:$0xf]
        %v2468 = vld [vmem:[%s2453 + $0x38] sm:$0xf]
        %v2469 = vld [vmem:[%s2453 + $0x3c] sm:$0xf]
        %v2486 = vunpack.c.l.b16 %v2437
        %v2487 = vunpack.c.l.b16 %v2438
        %v2488 = vunpack.c.l.b16 %v2439
        %v2489 = vunpack.c.l.b16 %v2440
        %v2490 = vunpack.c.l.b16 %v2441
        %v2491 = vunpack.c.l.b16 %v2442
        %v2492 = vunpack.c.l.b16 %v2443
        %v2493 = vunpack.c.l.b16 %v2444
        %v2494 = vunpack.c.l.b16 %v2445
        %v2495 = vunpack.c.l.b16 %v2446
        %v2496 = vunpack.c.l.b16 %v2447
        %v2497 = vunpack.c.l.b16 %v2448
        %v2498 = vunpack.c.l.b16 %v2449
        %v2499 = vunpack.c.l.b16 %v2450
        %v2500 = vunpack.c.l.b16 %v2451
        %v2501 = vunpack.c.l.b16 %v2452
        %v2502 = vpack.c.b16 %v2487, %v2486
        %v2503 = vpack.c.b16 %v2489, %v2488
        %v2504 = vpack.c.b16 %v2491, %v2490
        %v2505 = vpack.c.b16 %v2493, %v2492
        %v2506 = vpack.c.b16 %v2495, %v2494
        %v2507 = vpack.c.b16 %v2497, %v2496
        %v2508 = vpack.c.b16 %v2499, %v2498
        %v2509 = vpack.c.b16 %v2501, %v2500
        %v2534 = vunpack.c.l.b16 %v2454
        %v2535 = vunpack.c.l.b16 %v2455
        %v2536 = vunpack.c.l.b16 %v2456
        %v2537 = vunpack.c.l.b16 %v2457
        %v2538 = vunpack.c.l.b16 %v2458
        %v2539 = vunpack.c.l.b16 %v2459
        %v2540 = vunpack.c.l.b16 %v2460
        %v2541 = vunpack.c.l.b16 %v2461
        %v2542 = vunpack.c.l.b16 %v2462
        %v2543 = vunpack.c.l.b16 %v2463
        %v2544 = vunpack.c.l.b16 %v2464
        %v2545 = vunpack.c.l.b16 %v2465
        %v2546 = vunpack.c.l.b16 %v2466
        %v2547 = vunpack.c.l.b16 %v2467
        %v2548 = vunpack.c.l.b16 %v2468
        %v2549 = vunpack.c.l.b16 %v2469
        %v2550 = vpack.c.b16 %v2535, %v2534
        %v2551 = vpack.c.b16 %v2537, %v2536
        %v2552 = vpack.c.b16 %v2539, %v2538
        %v2553 = vpack.c.b16 %v2541, %v2540
        %v2554 = vpack.c.b16 %v2543, %v2542
        %v2555 = vpack.c.b16 %v2545, %v2544
        %v2556 = vpack.c.b16 %v2547, %v2546
        %v2557 = vpack.c.b16 %v2549, %v2548
        %2566 = vmatprep.subr.bf16.mxu0 0
        %2567 = vmatpush1.bf16.msra.mxu0 %v2557
        %2568 = vmatprep.subr.bf16.mxu0 0
        %2569 = vmatpush1.bf16.msra.mxu0 %v2556
        %2570 = vmatprep.subr.bf16.mxu0 0
        %2571 = vmatpush1.bf16.msra.mxu0 %v2555
        %2572 = vmatprep.subr.bf16.mxu0 0
        %2573 = vmatpush1.bf16.msra.mxu0 %v2554
        %2574 = vmatprep.subr.bf16.mxu0 0
        %2575 = vmatpush1.bf16.msra.mxu0 %v2553
        %2576 = vmatprep.subr.bf16.mxu0 0
        %2577 = vmatpush1.bf16.msra.mxu0 %v2552
        %2578 = vmatprep.subr.bf16.mxu0 0
        %2579 = vmatpush1.bf16.msra.mxu0 %v2551
        %2580 = vmatprep.subr.bf16.mxu0 0
        %2581 = vmatpush1.bf16.msra.mxu0 %v2550
        %2582 = vmatprep.subr.bf16.mxu0 0
        %2583 = vmatpush2.bf16.msra.mxu0 0
        %2584 = vmatprep.subr.bf16.mxu0 0
        %2585 = vmatpush2.bf16.msra.mxu0 0
        %2586 = vmatprep.subr.bf16.mxu0 0
        %2587 = vmatpush2.bf16.msra.mxu0 0
        %2588 = vmatprep.subr.bf16.mxu0 0
        %2589 = vmatpush2.bf16.msra.mxu0 0
        %2590 = vmatprep.subr.bf16.mxu0 0
        %2591 = vmatpush2.bf16.msra.mxu0 0
        %2592 = vmatprep.subr.bf16.mxu0 0
        %2593 = vmatpush2.bf16.msra.mxu0 0
        %2594 = vmatprep.subr.bf16.mxu0 0
        %2595 = vmatpush2.bf16.msra.mxu0 0
        %2596 = vmatprep.subr.bf16.mxu0 0
        %2597 = vmatpush2.bf16.msra.mxu0 0
        %2598 = vmatprep.mubr.bf16.mxu0 0
        %2599 = vmatmul.mubr.bf16.gmra.mxu0 %v2502
        %v2600 = vpop.f32.mrf.mxu0
        %v2601 = vadd.f32 0.0, %v2600
        %v2602 = vpop.f32.mrf.mxu0
        %v2603 = vpop.f32.mrf.mxu0
        %v2604 = vadd.f32 0.0, %v2603
        %v2605 = vpop.f32.mrf.mxu0
        %2606 = vmatprep.mubr.bf16.mxu0 0
        %2607 = vmatmul.mubr.bf16.gmra.mxu0 %v2503
        %v2608 = vpop.f32.mrf.mxu0
        %v2609 = vadd.f32 0.0, %v2608
        %v2610 = vpop.f32.mrf.mxu0
        %v2611 = vpop.f32.mrf.mxu0
        %v2612 = vadd.f32 0.0, %v2611
        %v2613 = vpop.f32.mrf.mxu0
        %2614 = vmatprep.mubr.bf16.mxu0 0
        %2615 = vmatmul.mubr.bf16.gmra.mxu0 %v2504
        %v2616 = vpop.f32.mrf.mxu0
        %v2617 = vadd.f32 0.0, %v2616
        %v2618 = vpop.f32.mrf.mxu0
        %v2619 = vpop.f32.mrf.mxu0
        %v2620 = vadd.f32 0.0, %v2619
        %v2621 = vpop.f32.mrf.mxu0
        %2622 = vmatprep.mubr.bf16.mxu0 0
        %2623 = vmatmul.mubr.bf16.gmra.mxu0 %v2505
        %v2624 = vpop.f32.mrf.mxu0
        %v2625 = vadd.f32 0.0, %v2624
        %v2626 = vpop.f32.mrf.mxu0
        %v2627 = vpop.f32.mrf.mxu0
        %v2628 = vadd.f32 0.0, %v2627
        %v2629 = vpop.f32.mrf.mxu0
        %2630 = vmatprep.mubr.bf16.mxu0 0
        %2631 = vmatmul.mubr.bf16.gmra.mxu0 %v2506
        %v2632 = vpop.f32.mrf.mxu0
        %v2633 = vadd.f32 0.0, %v2632
        %v2634 = vpop.f32.mrf.mxu0
        %v2635 = vpop.f32.mrf.mxu0
        %v2636 = vadd.f32 0.0, %v2635
        %v2637 = vpop.f32.mrf.mxu0
        %2638 = vmatprep.mubr.bf16.mxu0 0
        %2639 = vmatmul.mubr.bf16.gmra.mxu0 %v2507
        %v2640 = vpop.f32.mrf.mxu0
        %v2641 = vadd.f32 0.0, %v2640
        %v2642 = vpop.f32.mrf.mxu0
        %v2643 = vpop.f32.mrf.mxu0
        %v2644 = vadd.f32 0.0, %v2643
        %v2645 = vpop.f32.mrf.mxu0
        %2646 = vmatprep.mubr.bf16.mxu0 0
        %2647 = vmatmul.mubr.bf16.gmra.mxu0 %v2508
        %v2648 = vpop.f32.mrf.mxu0
        %v2649 = vadd.f32 0.0, %v2648
        %v2650 = vpop.f32.mrf.mxu0
        %v2651 = vpop.f32.mrf.mxu0
        %v2652 = vadd.f32 0.0, %v2651
        %v2653 = vpop.f32.mrf.mxu0
        %2654 = vmatprep.mubr.bf16.mxu0 0
        %2655 = vmatmul.mubr.bf16.gmra.mxu0 %v2509
        %v2656 = vpop.f32.mrf.mxu0
        %v2657 = vadd.f32 0.0, %v2656
        %v2658 = vpop.f32.mrf.mxu0
        %v2659 = vpop.f32.mrf.mxu0
        %v2660 = vadd.f32 0.0, %v2659
        %v2661 = vpop.f32.mrf.mxu0
        %2662 = vdwg.mxu0
        %v2663 = vld [vmem:[#allocation3] sm:$0xff]
        %v2664 = vld [vmem:[#allocation3 + $0x8] sm:$0xff]
        %v2665 = vld [vmem:[#allocation3 + $0x10] sm:$0xff]
        %v2666 = vld [vmem:[#allocation3 + $0x18] sm:$0xff]
        %v2667 = vld [vmem:[#allocation3 + $0x20] sm:$0xff]
        %v2668 = vld [vmem:[#allocation3 + $0x28] sm:$0xff]
        %v2669 = vld [vmem:[#allocation3 + $0x30] sm:$0xff]
        %v2670 = vld [vmem:[#allocation3 + $0x38] sm:$0xff]
        %v2671 = vld [vmem:[#allocation3 + $0x40] sm:$0xff]
        %v2672 = vld [vmem:[#allocation3 + $0x48] sm:$0xff]
        %v2673 = vld [vmem:[#allocation3 + $0x50] sm:$0xff]
        %v2674 = vld [vmem:[#allocation3 + $0x58] sm:$0xff]
        %v2675 = vld [vmem:[#allocation3 + $0x60] sm:$0xff]
        %v2676 = vld [vmem:[#allocation3 + $0x68] sm:$0xff]
        %v2677 = vld [vmem:[#allocation3 + $0x70] sm:$0xff]
        %v2678 = vld [vmem:[#allocation3 + $0x78] sm:$0xff]
        %v2679 = vadd.f32 %v2663, %v2601
        %v2680 = vadd.f32 %v2664, %v2604
        %v2681 = vadd.f32 %v2665, %v2609
        %v2682 = vadd.f32 %v2666, %v2612
        %v2683 = vadd.f32 %v2667, %v2617
        %v2684 = vadd.f32 %v2668, %v2620
        %v2685 = vadd.f32 %v2669, %v2625
        %v2686 = vadd.f32 %v2670, %v2628
        %v2687 = vadd.f32 %v2671, %v2633
        %v2688 = vadd.f32 %v2672, %v2636
        %v2689 = vadd.f32 %v2673, %v2641
        %v2690 = vadd.f32 %v2674, %v2644
        %v2691 = vadd.f32 %v2675, %v2649
        %v2692 = vadd.f32 %v2676, %v2652
        %v2693 = vadd.f32 %v2677, %v2657
        %v2694 = vadd.f32 %v2678, %v2660
        %2695 = vst [vmem:[#allocation3] sm:$0xff] %v2679
        %2696 = vst [vmem:[#allocation3 + $0x8] sm:$0xff] %v2680
        %2697 = vst [vmem:[#allocation3 + $0x10] sm:$0xff] %v2681
        %2698 = vst [vmem:[#allocation3 + $0x18] sm:$0xff] %v2682
        %2699 = vst [vmem:[#allocation3 + $0x20] sm:$0xff] %v2683
        %2700 = vst [vmem:[#allocation3 + $0x28] sm:$0xff] %v2684
        %2701 = vst [vmem:[#allocation3 + $0x30] sm:$0xff] %v2685
        %2702 = vst [vmem:[#allocation3 + $0x38] sm:$0xff] %v2686
        %2703 = vst [vmem:[#allocation3 + $0x40] sm:$0xff] %v2687
        %2704 = vst [vmem:[#allocation3 + $0x48] sm:$0xff] %v2688
        %2705 = vst [vmem:[#allocation3 + $0x50] sm:$0xff] %v2689
        %2706 = vst [vmem:[#allocation3 + $0x58] sm:$0xff] %v2690
        %2707 = vst [vmem:[#allocation3 + $0x60] sm:$0xff] %v2691
        %2708 = vst [vmem:[#allocation3 + $0x68] sm:$0xff] %v2692
        %2709 = vst [vmem:[#allocation3 + $0x70] sm:$0xff] %v2693
        %2710 = vst [vmem:[#allocation3 + $0x78] sm:$0xff] %v2694
        %s2711 = scalar_lea.vmem [#allocation2], 16
        %v2712 = vld [vmem:[%s2711] sm:$0xf]
        %v2713 = vld [vmem:[%s2711 + $0x4] sm:$0xf]
        %v2714 = vld [vmem:[%s2711 + $0x8] sm:$0xf]
        %v2715 = vld [vmem:[%s2711 + $0xc] sm:$0xf]
        %v2716 = vld [vmem:[%s2711 + $0x10] sm:$0xf]
        %v2717 = vld [vmem:[%s2711 + $0x14] sm:$0xf]
        %v2718 = vld [vmem:[%s2711 + $0x18] sm:$0xf]
        %v2719 = vld [vmem:[%s2711 + $0x1c] sm:$0xf]
        %v2720 = vld [vmem:[%s2711 + $0x20] sm:$0xf]
        %v2721 = vld [vmem:[%s2711 + $0x24] sm:$0xf]
        %v2722 = vld [vmem:[%s2711 + $0x28] sm:$0xf]
        %v2723 = vld [vmem:[%s2711 + $0x2c] sm:$0xf]
        %v2724 = vld [vmem:[%s2711 + $0x30] sm:$0xf]
        %v2725 = vld [vmem:[%s2711 + $0x34] sm:$0xf]
        %v2726 = vld [vmem:[%s2711 + $0x38] sm:$0xf]
        %v2727 = vld [vmem:[%s2711 + $0x3c] sm:$0xf]
        %s2728 = scalar_lea.vmem [#allocation9], 384
        %v2729 = vld [vmem:[%s2728] sm:$0xf]
        %v2730 = vld [vmem:[%s2728 + $0x4] sm:$0xf]
        %v2731 = vld [vmem:[%s2728 + $0x8] sm:$0xf]
        %v2732 = vld [vmem:[%s2728 + $0xc] sm:$0xf]
        %v2733 = vld [vmem:[%s2728 + $0x10] sm:$0xf]
        %v2734 = vld [vmem:[%s2728 + $0x14] sm:$0xf]
        %v2735 = vld [vmem:[%s2728 + $0x18] sm:$0xf]
        %v2736 = vld [vmem:[%s2728 + $0x1c] sm:$0xf]
        %v2737 = vld [vmem:[%s2728 + $0x20] sm:$0xf]
        %v2738 = vld [vmem:[%s2728 + $0x24] sm:$0xf]
        %v2739 = vld [vmem:[%s2728 + $0x28] sm:$0xf]
        %v2740 = vld [vmem:[%s2728 + $0x2c] sm:$0xf]
        %v2741 = vld [vmem:[%s2728 + $0x30] sm:$0xf]
        %v2742 = vld [vmem:[%s2728 + $0x34] sm:$0xf]
        %v2743 = vld [vmem:[%s2728 + $0x38] sm:$0xf]
        %v2744 = vld [vmem:[%s2728 + $0x3c] sm:$0xf]
        %v2761 = vunpack.c.l.b16 %v2712
        %v2762 = vunpack.c.l.b16 %v2713
        %v2763 = vunpack.c.l.b16 %v2714
        %v2764 = vunpack.c.l.b16 %v2715
        %v2765 = vunpack.c.l.b16 %v2716
        %v2766 = vunpack.c.l.b16 %v2717
        %v2767 = vunpack.c.l.b16 %v2718
        %v2768 = vunpack.c.l.b16 %v2719
        %v2769 = vunpack.c.l.b16 %v2720
        %v2770 = vunpack.c.l.b16 %v2721
        %v2771 = vunpack.c.l.b16 %v2722
        %v2772 = vunpack.c.l.b16 %v2723
        %v2773 = vunpack.c.l.b16 %v2724
        %v2774 = vunpack.c.l.b16 %v2725
        %v2775 = vunpack.c.l.b16 %v2726
        %v2776 = vunpack.c.l.b16 %v2727
        %v2777 = vpack.c.b16 %v2762, %v2761
        %v2778 = vpack.c.b16 %v2764, %v2763
        %v2779 = vpack.c.b16 %v2766, %v2765
        %v2780 = vpack.c.b16 %v2768, %v2767
        %v2781 = vpack.c.b16 %v2770, %v2769
        %v2782 = vpack.c.b16 %v2772, %v2771
        %v2783 = vpack.c.b16 %v2774, %v2773
        %v2784 = vpack.c.b16 %v2776, %v2775
        %v2809 = vunpack.c.l.b16 %v2729
        %v2810 = vunpack.c.l.b16 %v2730
        %v2811 = vunpack.c.l.b16 %v2731
        %v2812 = vunpack.c.l.b16 %v2732
        %v2813 = vunpack.c.l.b16 %v2733
        %v2814 = vunpack.c.l.b16 %v2734
        %v2815 = vunpack.c.l.b16 %v2735
        %v2816 = vunpack.c.l.b16 %v2736
        %v2817 = vunpack.c.l.b16 %v2737
        %v2818 = vunpack.c.l.b16 %v2738
        %v2819 = vunpack.c.l.b16 %v2739
        %v2820 = vunpack.c.l.b16 %v2740
        %v2821 = vunpack.c.l.b16 %v2741
        %v2822 = vunpack.c.l.b16 %v2742
        %v2823 = vunpack.c.l.b16 %v2743
        %v2824 = vunpack.c.l.b16 %v2744
        %v2825 = vpack.c.b16 %v2810, %v2809
        %v2826 = vpack.c.b16 %v2812, %v2811
        %v2827 = vpack.c.b16 %v2814, %v2813
        %v2828 = vpack.c.b16 %v2816, %v2815
        %v2829 = vpack.c.b16 %v2818, %v2817
        %v2830 = vpack.c.b16 %v2820, %v2819
        %v2831 = vpack.c.b16 %v2822, %v2821
        %v2832 = vpack.c.b16 %v2824, %v2823
        %2841 = vmatprep.subr.bf16.mxu0 0
        %2842 = vmatpush1.bf16.msra.mxu0 %v2832
        %2843 = vmatprep.subr.bf16.mxu0 0
        %2844 = vmatpush1.bf16.msra.mxu0 %v2831
        %2845 = vmatprep.subr.bf16.mxu0 0
        %2846 = vmatpush1.bf16.msra.mxu0 %v2830
        %2847 = vmatprep.subr.bf16.mxu0 0
        %2848 = vmatpush1.bf16.msra.mxu0 %v2829
        %2849 = vmatprep.subr.bf16.mxu0 0
        %2850 = vmatpush1.bf16.msra.mxu0 %v2828
        %2851 = vmatprep.subr.bf16.mxu0 0
        %2852 = vmatpush1.bf16.msra.mxu0 %v2827
        %2853 = vmatprep.subr.bf16.mxu0 0
        %2854 = vmatpush1.bf16.msra.mxu0 %v2826
        %2855 = vmatprep.subr.bf16.mxu0 0
        %2856 = vmatpush1.bf16.msra.mxu0 %v2825
        %2857 = vmatprep.subr.bf16.mxu0 0
        %2858 = vmatpush2.bf16.msra.mxu0 0
        %2859 = vmatprep.subr.bf16.mxu0 0
        %2860 = vmatpush2.bf16.msra.mxu0 0
        %2861 = vmatprep.subr.bf16.mxu0 0
        %2862 = vmatpush2.bf16.msra.mxu0 0
        %2863 = vmatprep.subr.bf16.mxu0 0
        %2864 = vmatpush2.bf16.msra.mxu0 0
        %2865 = vmatprep.subr.bf16.mxu0 0
        %2866 = vmatpush2.bf16.msra.mxu0 0
        %2867 = vmatprep.subr.bf16.mxu0 0
        %2868 = vmatpush2.bf16.msra.mxu0 0
        %2869 = vmatprep.subr.bf16.mxu0 0
        %2870 = vmatpush2.bf16.msra.mxu0 0
        %2871 = vmatprep.subr.bf16.mxu0 0
        %2872 = vmatpush2.bf16.msra.mxu0 0
        %2873 = vmatprep.mubr.bf16.mxu0 0
        %2874 = vmatmul.mubr.bf16.gmra.mxu0 %v2777
        %v2875 = vpop.f32.mrf.mxu0
        %v2876 = vadd.f32 0.0, %v2875
        %v2877 = vpop.f32.mrf.mxu0
        %v2878 = vpop.f32.mrf.mxu0
        %v2879 = vadd.f32 0.0, %v2878
        %v2880 = vpop.f32.mrf.mxu0
        %2881 = vmatprep.mubr.bf16.mxu0 0
        %2882 = vmatmul.mubr.bf16.gmra.mxu0 %v2778
        %v2883 = vpop.f32.mrf.mxu0
        %v2884 = vadd.f32 0.0, %v2883
        %v2885 = vpop.f32.mrf.mxu0
        %v2886 = vpop.f32.mrf.mxu0
        %v2887 = vadd.f32 0.0, %v2886
        %v2888 = vpop.f32.mrf.mxu0
        %2889 = vmatprep.mubr.bf16.mxu0 0
        %2890 = vmatmul.mubr.bf16.gmra.mxu0 %v2779
        %v2891 = vpop.f32.mrf.mxu0
        %v2892 = vadd.f32 0.0, %v2891
        %v2893 = vpop.f32.mrf.mxu0
        %v2894 = vpop.f32.mrf.mxu0
        %v2895 = vadd.f32 0.0, %v2894
        %v2896 = vpop.f32.mrf.mxu0
        %2897 = vmatprep.mubr.bf16.mxu0 0
        %2898 = vmatmul.mubr.bf16.gmra.mxu0 %v2780
        %v2899 = vpop.f32.mrf.mxu0
        %v2900 = vadd.f32 0.0, %v2899
        %v2901 = vpop.f32.mrf.mxu0
        %v2902 = vpop.f32.mrf.mxu0
        %v2903 = vadd.f32 0.0, %v2902
        %v2904 = vpop.f32.mrf.mxu0
        %2905 = vmatprep.mubr.bf16.mxu0 0
        %2906 = vmatmul.mubr.bf16.gmra.mxu0 %v2781
        %v2907 = vpop.f32.mrf.mxu0
        %v2908 = vadd.f32 0.0, %v2907
        %v2909 = vpop.f32.mrf.mxu0
        %v2910 = vpop.f32.mrf.mxu0
        %v2911 = vadd.f32 0.0, %v2910
        %v2912 = vpop.f32.mrf.mxu0
        %2913 = vmatprep.mubr.bf16.mxu0 0
        %2914 = vmatmul.mubr.bf16.gmra.mxu0 %v2782
        %v2915 = vpop.f32.mrf.mxu0
        %v2916 = vadd.f32 0.0, %v2915
        %v2917 = vpop.f32.mrf.mxu0
        %v2918 = vpop.f32.mrf.mxu0
        %v2919 = vadd.f32 0.0, %v2918
        %v2920 = vpop.f32.mrf.mxu0
        %2921 = vmatprep.mubr.bf16.mxu0 0
        %2922 = vmatmul.mubr.bf16.gmra.mxu0 %v2783
        %v2923 = vpop.f32.mrf.mxu0
        %v2924 = vadd.f32 0.0, %v2923
        %v2925 = vpop.f32.mrf.mxu0
        %v2926 = vpop.f32.mrf.mxu0
        %v2927 = vadd.f32 0.0, %v2926
        %v2928 = vpop.f32.mrf.mxu0
        %2929 = vmatprep.mubr.bf16.mxu0 0
        %2930 = vmatmul.mubr.bf16.gmra.mxu0 %v2784
        %v2931 = vpop.f32.mrf.mxu0
        %v2932 = vadd.f32 0.0, %v2931
        %v2933 = vpop.f32.mrf.mxu0
        %v2934 = vpop.f32.mrf.mxu0
        %v2935 = vadd.f32 0.0, %v2934
        %v2936 = vpop.f32.mrf.mxu0
        %2937 = vdwg.mxu0
        %v2938 = vld [vmem:[#allocation3] sm:$0xff]
        %v2939 = vld [vmem:[#allocation3 + $0x8] sm:$0xff]
        %v2940 = vld [vmem:[#allocation3 + $0x10] sm:$0xff]
        %v2941 = vld [vmem:[#allocation3 + $0x18] sm:$0xff]
        %v2942 = vld [vmem:[#allocation3 + $0x20] sm:$0xff]
        %v2943 = vld [vmem:[#allocation3 + $0x28] sm:$0xff]
        %v2944 = vld [vmem:[#allocation3 + $0x30] sm:$0xff]
        %v2945 = vld [vmem:[#allocation3 + $0x38] sm:$0xff]
        %v2946 = vld [vmem:[#allocation3 + $0x40] sm:$0xff]
        %v2947 = vld [vmem:[#allocation3 + $0x48] sm:$0xff]
        %v2948 = vld [vmem:[#allocation3 + $0x50] sm:$0xff]
        %v2949 = vld [vmem:[#allocation3 + $0x58] sm:$0xff]
        %v2950 = vld [vmem:[#allocation3 + $0x60] sm:$0xff]
        %v2951 = vld [vmem:[#allocation3 + $0x68] sm:$0xff]
        %v2952 = vld [vmem:[#allocation3 + $0x70] sm:$0xff]
        %v2953 = vld [vmem:[#allocation3 + $0x78] sm:$0xff]
        %v2954 = vadd.f32 %v2938, %v2876
        %v2955 = vadd.f32 %v2939, %v2879
        %v2956 = vadd.f32 %v2940, %v2884
        %v2957 = vadd.f32 %v2941, %v2887
        %v2958 = vadd.f32 %v2942, %v2892
        %v2959 = vadd.f32 %v2943, %v2895
        %v2960 = vadd.f32 %v2944, %v2900
        %v2961 = vadd.f32 %v2945, %v2903
        %v2962 = vadd.f32 %v2946, %v2908
        %v2963 = vadd.f32 %v2947, %v2911
        %v2964 = vadd.f32 %v2948, %v2916
        %v2965 = vadd.f32 %v2949, %v2919
        %v2966 = vadd.f32 %v2950, %v2924
        %v2967 = vadd.f32 %v2951, %v2927
        %v2968 = vadd.f32 %v2952, %v2932
        %v2969 = vadd.f32 %v2953, %v2935
        %2970 = vst [vmem:[#allocation3] sm:$0xff] %v2954
        %2971 = vst [vmem:[#allocation3 + $0x8] sm:$0xff] %v2955
        %2972 = vst [vmem:[#allocation3 + $0x10] sm:$0xff] %v2956
        %2973 = vst [vmem:[#allocation3 + $0x18] sm:$0xff] %v2957
        %2974 = vst [vmem:[#allocation3 + $0x20] sm:$0xff] %v2958
        %2975 = vst [vmem:[#allocation3 + $0x28] sm:$0xff] %v2959
        %2976 = vst [vmem:[#allocation3 + $0x30] sm:$0xff] %v2960
        %2977 = vst [vmem:[#allocation3 + $0x38] sm:$0xff] %v2961
        %2978 = vst [vmem:[#allocation3 + $0x40] sm:$0xff] %v2962
        %2979 = vst [vmem:[#allocation3 + $0x48] sm:$0xff] %v2963
        %2980 = vst [vmem:[#allocation3 + $0x50] sm:$0xff] %v2964
        %2981 = vst [vmem:[#allocation3 + $0x58] sm:$0xff] %v2965
        %2982 = vst [vmem:[#allocation3 + $0x60] sm:$0xff] %v2966
        %2983 = vst [vmem:[#allocation3 + $0x68] sm:$0xff] %v2967
        %2984 = vst [vmem:[#allocation3 + $0x70] sm:$0xff] %v2968
        %2985 = vst [vmem:[#allocation3 + $0x78] sm:$0xff] %v2969
        %s2986 = scalar_lea.vmem [#allocation2], 96
        %v2987 = vld [vmem:[%s2986] sm:$0xf]
        %v2988 = vld [vmem:[%s2986 + $0x4] sm:$0xf]
        %v2989 = vld [vmem:[%s2986 + $0x8] sm:$0xf]
        %v2990 = vld [vmem:[%s2986 + $0xc] sm:$0xf]
        %v2991 = vld [vmem:[%s2986 + $0x10] sm:$0xf]
        %v2992 = vld [vmem:[%s2986 + $0x14] sm:$0xf]
        %v2993 = vld [vmem:[%s2986 + $0x18] sm:$0xf]
        %v2994 = vld [vmem:[%s2986 + $0x1c] sm:$0xf]
        %v2995 = vld [vmem:[%s2986 + $0x20] sm:$0xf]
        %v2996 = vld [vmem:[%s2986 + $0x24] sm:$0xf]
        %v2997 = vld [vmem:[%s2986 + $0x28] sm:$0xf]
        %v2998 = vld [vmem:[%s2986 + $0x2c] sm:$0xf]
        %v2999 = vld [vmem:[%s2986 + $0x30] sm:$0xf]
        %v3000 = vld [vmem:[%s2986 + $0x34] sm:$0xf]
        %v3001 = vld [vmem:[%s2986 + $0x38] sm:$0xf]
        %v3002 = vld [vmem:[%s2986 + $0x3c] sm:$0xf]
        %s3003 = scalar_lea.vmem [#allocation9], 448
        %v3004 = vld [vmem:[%s3003] sm:$0xf]
        %v3005 = vld [vmem:[%s3003 + $0x4] sm:$0xf]
        %v3006 = vld [vmem:[%s3003 + $0x8] sm:$0xf]
        %v3007 = vld [vmem:[%s3003 + $0xc] sm:$0xf]
        %v3008 = vld [vmem:[%s3003 + $0x10] sm:$0xf]
        %v3009 = vld [vmem:[%s3003 + $0x14] sm:$0xf]
        %v3010 = vld [vmem:[%s3003 + $0x18] sm:$0xf]
        %v3011 = vld [vmem:[%s3003 + $0x1c] sm:$0xf]
        %v3012 = vld [vmem:[%s3003 + $0x20] sm:$0xf]
        %v3013 = vld [vmem:[%s3003 + $0x24] sm:$0xf]
        %v3014 = vld [vmem:[%s3003 + $0x28] sm:$0xf]
        %v3015 = vld [vmem:[%s3003 + $0x2c] sm:$0xf]
        %v3016 = vld [vmem:[%s3003 + $0x30] sm:$0xf]
        %v3017 = vld [vmem:[%s3003 + $0x34] sm:$0xf]
        %v3018 = vld [vmem:[%s3003 + $0x38] sm:$0xf]
        %v3019 = vld [vmem:[%s3003 + $0x3c] sm:$0xf]
        %v3036 = vunpack.c.l.b16 %v2987
        %v3037 = vunpack.c.l.b16 %v2988
        %v3038 = vunpack.c.l.b16 %v2989
        %v3039 = vunpack.c.l.b16 %v2990
        %v3040 = vunpack.c.l.b16 %v2991
        %v3041 = vunpack.c.l.b16 %v2992
        %v3042 = vunpack.c.l.b16 %v2993
        %v3043 = vunpack.c.l.b16 %v2994
        %v3044 = vunpack.c.l.b16 %v2995
        %v3045 = vunpack.c.l.b16 %v2996
        %v3046 = vunpack.c.l.b16 %v2997
        %v3047 = vunpack.c.l.b16 %v2998
        %v3048 = vunpack.c.l.b16 %v2999
        %v3049 = vunpack.c.l.b16 %v3000
        %v3050 = vunpack.c.l.b16 %v3001
        %v3051 = vunpack.c.l.b16 %v3002
        %v3052 = vpack.c.b16 %v3037, %v3036
        %v3053 = vpack.c.b16 %v3039, %v3038
        %v3054 = vpack.c.b16 %v3041, %v3040
        %v3055 = vpack.c.b16 %v3043, %v3042
        %v3056 = vpack.c.b16 %v3045, %v3044
        %v3057 = vpack.c.b16 %v3047, %v3046
        %v3058 = vpack.c.b16 %v3049, %v3048
        %v3059 = vpack.c.b16 %v3051, %v3050
        %v3084 = vunpack.c.l.b16 %v3004
        %v3085 = vunpack.c.l.b16 %v3005
        %v3086 = vunpack.c.l.b16 %v3006
        %v3087 = vunpack.c.l.b16 %v3007
        %v3088 = vunpack.c.l.b16 %v3008
        %v3089 = vunpack.c.l.b16 %v3009
        %v3090 = vunpack.c.l.b16 %v3010
        %v3091 = vunpack.c.l.b16 %v3011
        %v3092 = vunpack.c.l.b16 %v3012
        %v3093 = vunpack.c.l.b16 %v3013
        %v3094 = vunpack.c.l.b16 %v3014
        %v3095 = vunpack.c.l.b16 %v3015
        %v3096 = vunpack.c.l.b16 %v3016
        %v3097 = vunpack.c.l.b16 %v3017
        %v3098 = vunpack.c.l.b16 %v3018
        %v3099 = vunpack.c.l.b16 %v3019
        %v3100 = vpack.c.b16 %v3085, %v3084
        %v3101 = vpack.c.b16 %v3087, %v3086
        %v3102 = vpack.c.b16 %v3089, %v3088
        %v3103 = vpack.c.b16 %v3091, %v3090
        %v3104 = vpack.c.b16 %v3093, %v3092
        %v3105 = vpack.c.b16 %v3095, %v3094
        %v3106 = vpack.c.b16 %v3097, %v3096
        %v3107 = vpack.c.b16 %v3099, %v3098
        %3116 = vmatprep.subr.bf16.mxu0 0
        %3117 = vmatpush1.bf16.msra.mxu0 %v3107
        %3118 = vmatprep.subr.bf16.mxu0 0
        %3119 = vmatpush1.bf16.msra.mxu0 %v3106
        %3120 = vmatprep.subr.bf16.mxu0 0
        %3121 = vmatpush1.bf16.msra.mxu0 %v3105
        %3122 = vmatprep.subr.bf16.mxu0 0
        %3123 = vmatpush1.bf16.msra.mxu0 %v3104
        %3124 = vmatprep.subr.bf16.mxu0 0
        %3125 = vmatpush1.bf16.msra.mxu0 %v3103
        %3126 = vmatprep.subr.bf16.mxu0 0
        %3127 = vmatpush1.bf16.msra.mxu0 %v3102
        %3128 = vmatprep.subr.bf16.mxu0 0
        %3129 = vmatpush1.bf16.msra.mxu0 %v3101
        %3130 = vmatprep.subr.bf16.mxu0 0
        %3131 = vmatpush1.bf16.msra.mxu0 %v3100
        %3132 = vmatprep.subr.bf16.mxu0 0
        %3133 = vmatpush2.bf16.msra.mxu0 0
        %3134 = vmatprep.subr.bf16.mxu0 0
        %3135 = vmatpush2.bf16.msra.mxu0 0
        %3136 = vmatprep.subr.bf16.mxu0 0
        %3137 = vmatpush2.bf16.msra.mxu0 0
        %3138 = vmatprep.subr.bf16.mxu0 0
        %3139 = vmatpush2.bf16.msra.mxu0 0
        %3140 = vmatprep.subr.bf16.mxu0 0
        %3141 = vmatpush2.bf16.msra.mxu0 0
        %3142 = vmatprep.subr.bf16.mxu0 0
        %3143 = vmatpush2.bf16.msra.mxu0 0
        %3144 = vmatprep.subr.bf16.mxu0 0
        %3145 = vmatpush2.bf16.msra.mxu0 0
        %3146 = vmatprep.subr.bf16.mxu0 0
        %3147 = vmatpush2.bf16.msra.mxu0 0
        %3148 = vmatprep.mubr.bf16.mxu0 0
        %3149 = vmatmul.mubr.bf16.gmra.mxu0 %v3052
        %v3150 = vpop.f32.mrf.mxu0
        %v3151 = vadd.f32 0.0, %v3150
        %v3152 = vpop.f32.mrf.mxu0
        %v3153 = vpop.f32.mrf.mxu0
        %v3154 = vadd.f32 0.0, %v3153
        %v3155 = vpop.f32.mrf.mxu0
        %3156 = vmatprep.mubr.bf16.mxu0 0
        %3157 = vmatmul.mubr.bf16.gmra.mxu0 %v3053
        %v3158 = vpop.f32.mrf.mxu0
        %v3159 = vadd.f32 0.0, %v3158
        %v3160 = vpop.f32.mrf.mxu0
        %v3161 = vpop.f32.mrf.mxu0
        %v3162 = vadd.f32 0.0, %v3161
        %v3163 = vpop.f32.mrf.mxu0
        %3164 = vmatprep.mubr.bf16.mxu0 0
        %3165 = vmatmul.mubr.bf16.gmra.mxu0 %v3054
        %v3166 = vpop.f32.mrf.mxu0
        %v3167 = vadd.f32 0.0, %v3166
        %v3168 = vpop.f32.mrf.mxu0
        %v3169 = vpop.f32.mrf.mxu0
        %v3170 = vadd.f32 0.0, %v3169
        %v3171 = vpop.f32.mrf.mxu0
        %3172 = vmatprep.mubr.bf16.mxu0 0
        %3173 = vmatmul.mubr.bf16.gmra.mxu0 %v3055
        %v3174 = vpop.f32.mrf.mxu0
        %v3175 = vadd.f32 0.0, %v3174
        %v3176 = vpop.f32.mrf.mxu0
        %v3177 = vpop.f32.mrf.mxu0
        %v3178 = vadd.f32 0.0, %v3177
        %v3179 = vpop.f32.mrf.mxu0
        %3180 = vmatprep.mubr.bf16.mxu0 0
        %3181 = vmatmul.mubr.bf16.gmra.mxu0 %v3056
        %v3182 = vpop.f32.mrf.mxu0
        %v3183 = vadd.f32 0.0, %v3182
        %v3184 = vpop.f32.mrf.mxu0
        %v3185 = vpop.f32.mrf.mxu0
        %v3186 = vadd.f32 0.0, %v3185
        %v3187 = vpop.f32.mrf.mxu0
        %3188 = vmatprep.mubr.bf16.mxu0 0
        %3189 = vmatmul.mubr.bf16.gmra.mxu0 %v3057
        %v3190 = vpop.f32.mrf.mxu0
        %v3191 = vadd.f32 0.0, %v3190
        %v3192 = vpop.f32.mrf.mxu0
        %v3193 = vpop.f32.mrf.mxu0
        %v3194 = vadd.f32 0.0, %v3193
        %v3195 = vpop.f32.mrf.mxu0
        %3196 = vmatprep.mubr.bf16.mxu0 0
        %3197 = vmatmul.mubr.bf16.gmra.mxu0 %v3058
        %v3198 = vpop.f32.mrf.mxu0
        %v3199 = vadd.f32 0.0, %v3198
        %v3200 = vpop.f32.mrf.mxu0
        %v3201 = vpop.f32.mrf.mxu0
        %v3202 = vadd.f32 0.0, %v3201
        %v3203 = vpop.f32.mrf.mxu0
        %3204 = vmatprep.mubr.bf16.mxu0 0
        %3205 = vmatmul.mubr.bf16.gmra.mxu0 %v3059
        %v3206 = vpop.f32.mrf.mxu0
        %v3207 = vadd.f32 0.0, %v3206
        %v3208 = vpop.f32.mrf.mxu0
        %v3209 = vpop.f32.mrf.mxu0
        %v3210 = vadd.f32 0.0, %v3209
        %v3211 = vpop.f32.mrf.mxu0
        %3212 = vdwg.mxu0
        %v3213 = vld [vmem:[#allocation3] sm:$0xff]
        %v3214 = vld [vmem:[#allocation3 + $0x8] sm:$0xff]
        %v3215 = vld [vmem:[#allocation3 + $0x10] sm:$0xff]
        %v3216 = vld [vmem:[#allocation3 + $0x18] sm:$0xff]
        %v3217 = vld [vmem:[#allocation3 + $0x20] sm:$0xff]
        %v3218 = vld [vmem:[#allocation3 + $0x28] sm:$0xff]
        %v3219 = vld [vmem:[#allocation3 + $0x30] sm:$0xff]
        %v3220 = vld [vmem:[#allocation3 + $0x38] sm:$0xff]
        %v3221 = vld [vmem:[#allocation3 + $0x40] sm:$0xff]
        %v3222 = vld [vmem:[#allocation3 + $0x48] sm:$0xff]
        %v3223 = vld [vmem:[#allocation3 + $0x50] sm:$0xff]
        %v3224 = vld [vmem:[#allocation3 + $0x58] sm:$0xff]
        %v3225 = vld [vmem:[#allocation3 + $0x60] sm:$0xff]
        %v3226 = vld [vmem:[#allocation3 + $0x68] sm:$0xff]
        %v3227 = vld [vmem:[#allocation3 + $0x70] sm:$0xff]
        %v3228 = vld [vmem:[#allocation3 + $0x78] sm:$0xff]
        %v3229 = vadd.f32 %v3213, %v3151
        %v3230 = vadd.f32 %v3214, %v3154
        %v3231 = vadd.f32 %v3215, %v3159
        %v3232 = vadd.f32 %v3216, %v3162
        %v3233 = vadd.f32 %v3217, %v3167
        %v3234 = vadd.f32 %v3218, %v3170
        %v3235 = vadd.f32 %v3219, %v3175
        %v3236 = vadd.f32 %v3220, %v3178
        %v3237 = vadd.f32 %v3221, %v3183
        %v3238 = vadd.f32 %v3222, %v3186
        %v3239 = vadd.f32 %v3223, %v3191
        %v3240 = vadd.f32 %v3224, %v3194
        %v3241 = vadd.f32 %v3225, %v3199
        %v3242 = vadd.f32 %v3226, %v3202
        %v3243 = vadd.f32 %v3227, %v3207
        %v3244 = vadd.f32 %v3228, %v3210
        %3245 = vst [vmem:[#allocation3] sm:$0xff] %v3229
        %3246 = vst [vmem:[#allocation3 + $0x8] sm:$0xff] %v3230
        %3247 = vst [vmem:[#allocation3 + $0x10] sm:$0xff] %v3231
        %3248 = vst [vmem:[#allocation3 + $0x18] sm:$0xff] %v3232
        %3249 = vst [vmem:[#allocation3 + $0x20] sm:$0xff] %v3233
        %3250 = vst [vmem:[#allocation3 + $0x28] sm:$0xff] %v3234
        %3251 = vst [vmem:[#allocation3 + $0x30] sm:$0xff] %v3235
        %3252 = vst [vmem:[#allocation3 + $0x38] sm:$0xff] %v3236
        %3253 = vst [vmem:[#allocation3 + $0x40] sm:$0xff] %v3237
        %3254 = vst [vmem:[#allocation3 + $0x48] sm:$0xff] %v3238
        %3255 = vst [vmem:[#allocation3 + $0x50] sm:$0xff] %v3239
        %3256 = vst [vmem:[#allocation3 + $0x58] sm:$0xff] %v3240
        %3257 = vst [vmem:[#allocation3 + $0x60] sm:$0xff] %v3241
        %3258 = vst [vmem:[#allocation3 + $0x68] sm:$0xff] %v3242
        %3259 = vst [vmem:[#allocation3 + $0x70] sm:$0xff] %v3243
        %3260 = vst [vmem:[#allocation3 + $0x78] sm:$0xff] %v3244
        %s3261 = scalar_lea.vmem [#allocation2], 176
        %v3262 = vld [vmem:[%s3261] sm:$0xf]
        %v3263 = vld [vmem:[%s3261 + $0x4] sm:$0xf]
        %v3264 = vld [vmem:[%s3261 + $0x8] sm:$0xf]
        %v3265 = vld [vmem:[%s3261 + $0xc] sm:$0xf]
        %v3266 = vld [vmem:[%s3261 + $0x10] sm:$0xf]
        %v3267 = vld [vmem:[%s3261 + $0x14] sm:$0xf]
        %v3268 = vld [vmem:[%s3261 + $0x18] sm:$0xf]
        %v3269 = vld [vmem:[%s3261 + $0x1c] sm:$0xf]
        %v3270 = vld [vmem:[%s3261 + $0x20] sm:$0xf]
        %v3271 = vld [vmem:[%s3261 + $0x24] sm:$0xf]
        %v3272 = vld [vmem:[%s3261 + $0x28] sm:$0xf]
        %v3273 = vld [vmem:[%s3261 + $0x2c] sm:$0xf]
        %v3274 = vld [vmem:[%s3261 + $0x30] sm:$0xf]
        %v3275 = vld [vmem:[%s3261 + $0x34] sm:$0xf]
        %v3276 = vld [vmem:[%s3261 + $0x38] sm:$0xf]
        %v3277 = vld [vmem:[%s3261 + $0x3c] sm:$0xf]
        %s3278 = scalar_lea.vmem [#allocation9], 512
        %v3279 = vld [vmem:[%s3278] sm:$0xf]
        %v3280 = vld [vmem:[%s3278 + $0x4] sm:$0xf]
        %v3281 = vld [vmem:[%s3278 + $0x8] sm:$0xf]
        %v3282 = vld [vmem:[%s3278 + $0xc] sm:$0xf]
        %v3283 = vld [vmem:[%s3278 + $0x10] sm:$0xf]
        %v3284 = vld [vmem:[%s3278 + $0x14] sm:$0xf]
        %v3285 = vld [vmem:[%s3278 + $0x18] sm:$0xf]
        %v3286 = vld [vmem:[%s3278 + $0x1c] sm:$0xf]
        %v3287 = vld [vmem:[%s3278 + $0x20] sm:$0xf]
        %v3288 = vld [vmem:[%s3278 + $0x24] sm:$0xf]
        %v3289 = vld [vmem:[%s3278 + $0x28] sm:$0xf]
        %v3290 = vld [vmem:[%s3278 + $0x2c] sm:$0xf]
        %v3291 = vld [vmem:[%s3278 + $0x30] sm:$0xf]
        %v3292 = vld [vmem:[%s3278 + $0x34] sm:$0xf]
        %v3293 = vld [vmem:[%s3278 + $0x38] sm:$0xf]
        %v3294 = vld [vmem:[%s3278 + $0x3c] sm:$0xf]
        %v3311 = vunpack.c.l.b16 %v3262
        %v3312 = vunpack.c.l.b16 %v3263
        %v3313 = vunpack.c.l.b16 %v3264
        %v3314 = vunpack.c.l.b16 %v3265
        %v3315 = vunpack.c.l.b16 %v3266
        %v3316 = vunpack.c.l.b16 %v3267
        %v3317 = vunpack.c.l.b16 %v3268
        %v3318 = vunpack.c.l.b16 %v3269
        %v3319 = vunpack.c.l.b16 %v3270
        %v3320 = vunpack.c.l.b16 %v3271
        %v3321 = vunpack.c.l.b16 %v3272
        %v3322 = vunpack.c.l.b16 %v3273
        %v3323 = vunpack.c.l.b16 %v3274
        %v3324 = vunpack.c.l.b16 %v3275
        %v3325 = vunpack.c.l.b16 %v3276
        %v3326 = vunpack.c.l.b16 %v3277
        %v3327 = vpack.c.b16 %v3312, %v3311
        %v3328 = vpack.c.b16 %v3314, %v3313
        %v3329 = vpack.c.b16 %v3316, %v3315
        %v3330 = vpack.c.b16 %v3318, %v3317
        %v3331 = vpack.c.b16 %v3320, %v3319
        %v3332 = vpack.c.b16 %v3322, %v3321
        %v3333 = vpack.c.b16 %v3324, %v3323
        %v3334 = vpack.c.b16 %v3326, %v3325
        %v3359 = vunpack.c.l.b16 %v3279
        %v3360 = vunpack.c.l.b16 %v3280
        %v3361 = vunpack.c.l.b16 %v3281
        %v3362 = vunpack.c.l.b16 %v3282
        %v3363 = vunpack.c.l.b16 %v3283
        %v3364 = vunpack.c.l.b16 %v3284
        %v3365 = vunpack.c.l.b16 %v3285
        %v3366 = vunpack.c.l.b16 %v3286
        %v3367 = vunpack.c.l.b16 %v3287
        %v3368 = vunpack.c.l.b16 %v3288
        %v3369 = vunpack.c.l.b16 %v3289
        %v3370 = vunpack.c.l.b16 %v3290
        %v3371 = vunpack.c.l.b16 %v3291
        %v3372 = vunpack.c.l.b16 %v3292
        %v3373 = vunpack.c.l.b16 %v3293
        %v3374 = vunpack.c.l.b16 %v3294
        %v3375 = vpack.c.b16 %v3360, %v3359
        %v3376 = vpack.c.b16 %v3362, %v3361
        %v3377 = vpack.c.b16 %v3364, %v3363
        %v3378 = vpack.c.b16 %v3366, %v3365
        %v3379 = vpack.c.b16 %v3368, %v3367
        %v3380 = vpack.c.b16 %v3370, %v3369
        %v3381 = vpack.c.b16 %v3372, %v3371
        %v3382 = vpack.c.b16 %v3374, %v3373
        %3391 = vmatprep.subr.bf16.mxu0 0
        %3392 = vmatpush1.bf16.msra.mxu0 %v3382
        %3393 = vmatprep.subr.bf16.mxu0 0
        %3394 = vmatpush1.bf16.msra.mxu0 %v3381
        %3395 = vmatprep.subr.bf16.mxu0 0
        %3396 = vmatpush1.bf16.msra.mxu0 %v3380
        %3397 = vmatprep.subr.bf16.mxu0 0
        %3398 = vmatpush1.bf16.msra.mxu0 %v3379
        %3399 = vmatprep.subr.bf16.mxu0 0
        %3400 = vmatpush1.bf16.msra.mxu0 %v3378
        %3401 = vmatprep.subr.bf16.mxu0 0
        %3402 = vmatpush1.bf16.msra.mxu0 %v3377
        %3403 = vmatprep.subr.bf16.mxu0 0
        %3404 = vmatpush1.bf16.msra.mxu0 %v3376
        %3405 = vmatprep.subr.bf16.mxu0 0
        %3406 = vmatpush1.bf16.msra.mxu0 %v3375
        %3407 = vmatprep.subr.bf16.mxu0 0
        %3408 = vmatpush2.bf16.msra.mxu0 0
        %3409 = vmatprep.subr.bf16.mxu0 0
        %3410 = vmatpush2.bf16.msra.mxu0 0
        %3411 = vmatprep.subr.bf16.mxu0 0
        %3412 = vmatpush2.bf16.msra.mxu0 0
        %3413 = vmatprep.subr.bf16.mxu0 0
        %3414 = vmatpush2.bf16.msra.mxu0 0
        %3415 = vmatprep.subr.bf16.mxu0 0
        %3416 = vmatpush2.bf16.msra.mxu0 0
        %3417 = vmatprep.subr.bf16.mxu0 0
        %3418 = vmatpush2.bf16.msra.mxu0 0
        %3419 = vmatprep.subr.bf16.mxu0 0
        %3420 = vmatpush2.bf16.msra.mxu0 0
        %3421 = vmatprep.subr.bf16.mxu0 0
        %3422 = vmatpush2.bf16.msra.mxu0 0
        %3423 = vmatprep.mubr.bf16.mxu0 0
        %3424 = vmatmul.mubr.bf16.gmra.mxu0 %v3327
        %v3425 = vpop.f32.mrf.mxu0
        %v3426 = vadd.f32 0.0, %v3425
        %v3427 = vpop.f32.mrf.mxu0
        %v3428 = vpop.f32.mrf.mxu0
        %v3429 = vadd.f32 0.0, %v3428
        %v3430 = vpop.f32.mrf.mxu0
        %3431 = vmatprep.mubr.bf16.mxu0 0
        %3432 = vmatmul.mubr.bf16.gmra.mxu0 %v3328
        %v3433 = vpop.f32.mrf.mxu0
        %v3434 = vadd.f32 0.0, %v3433
        %v3435 = vpop.f32.mrf.mxu0
        %v3436 = vpop.f32.mrf.mxu0
        %v3437 = vadd.f32 0.0, %v3436
        %v3438 = vpop.f32.mrf.mxu0
        %3439 = vmatprep.mubr.bf16.mxu0 0
        %3440 = vmatmul.mubr.bf16.gmra.mxu0 %v3329
        %v3441 = vpop.f32.mrf.mxu0
        %v3442 = vadd.f32 0.0, %v3441
        %v3443 = vpop.f32.mrf.mxu0
        %v3444 = vpop.f32.mrf.mxu0
        %v3445 = vadd.f32 0.0, %v3444
        %v3446 = vpop.f32.mrf.mxu0
        %3447 = vmatprep.mubr.bf16.mxu0 0
        %3448 = vmatmul.mubr.bf16.gmra.mxu0 %v3330
        %v3449 = vpop.f32.mrf.mxu0
        %v3450 = vadd.f32 0.0, %v3449
        %v3451 = vpop.f32.mrf.mxu0
        %v3452 = vpop.f32.mrf.mxu0
        %v3453 = vadd.f32 0.0, %v3452
        %v3454 = vpop.f32.mrf.mxu0
        %3455 = vmatprep.mubr.bf16.mxu0 0
        %3456 = vmatmul.mubr.bf16.gmra.mxu0 %v3331
        %v3457 = vpop.f32.mrf.mxu0
        %v3458 = vadd.f32 0.0, %v3457
        %v3459 = vpop.f32.mrf.mxu0
        %v3460 = vpop.f32.mrf.mxu0
        %v3461 = vadd.f32 0.0, %v3460
        %v3462 = vpop.f32.mrf.mxu0
        %3463 = vmatprep.mubr.bf16.mxu0 0
        %3464 = vmatmul.mubr.bf16.gmra.mxu0 %v3332
        %v3465 = vpop.f32.mrf.mxu0
        %v3466 = vadd.f32 0.0, %v3465
        %v3467 = vpop.f32.mrf.mxu0
        %v3468 = vpop.f32.mrf.mxu0
        %v3469 = vadd.f32 0.0, %v3468
        %v3470 = vpop.f32.mrf.mxu0
        %3471 = vmatprep.mubr.bf16.mxu0 0
        %3472 = vmatmul.mubr.bf16.gmra.mxu0 %v3333
        %v3473 = vpop.f32.mrf.mxu0
        %v3474 = vadd.f32 0.0, %v3473
        %v3475 = vpop.f32.mrf.mxu0
        %v3476 = vpop.f32.mrf.mxu0
        %v3477 = vadd.f32 0.0, %v3476
        %v3478 = vpop.f32.mrf.mxu0
        %3479 = vmatprep.mubr.bf16.mxu0 0
        %3480 = vmatmul.mubr.bf16.gmra.mxu0 %v3334
        %v3481 = vpop.f32.mrf.mxu0
        %v3482 = vadd.f32 0.0, %v3481
        %v3483 = vpop.f32.mrf.mxu0
        %v3484 = vpop.f32.mrf.mxu0
        %v3485 = vadd.f32 0.0, %v3484
        %v3486 = vpop.f32.mrf.mxu0
        %3487 = vdwg.mxu0
        %v3488 = vld [vmem:[#allocation3] sm:$0xff]
        %v3489 = vld [vmem:[#allocation3 + $0x8] sm:$0xff]
        %v3490 = vld [vmem:[#allocation3 + $0x10] sm:$0xff]
        %v3491 = vld [vmem:[#allocation3 + $0x18] sm:$0xff]
        %v3492 = vld [vmem:[#allocation3 + $0x20] sm:$0xff]
        %v3493 = vld [vmem:[#allocation3 + $0x28] sm:$0xff]
        %v3494 = vld [vmem:[#allocation3 + $0x30] sm:$0xff]
        %v3495 = vld [vmem:[#allocation3 + $0x38] sm:$0xff]
        %v3496 = vld [vmem:[#allocation3 + $0x40] sm:$0xff]
        %v3497 = vld [vmem:[#allocation3 + $0x48] sm:$0xff]
        %v3498 = vld [vmem:[#allocation3 + $0x50] sm:$0xff]
        %v3499 = vld [vmem:[#allocation3 + $0x58] sm:$0xff]
        %v3500 = vld [vmem:[#allocation3 + $0x60] sm:$0xff]
        %v3501 = vld [vmem:[#allocation3 + $0x68] sm:$0xff]
        %v3502 = vld [vmem:[#allocation3 + $0x70] sm:$0xff]
        %v3503 = vld [vmem:[#allocation3 + $0x78] sm:$0xff]
        %v3504 = vadd.f32 %v3488, %v3426
        %v3505 = vadd.f32 %v3489, %v3429
        %v3506 = vadd.f32 %v3490, %v3434
        %v3507 = vadd.f32 %v3491, %v3437
        %v3508 = vadd.f32 %v3492, %v3442
        %v3509 = vadd.f32 %v3493, %v3445
        %v3510 = vadd.f32 %v3494, %v3450
        %v3511 = vadd.f32 %v3495, %v3453
        %v3512 = vadd.f32 %v3496, %v3458
        %v3513 = vadd.f32 %v3497, %v3461
        %v3514 = vadd.f32 %v3498, %v3466
        %v3515 = vadd.f32 %v3499, %v3469
        %v3516 = vadd.f32 %v3500, %v3474
        %v3517 = vadd.f32 %v3501, %v3477
        %v3518 = vadd.f32 %v3502, %v3482
        %v3519 = vadd.f32 %v3503, %v3485
        %3520 = vst [vmem:[#allocation3] sm:$0xff] %v3504
        %3521 = vst [vmem:[#allocation3 + $0x8] sm:$0xff] %v3505
        %3522 = vst [vmem:[#allocation3 + $0x10] sm:$0xff] %v3506
        %3523 = vst [vmem:[#allocation3 + $0x18] sm:$0xff] %v3507
        %3524 = vst [vmem:[#allocation3 + $0x20] sm:$0xff] %v3508
        %3525 = vst [vmem:[#allocation3 + $0x28] sm:$0xff] %v3509
        %3526 = vst [vmem:[#allocation3 + $0x30] sm:$0xff] %v3510
        %3527 = vst [vmem:[#allocation3 + $0x38] sm:$0xff] %v3511
        %3528 = vst [vmem:[#allocation3 + $0x40] sm:$0xff] %v3512
        %3529 = vst [vmem:[#allocation3 + $0x48] sm:$0xff] %v3513
        %3530 = vst [vmem:[#allocation3 + $0x50] sm:$0xff] %v3514
        %3531 = vst [vmem:[#allocation3 + $0x58] sm:$0xff] %v3515
        %3532 = vst [vmem:[#allocation3 + $0x60] sm:$0xff] %v3516
        %3533 = vst [vmem:[#allocation3 + $0x68] sm:$0xff] %v3517
        %3534 = vst [vmem:[#allocation3 + $0x70] sm:$0xff] %v3518
        %3535 = vst [vmem:[#allocation3 + $0x78] sm:$0xff] %v3519
        %v3536 = vld [vmem:[#allocation3] sm:$0xff]
        %v3537 = vld [vmem:[#allocation3 + $0x8] sm:$0xff]
        %v3538 = vld [vmem:[#allocation3 + $0x10] sm:$0xff]
        %v3539 = vld [vmem:[#allocation3 + $0x18] sm:$0xff]
        %v3540 = vld [vmem:[#allocation3 + $0x20] sm:$0xff]
        %v3541 = vld [vmem:[#allocation3 + $0x28] sm:$0xff]
        %v3542 = vld [vmem:[#allocation3 + $0x30] sm:$0xff]
        %v3543 = vld [vmem:[#allocation3 + $0x38] sm:$0xff]
        %v3544 = vld [vmem:[#allocation3 + $0x40] sm:$0xff]
        %v3545 = vld [vmem:[#allocation3 + $0x48] sm:$0xff]
        %v3546 = vld [vmem:[#allocation3 + $0x50] sm:$0xff]
        %v3547 = vld [vmem:[#allocation3 + $0x58] sm:$0xff]
        %v3548 = vld [vmem:[#allocation3 + $0x60] sm:$0xff]
        %v3549 = vld [vmem:[#allocation3 + $0x68] sm:$0xff]
        %v3550 = vld [vmem:[#allocation3 + $0x70] sm:$0xff]
        %v3551 = vld [vmem:[#allocation3 + $0x78] sm:$0xff]
        %v3552 = vld [vmem:[%s5] sm:$0x1]
        %v3554 = vlaneseq
        %v3555 = vshrl.u32 %v3554, 7
        %v3556 = vsub.s32 0, %v3555
        %v3557 = vrot.slane %v3552, %v3556
        %v3559 = vmul.f32 %v3536, %v3557
        %v3560 = vmul.f32 %v3537, %v3557
        %v3561 = vmul.f32 %v3538, %v3557
        %v3562 = vmul.f32 %v3539, %v3557
        %v3563 = vmul.f32 %v3540, %v3557
        %v3564 = vmul.f32 %v3541, %v3557
        %v3565 = vmul.f32 %v3542, %v3557
        %v3566 = vmul.f32 %v3543, %v3557
        %v3567 = vmul.f32 %v3544, %v3557
        %v3568 = vmul.f32 %v3545, %v3557
        %v3569 = vmul.f32 %v3546, %v3557
        %v3570 = vmul.f32 %v3547, %v3557
        %v3571 = vmul.f32 %v3548, %v3557
        %v3572 = vmul.f32 %v3549, %v3557
        %v3573 = vmul.f32 %v3550, %v3557
        %v3574 = vmul.f32 %v3551, %v3557
        %v3575 = vld [vmem:[%s6] sm:$0x1]
        %v3577 = vlaneseq
        %v3578 = vshrl.u32 %v3577, 7
        %v3579 = vsub.s32 0, %v3578
        %v3580 = vrot.slane %v3575, %v3579
        %v3582 = vadd.f32 %v3559, %v3580
        %v3583 = vadd.f32 %v3560, %v3580
        %v3584 = vadd.f32 %v3561, %v3580
        %v3585 = vadd.f32 %v3562, %v3580
        %v3586 = vadd.f32 %v3563, %v3580
        %v3587 = vadd.f32 %v3564, %v3580
        %v3588 = vadd.f32 %v3565, %v3580
        %v3589 = vadd.f32 %v3566, %v3580
        %v3590 = vadd.f32 %v3567, %v3580
        %v3591 = vadd.f32 %v3568, %v3580
        %v3592 = vadd.f32 %v3569, %v3580
        %v3593 = vadd.f32 %v3570, %v3580
        %v3594 = vadd.f32 %v3571, %v3580
        %v3595 = vadd.f32 %v3572, %v3580
        %v3596 = vadd.f32 %v3573, %v3580
        %v3597 = vadd.f32 %v3574, %v3580
        %v3598 = vmax.f32 %v3582, 0.0
        %v3599 = vmax.f32 %v3583, 0.0
        %v3600 = vmax.f32 %v3584, 0.0
        %v3601 = vmax.f32 %v3585, 0.0
        %v3602 = vmax.f32 %v3586, 0.0
        %v3603 = vmax.f32 %v3587, 0.0
        %v3604 = vmax.f32 %v3588, 0.0
        %v3605 = vmax.f32 %v3589, 0.0
        %v3606 = vmax.f32 %v3590, 0.0
        %v3607 = vmax.f32 %v3591, 0.0
        %v3608 = vmax.f32 %v3592, 0.0
        %v3609 = vmax.f32 %v3593, 0.0
        %v3610 = vmax.f32 %v3594, 0.0
        %v3611 = vmax.f32 %v3595, 0.0
        %v3612 = vmax.f32 %v3596, 0.0
        %v3613 = vmax.f32 %v3597, 0.0
        %v3614 = vadd.f32 %v3598, %v3600
        %v3615 = vadd.f32 %v3599, %v3601
        %v3616 = vadd.f32 %v3602, %v3604
        %v3617 = vadd.f32 %v3603, %v3605
        %v3618 = vadd.f32 %v3606, %v3608
        %v3619 = vadd.f32 %v3607, %v3609
        %v3620 = vadd.f32 %v3610, %v3612
        %v3621 = vadd.f32 %v3611, %v3613
        %v3630 = vcombine.high %v3614, %v3614
        %v3632 = vunpack.c.l.s4 1983009808
        %v3633 = vunpack.c.0.s8 %v3632
        %v3634 = vlaneseq
        %v3635 = vshrl.u32 %v3634, 7
        %v3636 = vsub.s32 %v3633, %v3635
        %v3637 = vrot.slane %v3614, %v3636
        %v3639 = vunpack.c.l.s4 1983009808
        %v3640 = vunpack.c.0.s8 %v3639
        %v3641 = vlaneseq
        %v3642 = vshrl.u32 %v3641, 7
        %v3643 = vsub.s32 %v3640, %v3642
        %v3644 = vrot.slane %v3630, %v3643
        %v3645 = vcombine.high %v3637, %v3637
        %v3646 = vcombine.high %v3644, %v3644
        %v3647 = vcombine.high %v3615, %v3615
        %v3649 = vunpack.c.l.s4 1983009808
        %v3650 = vunpack.c.0.s8 %v3649
        %v3651 = vlaneseq
        %v3652 = vshrl.u32 %v3651, 7
        %v3653 = vsub.s32 %v3650, %v3652
        %v3654 = vrot.slane %v3615, %v3653
        %v3656 = vunpack.c.l.s4 1983009808
        %v3657 = vunpack.c.0.s8 %v3656
        %v3658 = vlaneseq
        %v3659 = vshrl.u32 %v3658, 7
        %v3660 = vsub.s32 %v3657, %v3659
        %v3661 = vrot.slane %v3647, %v3660
        %v3662 = vcombine.high %v3654, %v3654
        %v3663 = vcombine.high %v3661, %v3661
        %v3664 = vcombine.high %v3616, %v3616
        %v3666 = vunpack.c.l.s4 1983009808
        %v3667 = vunpack.c.0.s8 %v3666
        %v3668 = vlaneseq
        %v3669 = vshrl.u32 %v3668, 7
        %v3670 = vsub.s32 %v3667, %v3669
        %v3671 = vrot.slane %v3616, %v3670
        %v3673 = vunpack.c.l.s4 1983009808
        %v3674 = vunpack.c.0.s8 %v3673
        %v3675 = vlaneseq
        %v3676 = vshrl.u32 %v3675, 7
        %v3677 = vsub.s32 %v3674, %v3676
        %v3678 = vrot.slane %v3664, %v3677
        %v3679 = vcombine.high %v3671, %v3671
        %v3680 = vcombine.high %v3678, %v3678
        %v3681 = vcombine.high %v3617, %v3617
        %v3683 = vunpack.c.l.s4 1983009808
        %v3684 = vunpack.c.0.s8 %v3683
        %v3685 = vlaneseq
        %v3686 = vshrl.u32 %v3685, 7
        %v3687 = vsub.s32 %v3684, %v3686
        %v3688 = vrot.slane %v3617, %v3687
        %v3690 = vunpack.c.l.s4 1983009808
        %v3691 = vunpack.c.0.s8 %v3690
        %v3692 = vlaneseq
        %v3693 = vshrl.u32 %v3692, 7
        %v3694 = vsub.s32 %v3691, %v3693
        %v3695 = vrot.slane %v3681, %v3694
        %v3696 = vcombine.high %v3688, %v3688
        %v3697 = vcombine.high %v3695, %v3695
        %v3698 = vcombine.high %v3618, %v3618
        %v3700 = vunpack.c.l.s4 1983009808
        %v3701 = vunpack.c.0.s8 %v3700
        %v3702 = vlaneseq
        %v3703 = vshrl.u32 %v3702, 7
        %v3704 = vsub.s32 %v3701, %v3703
        %v3705 = vrot.slane %v3618, %v3704
        %v3707 = vunpack.c.l.s4 1983009808
        %v3708 = vunpack.c.0.s8 %v3707
        %v3709 = vlaneseq
        %v3710 = vshrl.u32 %v3709, 7
        %v3711 = vsub.s32 %v3708, %v3710
        %v3712 = vrot.slane %v3698, %v3711
        %v3713 = vcombine.high %v3705, %v3705
        %v3714 = vcombine.high %v3712, %v3712
        %v3715 = vcombine.high %v3619, %v3619
        %v3717 = vunpack.c.l.s4 1983009808
        %v3718 = vunpack.c.0.s8 %v3717
        %v3719 = vlaneseq
        %v3720 = vshrl.u32 %v3719, 7
        %v3721 = vsub.s32 %v3718, %v3720
        %v3722 = vrot.slane %v3619, %v3721
        %v3724 = vunpack.c.l.s4 1983009808
        %v3725 = vunpack.c.0.s8 %v3724
        %v3726 = vlaneseq
        %v3727 = vshrl.u32 %v3726, 7
        %v3728 = vsub.s32 %v3725, %v3727
        %v3729 = vrot.slane %v3715, %v3728
        %v3730 = vcombine.high %v3722, %v3722
        %v3731 = vcombine.high %v3729, %v3729
        %v3732 = vcombine.high %v3620, %v3620
        %v3734 = vunpack.c.l.s4 1983009808
        %v3735 = vunpack.c.0.s8 %v3734
        %v3736 = vlaneseq
        %v3737 = vshrl.u32 %v3736, 7
        %v3738 = vsub.s32 %v3735, %v3737
        %v3739 = vrot.slane %v3620, %v3738
        %v3741 = vunpack.c.l.s4 1983009808
        %v3742 = vunpack.c.0.s8 %v3741
        %v3743 = vlaneseq
        %v3744 = vshrl.u32 %v3743, 7
        %v3745 = vsub.s32 %v3742, %v3744
        %v3746 = vrot.slane %v3732, %v3745
        %v3747 = vcombine.high %v3739, %v3739
        %v3748 = vcombine.high %v3746, %v3746
        %v3749 = vcombine.high %v3621, %v3621
        %v3751 = vunpack.c.l.s4 1983009808
        %v3752 = vunpack.c.0.s8 %v3751
        %v3753 = vlaneseq
        %v3754 = vshrl.u32 %v3753, 7
        %v3755 = vsub.s32 %v3752, %v3754
        %v3756 = vrot.slane %v3621, %v3755
        %v3758 = vunpack.c.l.s4 1983009808
        %v3759 = vunpack.c.0.s8 %v3758
        %v3760 = vlaneseq
        %v3761 = vshrl.u32 %v3760, 7
        %v3762 = vsub.s32 %v3759, %v3761
        %v3763 = vrot.slane %v3749, %v3762
        %v3764 = vcombine.high %v3756, %v3756
        %v3765 = vcombine.high %v3763, %v3763
        %v3798 = vrot.slane %v3637, 7
        %v3799 = vrot.slane %v3798, 2
        %v3800 = vrot.slane %v3645, 7
        %v3801 = vrot.slane %v3800, 2
        %v3802 = vrot.slane %v3644, 7
        %v3803 = vrot.slane %v3802, 2
        %v3804 = vrot.slane %v3646, 7
        %v3805 = vrot.slane %v3804, 2
        %v3806 = vrot.slane %v3654, 7
        %v3807 = vrot.slane %v3806, 2
        %v3808 = vrot.slane %v3662, 7
        %v3809 = vrot.slane %v3808, 2
        %v3810 = vrot.slane %v3661, 7
        %v3811 = vrot.slane %v3810, 2
        %v3812 = vrot.slane %v3663, 7
        %v3813 = vrot.slane %v3812, 2
        %v3814 = vrot.slane %v3671, 7
        %v3815 = vrot.slane %v3814, 2
        %v3816 = vrot.slane %v3679, 7
        %v3817 = vrot.slane %v3816, 2
        %v3818 = vrot.slane %v3678, 7
        %v3819 = vrot.slane %v3818, 2
        %v3820 = vrot.slane %v3680, 7
        %v3821 = vrot.slane %v3820, 2
        %v3822 = vrot.slane %v3688, 7
        %v3823 = vrot.slane %v3822, 2
        %v3824 = vrot.slane %v3696, 7
        %v3825 = vrot.slane %v3824, 2
        %v3826 = vrot.slane %v3695, 7
        %v3827 = vrot.slane %v3826, 2
        %v3828 = vrot.slane %v3697, 7
        %v3829 = vrot.slane %v3828, 2
        %v3830 = vrot.slane %v3705, 7
        %v3831 = vrot.slane %v3830, 2
        %v3832 = vrot.slane %v3713, 7
        %v3833 = vrot.slane %v3832, 2
        %v3834 = vrot.slane %v3712, 7
        %v3835 = vrot.slane %v3834, 2
        %v3836 = vrot.slane %v3714, 7
        %v3837 = vrot.slane %v3836, 2
        %v3838 = vrot.slane %v3722, 7
        %v3839 = vrot.slane %v3838, 2
        %v3840 = vrot.slane %v3730, 7
        %v3841 = vrot.slane %v3840, 2
        %v3842 = vrot.slane %v3729, 7
        %v3843 = vrot.slane %v3842, 2
        %v3844 = vrot.slane %v3731, 7
        %v3845 = vrot.slane %v3844, 2
        %v3846 = vrot.slane %v3739, 7
        %v3847 = vrot.slane %v3846, 2
        %v3848 = vrot.slane %v3747, 7
        %v3849 = vrot.slane %v3848, 2
        %v3850 = vrot.slane %v3746, 7
        %v3851 = vrot.slane %v3850, 2
        %v3852 = vrot.slane %v3748, 7
        %v3853 = vrot.slane %v3852, 2
        %v3854 = vrot.slane %v3756, 7
        %v3855 = vrot.slane %v3854, 2
        %v3856 = vrot.slane %v3764, 7
        %v3857 = vrot.slane %v3856, 2
        %v3858 = vrot.slane %v3763, 7
        %v3859 = vrot.slane %v3858, 2
        %v3860 = vrot.slane %v3765, 7
        %v3861 = vrot.slane %v3860, 2
        %v3894 = vadd.f32 %v3637, %v3799
        %v3895 = vadd.f32 %v3645, %v3801
        %v3896 = vadd.f32 %v3644, %v3803
        %v3897 = vadd.f32 %v3646, %v3805
        %v3898 = vadd.f32 %v3654, %v3807
        %v3899 = vadd.f32 %v3662, %v3809
        %v3900 = vadd.f32 %v3661, %v3811
        %v3901 = vadd.f32 %v3663, %v3813
        %v3902 = vadd.f32 %v3671, %v3815
        %v3903 = vadd.f32 %v3679, %v3817
        %v3904 = vadd.f32 %v3678, %v3819
        %v3905 = vadd.f32 %v3680, %v3821
        %v3906 = vadd.f32 %v3688, %v3823
        %v3907 = vadd.f32 %v3696, %v3825
        %v3908 = vadd.f32 %v3695, %v3827
        %v3909 = vadd.f32 %v3697, %v3829
        %v3910 = vadd.f32 %v3705, %v3831
        %v3911 = vadd.f32 %v3713, %v3833
        %v3912 = vadd.f32 %v3712, %v3835
        %v3913 = vadd.f32 %v3714, %v3837
        %v3914 = vadd.f32 %v3722, %v3839
        %v3915 = vadd.f32 %v3730, %v3841
        %v3916 = vadd.f32 %v3729, %v3843
        %v3917 = vadd.f32 %v3731, %v3845
        %v3918 = vadd.f32 %v3739, %v3847
        %v3919 = vadd.f32 %v3747, %v3849
        %v3920 = vadd.f32 %v3746, %v3851
        %v3921 = vadd.f32 %v3748, %v3853
        %v3922 = vadd.f32 %v3756, %v3855
        %v3923 = vadd.f32 %v3764, %v3857
        %v3924 = vadd.f32 %v3763, %v3859
        %v3925 = vadd.f32 %v3765, %v3861
        %v3926 = vmul.f32 %v3894, 0.25
        %v3927 = vmul.f32 %v3895, 0.25
        %v3928 = vmul.f32 %v3896, 0.25
        %v3929 = vmul.f32 %v3897, 0.25
        %v3930 = vmul.f32 %v3898, 0.25
        %v3931 = vmul.f32 %v3899, 0.25
        %v3932 = vmul.f32 %v3900, 0.25
        %v3933 = vmul.f32 %v3901, 0.25
        %v3934 = vmul.f32 %v3902, 0.25
        %v3935 = vmul.f32 %v3903, 0.25
        %v3936 = vmul.f32 %v3904, 0.25
        %v3937 = vmul.f32 %v3905, 0.25
        %v3938 = vmul.f32 %v3906, 0.25
        %v3939 = vmul.f32 %v3907, 0.25
        %v3940 = vmul.f32 %v3908, 0.25
        %v3941 = vmul.f32 %v3909, 0.25
        %v3942 = vmul.f32 %v3910, 0.25
        %v3943 = vmul.f32 %v3911, 0.25
        %v3944 = vmul.f32 %v3912, 0.25
        %v3945 = vmul.f32 %v3913, 0.25
        %v3946 = vmul.f32 %v3914, 0.25
        %v3947 = vmul.f32 %v3915, 0.25
        %v3948 = vmul.f32 %v3916, 0.25
        %v3949 = vmul.f32 %v3917, 0.25
        %v3950 = vmul.f32 %v3918, 0.25
        %v3951 = vmul.f32 %v3919, 0.25
        %v3952 = vmul.f32 %v3920, 0.25
        %v3953 = vmul.f32 %v3921, 0.25
        %v3954 = vmul.f32 %v3922, 0.25
        %v3955 = vmul.f32 %v3923, 0.25
        %v3956 = vmul.f32 %v3924, 0.25
        %v3957 = vmul.f32 %v3925, 0.25
        %v3990 = vlaneseq
        %v3991 = vshrl.u32 %v3990, 7
        %v3992 = vsub.s32 0, %v3991
        %v3993 = vrot.slane %v3926, %v3992
        %v3994 = vlaneseq
        %v3995 = vshrl.u32 %v3994, 7
        %v3996 = vsub.s32 0, %v3995
        %v3997 = vrot.slane %v3927, %v3996
        %v3998 = vlaneseq
        %v3999 = vshrl.u32 %v3998, 7
        %v4000 = vsub.s32 0, %v3999
        %v4001 = vrot.slane %v3928, %v4000
        %v4002 = vlaneseq
        %v4003 = vshrl.u32 %v4002, 7
        %v4004 = vsub.s32 0, %v4003
        %v4005 = vrot.slane %v3929, %v4004
        %v4006 = vlaneseq
        %v4007 = vshrl.u32 %v4006, 7
        %v4008 = vsub.s32 0, %v4007
        %v4009 = vrot.slane %v3930, %v4008
        %v4010 = vlaneseq
        %v4011 = vshrl.u32 %v4010, 7
        %v4012 = vsub.s32 0, %v4011
        %v4013 = vrot.slane %v3931, %v4012
        %v4014 = vlaneseq
        %v4015 = vshrl.u32 %v4014, 7
        %v4016 = vsub.s32 0, %v4015
        %v4017 = vrot.slane %v3932, %v4016
        %v4018 = vlaneseq
        %v4019 = vshrl.u32 %v4018, 7
        %v4020 = vsub.s32 0, %v4019
        %v4021 = vrot.slane %v3933, %v4020
        %v4022 = vlaneseq
        %v4023 = vshrl.u32 %v4022, 7
        %v4024 = vsub.s32 0, %v4023
        %v4025 = vrot.slane %v3934, %v4024
        %v4026 = vlaneseq
        %v4027 = vshrl.u32 %v4026, 7
        %v4028 = vsub.s32 0, %v4027
        %v4029 = vrot.slane %v3935, %v4028
        %v4030 = vlaneseq
        %v4031 = vshrl.u32 %v4030, 7
        %v4032 = vsub.s32 0, %v4031
        %v4033 = vrot.slane %v3936, %v4032
        %v4034 = vlaneseq
        %v4035 = vshrl.u32 %v4034, 7
        %v4036 = vsub.s32 0, %v4035
        %v4037 = vrot.slane %v3937, %v4036
        %v4038 = vlaneseq
        %v4039 = vshrl.u32 %v4038, 7
        %v4040 = vsub.s32 0, %v4039
        %v4041 = vrot.slane %v3938, %v4040
        %v4042 = vlaneseq
        %v4043 = vshrl.u32 %v4042, 7
        %v4044 = vsub.s32 0, %v4043
        %v4045 = vrot.slane %v3939, %v4044
        %v4046 = vlaneseq
        %v4047 = vshrl.u32 %v4046, 7
        %v4048 = vsub.s32 0, %v4047
        %v4049 = vrot.slane %v3940, %v4048
        %v4050 = vlaneseq
        %v4051 = vshrl.u32 %v4050, 7
        %v4052 = vsub.s32 0, %v4051
        %v4053 = vrot.slane %v3941, %v4052
        %v4054 = vlaneseq
        %v4055 = vshrl.u32 %v4054, 7
        %v4056 = vsub.s32 0, %v4055
        %v4057 = vrot.slane %v3942, %v4056
        %v4058 = vlaneseq
        %v4059 = vshrl.u32 %v4058, 7
        %v4060 = vsub.s32 0, %v4059
        %v4061 = vrot.slane %v3943, %v4060
        %v4062 = vlaneseq
        %v4063 = vshrl.u32 %v4062, 7
        %v4064 = vsub.s32 0, %v4063
        %v4065 = vrot.slane %v3944, %v4064
        %v4066 = vlaneseq
        %v4067 = vshrl.u32 %v4066, 7
        %v4068 = vsub.s32 0, %v4067
        %v4069 = vrot.slane %v3945, %v4068
        %v4070 = vlaneseq
        %v4071 = vshrl.u32 %v4070, 7
        %v4072 = vsub.s32 0, %v4071
        %v4073 = vrot.slane %v3946, %v4072
        %v4074 = vlaneseq
        %v4075 = vshrl.u32 %v4074, 7
        %v4076 = vsub.s32 0, %v4075
        %v4077 = vrot.slane %v3947, %v4076
        %v4078 = vlaneseq
        %v4079 = vshrl.u32 %v4078, 7
        %v4080 = vsub.s32 0, %v4079
        %v4081 = vrot.slane %v3948, %v4080
        %v4082 = vlaneseq
        %v4083 = vshrl.u32 %v4082, 7
        %v4084 = vsub.s32 0, %v4083
        %v4085 = vrot.slane %v3949, %v4084
        %v4086 = vlaneseq
        %v4087 = vshrl.u32 %v4086, 7
        %v4088 = vsub.s32 0, %v4087
        %v4089 = vrot.slane %v3950, %v4088
        %v4090 = vlaneseq
        %v4091 = vshrl.u32 %v4090, 7
        %v4092 = vsub.s32 0, %v4091
        %v4093 = vrot.slane %v3951, %v4092
        %v4094 = vlaneseq
        %v4095 = vshrl.u32 %v4094, 7
        %v4096 = vsub.s32 0, %v4095
        %v4097 = vrot.slane %v3952, %v4096
        %v4098 = vlaneseq
        %v4099 = vshrl.u32 %v4098, 7
        %v4100 = vsub.s32 0, %v4099
        %v4101 = vrot.slane %v3953, %v4100
        %v4102 = vlaneseq
        %v4103 = vshrl.u32 %v4102, 7
        %v4104 = vsub.s32 0, %v4103
        %v4105 = vrot.slane %v3954, %v4104
        %v4106 = vlaneseq
        %v4107 = vshrl.u32 %v4106, 7
        %v4108 = vsub.s32 0, %v4107
        %v4109 = vrot.slane %v3955, %v4108
        %v4110 = vlaneseq
        %v4111 = vshrl.u32 %v4110, 7
        %v4112 = vsub.s32 0, %v4111
        %v4113 = vrot.slane %v3956, %v4112
        %v4114 = vlaneseq
        %v4115 = vshrl.u32 %v4114, 7
        %v4116 = vsub.s32 0, %v4115
        %v4117 = vrot.slane %v3957, %v4116
        %vm4118 = vcmask 1041409
        %v4119 = vsel %vm4118, %v3997, %v3993
        %vm4120 = vcmask 1042434
        %v4121 = vsel %vm4120, %v4001, %v4119
        %vm4122 = vcmask 1043459
        %v4123 = vsel %vm4122, %v4005, %v4121
        %vm4124 = vcmask 1044484
        %v4125 = vsel %vm4124, %v4009, %v4123
        %vm4126 = vcmask 1045509
        %v4127 = vsel %vm4126, %v4013, %v4125
        %vm4128 = vcmask 1046534
        %v4129 = vsel %vm4128, %v4017, %v4127
        %vm4130 = vcmask 1047559
        %v4131 = vsel %vm4130, %v4021, %v4129
        %v4132 = vsel %vm4118, %v4029, %v4025
        %v4133 = vsel %vm4120, %v4033, %v4132
        %v4134 = vsel %vm4122, %v4037, %v4133
        %v4135 = vsel %vm4124, %v4041, %v4134
        %v4136 = vsel %vm4126, %v4045, %v4135
        %v4137 = vsel %vm4128, %v4049, %v4136
        %v4138 = vsel %vm4130, %v4053, %v4137
        %v4139 = vsel %vm4118, %v4061, %v4057
        %v4140 = vsel %vm4120, %v4065, %v4139
        %v4141 = vsel %vm4122, %v4069, %v4140
        %v4142 = vsel %vm4124, %v4073, %v4141
        %v4143 = vsel %vm4126, %v4077, %v4142
        %v4144 = vsel %vm4128, %v4081, %v4143
        %v4145 = vsel %vm4130, %v4085, %v4144
        %v4146 = vsel %vm4118, %v4093, %v4089
        %v4147 = vsel %vm4120, %v4097, %v4146
        %v4148 = vsel %vm4122, %v4101, %v4147
        %v4149 = vsel %vm4124, %v4105, %v4148
        %v4150 = vsel %vm4126, %v4109, %v4149
        %v4151 = vsel %vm4128, %v4113, %v4150
        %v4152 = vsel %vm4130, %v4117, %v4151
        %4157 = vst [vmem:[%s343] sm:$0xff] %v4131
        %4158 = vst [vmem:[%s343 + $0x8] sm:$0xff] %v4138
        %4159 = vst [vmem:[%s343 + $0x10] sm:$0xff] %v4145
        %4160 = vst [vmem:[%s343 + $0x18] sm:$0xff] %v4152
        %s4161 = sand.u32 %s201, 1
        %s4162 = scalar_lea.sflag [#allocation6], %s4161
        %s4163 = sand.u32 %s201, 1
        %s4164 = smul.addr %s4163, 32
        %s4165 = scalar_lea.vmem [#allocation10], %s4164
        // Predicated region
        $region69: #{tpu_custom_call.1} parent=47 // pred_check
          %p4166 = pneg %p211
        $region70: #{tpu_custom_call.1} parent=47 // pred_check_branch
          %4168 = sbr.rel (%p4166) target = $region72
        $region71: #{tpu_custom_call.1} parent=47 // pred_region
          %s4169 = smul.u32 4, %s30
          %s4171 = ssub.s32 512, 512
          %4172 = vsyncadd %s4162, %s4171
          %s4173 = smul.addr %s29, 8
          %s4174 = sadd.s32 %s4169, %s4173
          %s4175 = smul.addr %s4174, 128
          %s4176 = scalar_lea.hbm %s7, %s4175
          %s4177 = sshll.u32 %s4165, 4
          %s4178 = int_to_ptr.vmem [resolvable:$true] %s4177
          %4183 = dma.vmem_to_hbm [thread:$0]  %s4178, 512, %s4176, %s4162, 128, 128, 8
        $region72: #{tpu_custom_call.1} parent=47 // pred_fallthru
          _
      $region48: #{tpu_custom_call.1} parent=5 // pred_fallthru
        _
      %p4184 = scmp.le.s32.totalorder 2, %s20
      // Predicated region
      $region73: #{tpu_custom_call.1} parent=5 // pred_check
        %p4185 = pneg %p4184
      $region74: #{tpu_custom_call.1} parent=5 // pred_check_branch
        %4187 = sbr.rel (%p4185) target = $region76
      $region75: #{tpu_custom_call.1} parent=5 // pred_region
        %s4188 = ssub.s32 %s20, 2
        // Predicated region
        $region77: #{tpu_custom_call.1} parent=75 // pred_check
          %p4189 = pneg %p217
        $region78: #{tpu_custom_call.1} parent=75 // pred_check_branch
          %4191 = sbr.rel (%p4189) target = $region80
        $region79: #{tpu_custom_call.1} parent=75 // pred_region
          %s4192 = sand.u32 %s202, 1
          %s4193 = scalar_lea.sflag [#allocation6], %s4192
          %s4194 = sand.u32 %s202, 1
          %s4195 = smul.addr %s4194, 32
          %s4196 = scalar_lea.vmem [#allocation10], %s4195
          %4197 = dma.done %s4193, 512
        $region80: #{tpu_custom_call.1} parent=75 // pred_fallthru
          _
      $region76: #{tpu_custom_call.1} parent=5 // pred_fallthru
        _
    $region6: #{tpu_custom_call.1} parent=1 // loop_footer
      %s24 = sadd.s32 1, %s20
    $region7: #{tpu_custom_call.1} parent=1 // loop_footer_branch
      %19 = sbr.rel target = $region3
    $region8: #{tpu_custom_call.1} parent=1 // loop_exit
      _
    %4198 = vsyncpa [#allocation5], 1
    %s4199 = scalar_lea.sflag [#allocation5], 1
    %4200 = vsyncpa %s4199, 1
    %4201 = vsyncpa [#allocation8], 1
    %4202 = vsyncpa [#allocation6], 1
    %s4203 = scalar_lea.sflag [#allocation6], 1
    %4204 = vsyncpa %s4203, 1

</llo_original>
